<compile_context>
chip_gen: v5e
topology: v5e:2x2
jax: 0.10.0
libtpu: 0.0.40
codegen_flags: <defaults>
</compile_context>

<pallas_src>
import functools

import jax
import jax.numpy as jnp
from jax import lax
from jax.experimental import pallas as pl
from jax.experimental.pallas import tpu as pltpu


_DN_T = (((1,), (1,)), ((), ()))          # contract last dims: A @ B^T
_VMEM_LIMIT = 48 * 1024 * 1024            # safe on v5e/v6e (128 MiB) and v7x (64 MiB)


# ----------------------------- helpers -----------------------------

def _head_group(heads, dim_head):
    """Heads per grid step so the fused lane dim is a multiple of 128 (when possible)."""
    for hg in range(1, heads + 1):
        if heads % hg == 0 and (hg * dim_head) % 128 == 0:
            return hg
    return heads  # full-head block (block == full array dim, always legal)


def _row_tile(M, target=1024):
    """Row tile for projection kernels: multiple of 8 dividing M (<= target), else M."""
    if M <= target:
        return M
    best = None
    t = 8
    while t <= target:
        if M % t == 0:
            best = t
        t += 8
    # TODO(synk): masked remainder tiles would avoid the full-M fallback for awkward M.
    return best if best is not None else M


def _seq_tile(n_pad, target, min_tile=8):
    """Sequence tile: multiple of 8 dividing n_pad, >= min_tile, <= target; else n_pad."""
    best = None
    t = max(8, ((min_tile + 7) // 8) * 8)
    while t <= min(n_pad, target):
        if n_pad % t == 0:
            best = t
        t += 8
    return best if best is not None else n_pad


def _landmark_chunk(m, l, target=2048):
    """Landmarks produced per stage-1 tile (tile = c*l rows, multiple of 8)."""
    best = None
    for c in range(1, m + 1):
        if m % c == 0 and (c * l) % 8 == 0 and c * l <= target:
            best = c
    return best if best is not None else m


def _softmax_f32(s):
    s = s - jnp.max(s, axis=-1, keepdims=True)
    e = jnp.exp(s)
    return e * pl.reciprocal(jnp.sum(e, axis=-1, keepdims=True), approx=True)


# ----------------------------- projection kernels -----------------------------

def _qkv_kernel(x_ref, w_ref, q_ref, k_ref, v_ref):
    y = jnp.dot(x_ref[...].astype(jnp.bfloat16), w_ref[...],
                preferred_element_type=jnp.float32)
    inner = q_ref.shape[-1]
    q_ref[...] = y[:, :inner].astype(q_ref.dtype)
    k_ref[...] = y[:, inner:2 * inner].astype(k_ref.dtype)
    v_ref[...] = y[:, 2 * inner:].astype(v_ref.dtype)


def _qkv_proj(x2d, w_qkv_bf16, inner):
    M, K = x2d.shape
    N3 = w_qkv_bf16.shape[1]
    tm = _row_tile(M)
    out = jax.ShapeDtypeStruct((M, inner), jnp.bfloat16)
    return pl.pallas_call(
        _qkv_kernel,
        out_shape=(out, out, out),
        grid=(M // tm,),
        in_specs=[pl.BlockSpec((tm, K), lambda i: (i, 0)),
                  pl.BlockSpec((K, N3), lambda i: (0, 0))],
        out_specs=(pl.BlockSpec((tm, inner), lambda i: (i, 0)),
                   pl.BlockSpec((tm, inner), lambda i: (i, 0)),
                   pl.BlockSpec((tm, inner), lambda i: (i, 0))),
        compiler_params=pltpu.CompilerParams(
            dimension_semantics=("parallel",), vmem_limit_bytes=_VMEM_LIMIT),
    )(x2d, w_qkv_bf16)


def _out_proj_kernel(x_ref, w_ref, b_ref, o_ref):
    y = jnp.dot(x_ref[...], w_ref[...], preferred_element_type=jnp.float32)
    o_ref[...] = y + b_ref[...]


def _out_proj(x2d_bf16, w_out_bf16, b_out_f32):
    M, K = x2d_bf16.shape
    N = w_out_bf16.shape[1]
    tm = _row_tile(M)
    return pl.pallas_call(
        _out_proj_kernel,
        out_shape=jax.ShapeDtypeStruct((M, N), jnp.float32),
        grid=(M // tm,),
        in_specs=[pl.BlockSpec((tm, K), lambda i: (i, 0)),
                  pl.BlockSpec((K, N), lambda i: (0, 0)),
                  pl.BlockSpec((1, N), lambda i: (0, 0))],
        out_specs=pl.BlockSpec((tm, N), lambda i: (i, 0)),
        compiler_params=pltpu.CompilerParams(
            dimension_semantics=("parallel",), vmem_limit_bytes=_VMEM_LIMIT),
    )(x2d_bf16, w_out_bf16, b_out_f32)


# ------------- stage 1: landmarks (n-tiled) + attn2 + norm-factor parts -------------

def _stage1_kernel(q_ref, k_ref, pool_ref, ql_ref, kl_ref, a2_ref, nf_ref,
                   *, hg, dim_head, lm_chunk, inv_l):
    ni = pl.program_id(2)
    c = lm_chunk
    d = dim_head
    m = ql_ref.shape[2]

    # full hd-wide landmark sums for this n-tile (c landmarks), mean via f32 * inv_l
    pool = pool_ref[...]                                                  # (c, tn) bf16
    qc = jnp.dot(pool, q_ref[0], preferred_element_type=jnp.float32) * inv_l
    kc = jnp.dot(pool, k_ref[0], preferred_element_type=jnp.float32) * inv_l
    row = ni * c
    ql_ref[0, 0, pl.ds(row, c), :] = qc.astype(ql_ref.dtype)
    kl_ref[0, 0, pl.ds(row, c), :] = kc.astype(kl_ref.dtype)

    @pl.when(ni == pl.num_programs(2) - 1)
    def _():
        rm_g = jnp.full((1, 1), -jnp.inf, jnp.float32)
        cm_g = jnp.full((1, 1), -jnp.inf, jnp.float32)
        for i in range(hg):
            sl = slice(i * d, (i + 1) * d)
            q_l = ql_ref[0, 0, :, sl]
            k_l = kl_ref[0, 0, :, sl]
            sim2 = lax.dot_general(q_l, k_l, _DN_T, preferred_element_type=jnp.float32)
            a2 = _softmax_f32(sim2)                      # >= 0 so abs() is a no-op
            a2_ref[0, 0, :, i * m:(i + 1) * m] = a2
            rm = jnp.max(jnp.sum(a2, axis=1, keepdims=True), axis=0, keepdims=True)
            cm = jnp.max(jnp.sum(a2, axis=0, keepdims=True), axis=1, keepdims=True)
            rm_g = jnp.maximum(rm_g, rm)
            cm_g = jnp.maximum(cm_g, cm)
        nf_ref[0, 0, :, :] = jnp.concatenate([rm_g, cm_g], axis=1)


def _stage1_call(q, k, pool, *, hg, dim_head, num_landmarks, lm_chunk, tn, inv_l):
    b, n_pad, inner = q.shape
    m = num_landmarks
    hd = hg * dim_head
    ng = inner // hd
    nt = n_pad // tn
    kern = functools.partial(_stage1_kernel, hg=hg, dim_head=dim_head,
                             lm_chunk=lm_chunk, inv_l=inv_l)
    qk_spec = pl.BlockSpec((1, tn, hd), lambda bi, gi, ni: (bi, ni, gi))
    lm_spec = pl.BlockSpec((1, 1, m, hd), lambda bi, gi, ni: (bi, gi, 0, 0))
    return pl.pallas_call(
        kern,
        out_shape=(jax.ShapeDtypeStruct((b, ng, m, hd), jnp.bfloat16),
                   jax.ShapeDtypeStruct((b, ng, m, hd), jnp.bfloat16),
                   jax.ShapeDtypeStruct((b, ng, m, hg * m), jnp.float32),
                   jax.ShapeDtypeStruct((b, ng, 1, 2), jnp.float32)),
        grid=(b, ng, nt),
        in_specs=[qk_spec, qk_spec,
                  pl.BlockSpec((lm_chunk, tn), lambda bi, gi, ni: (0, 0))],
        out_specs=(lm_spec, lm_spec,
                   pl.BlockSpec((1, 1, m, hg * m), lambda bi, gi, ni: (bi, gi, 0, 0)),
                   pl.BlockSpec((1, 1, 1, 2), lambda bi, gi, ni: (bi, gi, 0, 0))),
        compiler_params=pltpu.CompilerParams(
            dimension_semantics=("parallel", "parallel", "arbitrary"),
            vmem_limit_bytes=_VMEM_LIMIT),
    )(q, k, pool)


# ------------- stage 2: colv = attn3 @ v with online softmax over n-tiles -------------

def _colv_kernel(ql_ref, k_ref, v_ref, colv_ref, m3_ref, l3_ref, acc_ref,
                 *, hg, dim_head):
    ni = pl.program_id(2)
    d = dim_head
    bf16 = jnp.bfloat16

    @pl.when(ni == 0)
    def _():
        m3_ref[...] = jnp.full(m3_ref.shape, -1e30, jnp.float32)
        l3_ref[...] = jnp.zeros(l3_ref.shape, jnp.float32)
        acc_ref[...] = jnp.zeros(acc_ref.shape, jnp.float32)

    for i in range(hg):
        sl = slice(i * d, (i + 1) * d)
        q_l = ql_ref[0, 0, :, sl]                          # (m, d)  bf16
        k_t = k_ref[0, :, sl]                              # (tn, d) bf16
        v_t = v_ref[0, :, sl]
        s3 = lax.dot_general(q_l, k_t, _DN_T, preferred_element_type=jnp.float32)  # (m, tn)
        m_old = m3_ref[:, i:i + 1]
        m_new = jnp.maximum(m_old, jnp.max(s3, axis=1, keepdims=True))
        alpha = jnp.exp(m_old - m_new)
        p = jnp.exp(s3 - m_new)
        l3_ref[:, i:i + 1] = alpha * l3_ref[:, i:i + 1] + jnp.sum(p, axis=1, keepdims=True)
        acc_ref[:, sl] = alpha * acc_ref[:, sl] + jnp.dot(
            p.astype(bf16), v_t, preferred_element_type=jnp.float32)
        m3_ref[:, i:i + 1] = m_new

    @pl.when(ni == pl.num_programs(2) - 1)
    def _():
        for i in range(hg):
            sl = slice(i * d, (i + 1) * d)
            inv = pl.reciprocal(l3_ref[:, i:i + 1], approx=True)
            colv_ref[0, 0, :, sl] = acc_ref[:, sl] * inv


def _colv_call(ql, k, v, *, hg, dim_head, num_landmarks, tn):
    b, n_pad, inner = k.shape
    m = num_landmarks
    hd = hg * dim_head
    ng = inner // hd
    nt = n_pad // tn
    kern = functools.partial(_colv_kernel, hg=hg, dim_head=dim_head)
    kv_spec = pl.BlockSpec((1, tn, hd), lambda bi, gi, ni: (bi, ni, gi))
    lm_spec = pl.BlockSpec((1, 1, m, hd), lambda bi, gi, ni: (bi, gi, 0, 0))
    return pl.pallas_call(
        kern,
        out_shape=jax.ShapeDtypeStruct((b, ng, m, hd), jnp.float32),
        grid=(b, ng, nt),
        in_specs=[lm_spec, kv_spec, kv_spec],
        out_specs=lm_spec,
        scratch_shapes=[pltpu.VMEM((m, hg), jnp.float32),
                        pltpu.VMEM((m, hg), jnp.float32),
                        pltpu.VMEM((m, hd), jnp.float32)],
        compiler_params=pltpu.CompilerParams(
            dimension_semantics=("parallel", "parallel", "arbitrary"),
            vmem_limit_bytes=_VMEM_LIMIT),
    )(ql, k, v)


# ------------- stage 3: Moore-Penrose pinv (bf16 MXU) fused with w = z @ colv -------------

def _pinv_w_kernel(nf_ref, a2_ref, colv_ref, eye_ref, w_ref, *, hg, pinv_iters):
    m = eye_ref.shape[0]
    d = colv_ref.shape[-1] // hg
    eye = eye_ref[...]                                     # (m, m) f32, resident
    eye_b = eye.astype(jnp.bfloat16)
    inv_nf = 1.0 / nf_ref[0, 0]                            # global norm factor (SMEM)
    bf16 = jnp.bfloat16

    for i in range(hg):
        a2 = a2_ref[0, 0, :, i * m:(i + 1) * m]            # (m, m) f32
        a2_b = a2.astype(bf16)
        # a2^T via bf16 eye-dot on the MXU (cheaper than an f32 matmul)
        a2t = lax.dot_general(eye_b, a2_b, _DN_T, preferred_element_type=jnp.float32)
        z0 = a2t * inv_nf

        def pinv_body(_, z):
            xz = jnp.dot(a2_b, z.astype(bf16), preferred_element_type=jnp.float32)
            xz_b = xz.astype(bf16)
            t = 7.0 * eye - xz
            t = 15.0 * eye - jnp.dot(xz_b, t.astype(bf16),
                                     preferred_element_type=jnp.float32)
            t = 13.0 * eye - jnp.dot(xz_b, t.astype(bf16),
                                     preferred_element_type=jnp.float32)
            return 0.25 * jnp.dot(z.astype(bf16), t.astype(bf16),
                                  preferred_element_type=jnp.float32)

        z = lax.fori_loop(0, pinv_iters, pinv_body, z0)
        colv_h = colv_ref[0, 0, :, i * d:(i + 1) * d]      # (m, d) f32
        w = jnp.dot(z.astype(bf16), colv_h.astype(bf16),
                    preferred_element_type=jnp.float32)
        w_ref[0, 0, :, i * d:(i + 1) * d] = w.astype(w_ref.dtype)


def _pinv_w_call(nf, attn2, colv, eye, *, hg, pinv_iters):
    b, ng, m, hd = colv.shape
    kern = functools.partial(_pinv_w_kernel, hg=hg, pinv_iters=pinv_iters)
    return pl.pallas_call(
        kern,
        out_shape=jax.ShapeDtypeStruct((b, ng, m, hd), jnp.bfloat16),
        grid=(b, ng),
        in_specs=[pl.BlockSpec(memory_space=pltpu.MemorySpace.SMEM),       # nf (1, 1)
                  pl.BlockSpec((1, 1, m, hg * m), lambda bi, gi: (bi, gi, 0, 0)),
                  pl.BlockSpec((1, 1, m, hd), lambda bi, gi: (bi, gi, 0, 0)),
                  pl.BlockSpec((m, m), lambda bi, gi: (0, 0))],
        out_specs=pl.BlockSpec((1, 1, m, hd), lambda bi, gi: (bi, gi, 0, 0)),
        compiler_params=pltpu.CompilerParams(
            dimension_semantics=("parallel", "parallel"),
            vmem_limit_bytes=_VMEM_LIMIT),
    )(nf, attn2, colv, eye)


# ------------- stage 4: out = attn1 @ w + depthwise residual conv (n-tiled) -------------

def _out_kernel(q_ref, kl_ref, w_ref, v_ref, halo_ref, cw_ref, o_ref,
                *, hg, dim_head, conv_k):
    d = dim_head
    tn = q_ref.shape[1]
    hd = q_ref.shape[2]
    pad = conv_k // 2
    bf16 = jnp.bfloat16

    # depthwise residual conv once per step at full head-group lane width (f32 VPU)
    v_t = v_ref[0].astype(jnp.float32)                                   # (tn, hd)
    if pad > 0:
        top = halo_ref[0, 0, :pad, :].astype(jnp.float32)
        bot = halo_ref[0, 0, pad:2 * pad, :].astype(jnp.float32)
        vloc = jnp.concatenate([top, v_t, bot], axis=0)                  # (tn + 2p, hd)
    else:
        vloc = v_t
    res = jnp.zeros((tn, hd), jnp.float32)
    for kk in range(conv_k):                                             # static taps
        res = res + cw_ref[0, kk:kk + 1, :] * vloc[kk:kk + tn, :]

    for i in range(hg):
        sl = slice(i * d, (i + 1) * d)
        q_h = q_ref[0, :, sl]                                            # (tn, d) bf16
        k_l = kl_ref[0, 0, :, sl]                                        # (m, d)  bf16
        s1 = lax.dot_general(q_h, k_l, _DN_T, preferred_element_type=jnp.float32)
        a1 = _softmax_f32(s1)                                            # (tn, m)
        o_h = jnp.dot(a1.astype(bf16), w_ref[0, 0, :, sl],
                      preferred_element_type=jnp.float32)                # (tn, d)
        o_ref[0, :, sl] = (o_h + res[:, sl]).astype(o_ref.dtype)


def _out_attn_call(q, kl, w, v, halo, conv_w_exp, *, hg, dim_head, num_landmarks,
                   conv_k, tn):
    b, n_pad, inner = q.shape
    m = num_landmarks
    hd = hg * dim_head
    ng = inner // hd
    nt = n_pad // tn
    halo_rows = halo.shape[2]
    kern = functools.partial(_out_kernel, hg=hg, dim_head=dim_head, conv_k=conv_k)
    seq_spec = pl.BlockSpec((1, tn, hd), lambda bi, gi, ni: (bi, ni, gi))
    lm_spec = pl.BlockSpec((1, 1, m, hd), lambda bi, gi, ni: (bi, gi, 0, 0))
    return pl.pallas_call(
        kern,
        out_shape=jax.ShapeDtypeStruct((b, n_pad, inner), jnp.bfloat16),
        grid=(b, ng, nt),
        in_specs=[seq_spec, lm_spec, lm_spec, seq_spec,
                  pl.BlockSpec((1, 1, halo_rows, hd), lambda bi, gi, ni: (bi, ni, 0, gi)),
                  pl.BlockSpec((1, conv_k, hd), lambda bi, gi, ni: (gi, 0, 0))],
        out_specs=seq_spec,
        compiler_params=pltpu.CompilerParams(
            dimension_semantics=("parallel", "parallel", "parallel"),
            vmem_limit_bytes=_VMEM_LIMIT),
    )(q, kl, w, v, halo, conv_w_exp)


# ----------------------------- full forward -----------------------------

def nystrom_attention(x, params, *, heads, dim_head, num_landmarks,
                      pinv_iterations, residual_conv_kernel):
    # TODO(synk): mask / return_attn / dropout>0 paths of the reference module are
    # not implemented (this is the mask=None, return_attn=False, eval forward).
    b, n, dim = x.shape
    m = num_landmarks
    d = dim_head
    inner = heads * dim_head
    scale = dim_head ** (-0.5)
    conv_k = residual_conv_kernel
    pad = conv_k // 2

    rem = n % m
    if rem != 0:
        x = jnp.pad(x, ((0, 0), (0, m - rem), (0, 0)))
    n_pad = x.shape[1]
    l = n_pad // m                                    # == ceil(n / m)

    hg = _head_group(heads, dim_head)
    hd = hg * dim_head
    ng = inner // hd

    # fold q-scale into the qkv weight; bf16 weights for the MXU
    w_qkv = params["w_qkv_t"]
    w_qkv = jnp.concatenate([w_qkv[:, :inner] * scale, w_qkv[:, inner:]], axis=1)
    w_qkv = w_qkv.astype(jnp.bfloat16)
    w_out = params["w_out_t"].astype(jnp.bfloat16)
    b_out = params["b_out"].astype(jnp.float32)
    conv_w = params["conv_w"].astype(jnp.float32)

    q, k, v = _qkv_proj(x.reshape(b * n_pad, dim), w_qkv, inner)
    q = q.reshape(b, n_pad, inner)
    k = k.reshape(b, n_pad, inner)
    v = v.reshape(b, n_pad, inner)

    # ---- stage 1: landmarks (n-tiled), attn2, norm-factor parts ----
    c = _landmark_chunk(m, l, target=2048)
    tn1 = c * l
    rows = jnp.arange(c, dtype=jnp.int32)[:, None]
    cols = jnp.arange(tn1, dtype=jnp.int32)[None, :]
    pool = jnp.where((cols // l) == rows, 1.0, 0.0).astype(jnp.bfloat16)   # (c, tn1)

    ql, kl, attn2, nfp = _stage1_call(
        q, k, pool, hg=hg, dim_head=d, num_landmarks=m,
        lm_chunk=c, tn=tn1, inv_l=float(1.0 / l))

    # global Moore-Penrose norm factor: max row-sum * max col-sum over ALL (b, h)
    nf = (jnp.max(nfp[..., 0]) * jnp.max(nfp[..., 1])).reshape(1, 1).astype(jnp.float32)

    # ---- stage 2: attn3 @ v via online softmax over n-tiles ----
    tn3 = _seq_tile(n_pad, target=1024)
    colv = _colv_call(ql, k, v, hg=hg, dim_head=d, num_landmarks=m, tn=tn3)

    # ---- stage 3: pinv(attn2) and w = z @ (attn3 @ v) ----
    eye = jnp.eye(m, dtype=jnp.float32)
    w = _pinv_w_call(nf, attn2, colv, eye, hg=hg, pinv_iters=pinv_iterations)

    # ---- stage 4: out = attn1 @ w + depthwise residual conv, n-tiled ----
    tn5 = _seq_tile(n_pad, target=1024, min_tile=max(8, pad))
    nt5 = n_pad // tn5
    if pad > 0 and nt5 > 1:
        zp = jnp.zeros((b, pad, inner), v.dtype)
        v_ext = jnp.concatenate([zp, v, zp], axis=1)                      # (b, n+2p, inner)
        top = v_ext[:, :n_pad].reshape(b, nt5, tn5, inner)[:, :, :pad]
        bot = v_ext[:, 2 * pad:].reshape(b, nt5, tn5, inner)[:, :, tn5 - pad:]
        halo = jnp.concatenate([top, bot], axis=2)                        # (b, T, 2p, inner)
    else:
        halo = jnp.zeros((b, nt5, max(2 * pad, 8), inner), v.dtype)

    # expanded depthwise taps at full head-group lane width: (ng, conv_k, hd)
    cw = jnp.repeat(conv_w[:, :, None], d, axis=2)                        # (heads, K, d)
    cw = cw.reshape(ng, hg, conv_k, d).transpose(0, 2, 1, 3).reshape(ng, conv_k, hd)

    out = _out_attn_call(q, kl, w, v, halo, cw, hg=hg, dim_head=d,
                         num_landmarks=m, conv_k=conv_k, tn=tn5)

    # already in 'b n (h d)' layout -> straight into to_out, then un-pad
    out = _out_proj(out.reshape(b * n_pad, inner), w_out, b_out)
    return out.reshape(b, n_pad, dim)[:, :n]


# ----------------------------- main -----------------------------

if __name__ == "__main__":
    B, N, DIM = 2, 12, 32
    HEADS, DIM_HEAD = 4, 8
    NUM_LANDMARKS = 8
    PINV_ITERS = 6
    CONV_K = 33                      # residual_conv_kernel (module default)
    INNER = HEADS * DIM_HEAD

    key = jax.random.PRNGKey(0)
    kx, kqkv, kout, kconv = jax.random.split(key, 4)

    x = jax.random.normal(kx, (B, N, DIM), jnp.float32)
    params = {
        # stored pre-transposed for x @ W^T semantics of nn.Linear
        "w_qkv_t": 0.05 * jax.random.normal(kqkv, (DIM, 3 * INNER), jnp.float32),
        "w_out_t": 0.05 * jax.random.normal(kout, (INNER, DIM), jnp.float32),
        "b_out": jnp.zeros((1, DIM), jnp.float32),
        # PyTorch conv weight (heads, 1, K, 1) stored as (heads, K)
        "conv_w": 0.05 * jax.random.normal(kconv, (HEADS, CONV_K), jnp.float32),
    }

    fwd = jax.jit(functools.partial(
        nystrom_attention,
        heads=HEADS, dim_head=DIM_HEAD, num_landmarks=NUM_LANDMARKS,
        pinv_iterations=PINV_ITERS, residual_conv_kernel=CONV_K))

    out = fwd(x, params)
    jax.block_until_ready(out)
    assert out.shape == (B, N, DIM), out.shape
    assert bool(jnp.all(jnp.isfinite(out)))
    print("KERNEL_OK")
</pallas_src>

<mosaic_0001>
module attributes {stable_mosaic.version = 11 : i64} {
  func.func @_qkv_kernel(%arg0: i32, %arg1: memref<32x32xf32, #tpu.memory_space<vmem>>, %arg2: memref<32x96xbf16, #tpu.memory_space<vmem>>, %arg3: memref<32x32xbf16, #tpu.memory_space<vmem>>, %arg4: memref<32x32xbf16, #tpu.memory_space<vmem>>, %arg5: memref<32x32xbf16, #tpu.memory_space<vmem>>) attributes {dimension_semantics = [#tpu.dimension_semantics<parallel>], iteration_bounds = array<i64: 1>, scalar_prefetch = 0 : i64, scratch_operands = 0 : i64, tpu.core_type = #tpu.core_type<tc>, window_params = [{transform_indices = @transform_0, window_bounds = array<i64: 32, 32>}, {pipeline_mode = #tpu.pipeline_mode<synchronous>, transform_indices = @transform_1, window_bounds = array<i64: 32, 96>}, {transform_indices = @transform_2, window_bounds = array<i64: 32, 32>}, {transform_indices = @transform_3, window_bounds = array<i64: 32, 32>}, {transform_indices = @transform_4, window_bounds = array<i64: 32, 32>}]} {
    %c0 = arith.constant 0 : index
    %c0_0 = arith.constant 0 : index
    %0 = vector.load %arg1[%c0, %c0_0] : memref<32x32xf32, #tpu.memory_space<vmem>>, vector<32x32xf32>
    %1 = arith.truncf %0 : vector<32x32xf32> to vector<32x32xbf16>
    %c0_1 = arith.constant 0 : index
    %c0_2 = arith.constant 0 : index
    %2 = vector.load %arg2[%c0_1, %c0_2] : memref<32x96xbf16, #tpu.memory_space<vmem>>, vector<32x96xbf16>
    %cst = arith.constant dense<0.000000e+00> : vector<32x96xf32>
    %3 = tpu.matmul %1, %2, %cst {dimension_numbers = #tpu.dot_dimension_numbers<[1], [0], [0], [1], [0, 0, 1, 1], [], []>} : vector<32x32xbf16>, vector<32x96xbf16>, vector<32x96xf32> -> vector<32x96xf32>
    %4 = vector.extract_strided_slice %3 {offsets = [0, 0], sizes = [32, 32], strides = [1, 1]} : vector<32x96xf32> to vector<32x32xf32>
    %5 = arith.truncf %4 : vector<32x32xf32> to vector<32x32xbf16>
    %c0_3 = arith.constant 0 : index
    %c0_4 = arith.constant 0 : index
    %6 = vector.load %arg3[%c0_3, %c0_4] : memref<32x32xbf16, #tpu.memory_space<vmem>>, vector<32x32xbf16>
    tpu.vector_store %arg3[%c0_3, %c0_4], %5 {strides = array<i32>} : memref<32x32xbf16, #tpu.memory_space<vmem>>, vector<32x32xbf16>,
    %7 = vector.extract_strided_slice %3 {offsets = [0, 32], sizes = [32, 32], strides = [1, 1]} : vector<32x96xf32> to vector<32x32xf32>
    %8 = arith.truncf %7 : vector<32x32xf32> to vector<32x32xbf16>
    %c0_5 = arith.constant 0 : index
    %c0_6 = arith.constant 0 : index
    %9 = vector.load %arg4[%c0_5, %c0_6] : memref<32x32xbf16, #tpu.memory_space<vmem>>, vector<32x32xbf16>
    tpu.vector_store %arg4[%c0_5, %c0_6], %8 {strides = array<i32>} : memref<32x32xbf16, #tpu.memory_space<vmem>>, vector<32x32xbf16>,
    %10 = vector.extract_strided_slice %3 {offsets = [0, 64], sizes = [32, 32], strides = [1, 1]} : vector<32x96xf32> to vector<32x32xf32>
    %11 = arith.truncf %10 : vector<32x32xf32> to vector<32x32xbf16>
    %c0_7 = arith.constant 0 : index
    %c0_8 = arith.constant 0 : index
    %12 = vector.load %arg5[%c0_7, %c0_8] : memref<32x32xbf16, #tpu.memory_space<vmem>>, vector<32x32xbf16>
    tpu.vector_store %arg5[%c0_7, %c0_8], %11 {strides = array<i32>} : memref<32x32xbf16, #tpu.memory_space<vmem>>, vector<32x32xbf16>,
    return
  }
  func.func @transform_0(%arg0: i32) -> (i32, i32) {
    %c0_i32 = arith.constant 0 : i32
    %c0_i32_0 = arith.constant 0 : i32
    return %arg0, %c0_i32 : i32, i32
  }
  func.func @transform_1(%arg0: i32) -> (i32, i32) {
    %c0_i32 = arith.constant 0 : i32
    %c0_i32_0 = arith.constant 0 : i32
    %c0_i32_1 = arith.constant 0 : i32
    return %c0_i32, %c0_i32_0 : i32, i32
  }
  func.func @transform_2(%arg0: i32) -> (i32, i32) {
    %c0_i32 = arith.constant 0 : i32
    %c0_i32_0 = arith.constant 0 : i32
    return %arg0, %c0_i32 : i32, i32
  }
  func.func @transform_3(%arg0: i32) -> (i32, i32) {
    %c0_i32 = arith.constant 0 : i32
    %c0_i32_0 = arith.constant 0 : i32
    return %arg0, %c0_i32 : i32, i32
  }
  func.func @transform_4(%arg0: i32) -> (i32, i32) {
    %c0_i32 = arith.constant 0 : i32
    %c0_i32_0 = arith.constant 0 : i32
    return %arg0, %c0_i32 : i32, i32
  }
}

module attributes {stable_mosaic.version = 11 : i64} {
  func.func @_stage1_kernel(%arg0: i32, %arg1: i32, %arg2: i32, %arg3: memref<1x16x32xbf16, #tpu.memory_space<vmem>>, %arg4: memref<1x16x32xbf16, #tpu.memory_space<vmem>>, %arg5: memref<8x16xbf16, #tpu.memory_space<vmem>>, %arg6: memref<1x1x8x32xbf16, #tpu.memory_space<vmem>>, %arg7: memref<1x1x8x32xbf16, #tpu.memory_space<vmem>>, %arg8: memref<1x1x8x32xf32, #tpu.memory_space<vmem>>, %arg9: memref<1x1x1x2xf32, #tpu.memory_space<vmem>>) attributes {dimension_semantics = [#tpu.dimension_semantics<parallel>, #tpu.dimension_semantics<parallel>, #tpu.dimension_semantics<arbitrary>], iteration_bounds = array<i64: 2, 1, 1>, scalar_prefetch = 0 : i64, scratch_operands = 0 : i64, tpu.core_type = #tpu.core_type<tc>, window_params = [{transform_indices = @transform_0, window_bounds = array<i64: 1, 16, 32>}, {transform_indices = @transform_1, window_bounds = array<i64: 1, 16, 32>}, {pipeline_mode = #tpu.pipeline_mode<synchronous>, transform_indices = @transform_2, window_bounds = array<i64: 8, 16>}, {transform_indices = @transform_3, window_bounds = array<i64: 1, 1, 8, 32>}, {transform_indices = @transform_4, window_bounds = array<i64: 1, 1, 8, 32>}, {transform_indices = @transform_5, window_bounds = array<i64: 1, 1, 8, 32>}, {transform_indices = @transform_6, window_bounds = array<i64: 1, 1, 1, 2>}]} {
    %c0 = arith.constant 0 : index
    %c0_0 = arith.constant 0 : index
    %0 = vector.load %arg5[%c0, %c0_0] : memref<8x16xbf16, #tpu.memory_space<vmem>>, vector<8x16xbf16>
    %c0_1 = arith.constant 0 : index
    %c0_2 = arith.constant 0 : index
    %c0_3 = arith.constant 0 : index
    %1 = vector.load %arg3[%c0_1, %c0_2, %c0_3] : memref<1x16x32xbf16, #tpu.memory_space<vmem>>, vector<1x16x32xbf16>
    %2 = vector.shape_cast %1 : vector<1x16x32xbf16> to vector<16x32xbf16>
    %cst = arith.constant dense<0.000000e+00> : vector<8x32xf32>
    %3 = tpu.matmul %0, %2, %cst {dimension_numbers = #tpu.dot_dimension_numbers<[1], [0], [0], [1], [0, 0, 1, 1], [], []>} : vector<8x16xbf16>, vector<16x32xbf16>, vector<8x32xf32> -> vector<8x32xf32>
    %cst_4 = arith.constant 5.000000e-01 : f32
    %4 = vector.broadcast %cst_4 : f32 to vector<8x32xf32>
    %5 = arith.mulf %3, %4 : vector<8x32xf32>
    %c0_5 = arith.constant 0 : index
    %c0_6 = arith.constant 0 : index
    %c0_7 = arith.constant 0 : index
    %6 = vector.load %arg4[%c0_5, %c0_6, %c0_7] : memref<1x16x32xbf16, #tpu.memory_space<vmem>>, vector<1x16x32xbf16>
    %7 = vector.shape_cast %6 : vector<1x16x32xbf16> to vector<16x32xbf16>
    %cst_8 = arith.constant dense<0.000000e+00> : vector<8x32xf32>
    %8 = tpu.matmul %0, %7, %cst_8 {dimension_numbers = #tpu.dot_dimension_numbers<[1], [0], [0], [1], [0, 0, 1, 1], [], []>} : vector<8x16xbf16>, vector<16x32xbf16>, vector<8x32xf32> -> vector<8x32xf32>
    %cst_9 = arith.constant 5.000000e-01 : f32
    %9 = vector.broadcast %cst_9 : f32 to vector<8x32xf32>
    %10 = arith.mulf %8, %9 : vector<8x32xf32>
    %c8_i32 = arith.constant 8 : i32
    %11 = arith.muli %arg2, %c8_i32 : i32
    %12 = arith.truncf %5 : vector<8x32xf32> to vector<8x32xbf16>
    %c0_10 = arith.constant 0 : index
    %c0_11 = arith.constant 0 : index
    %13 = arith.index_cast %11 : i32 to index
    %c0_12 = arith.constant 0 : index
    %14 = vector.load %arg6[%c0_10, %c0_11, %13, %c0_12] : memref<1x1x8x32xbf16, #tpu.memory_space<vmem>>, vector<1x1x8x32xbf16>
    %15 = vector.shape_cast %14 : vector<1x1x8x32xbf16> to vector<8x32xbf16>
    %16 = vector.shape_cast %12 : vector<8x32xbf16> to vector<1x1x8x32xbf16>
    tpu.vector_store %arg6[%c0_10, %c0_11, %13, %c0_12], %16 {strides = array<i32>} : memref<1x1x8x32xbf16, #tpu.memory_space<vmem>>, vector<1x1x8x32xbf16>,
    %17 = arith.truncf %10 : vector<8x32xf32> to vector<8x32xbf16>
    %c0_13 = arith.constant 0 : index
    %c0_14 = arith.constant 0 : index
    %18 = arith.index_cast %11 : i32 to index
    %c0_15 = arith.constant 0 : index
    %19 = vector.load %arg7[%c0_13, %c0_14, %18, %c0_15] : memref<1x1x8x32xbf16, #tpu.memory_space<vmem>>, vector<1x1x8x32xbf16>
    %20 = vector.shape_cast %19 : vector<1x1x8x32xbf16> to vector<8x32xbf16>
    %21 = vector.shape_cast %17 : vector<8x32xbf16> to vector<1x1x8x32xbf16>
    tpu.vector_store %arg7[%c0_13, %c0_14, %18, %c0_15], %21 {strides = array<i32>} : memref<1x1x8x32xbf16, #tpu.memory_space<vmem>>, vector<1x1x8x32xbf16>,
    %c0_i32 = arith.constant 0 : i32
    %22 = arith.cmpi eq, %arg2, %c0_i32 : i32
    %23 = arith.extui %22 : i1 to i32
    %c0_i32_16 = arith.constant 0 : i32
    %24 = arith.cmpi ne, %23, %c0_i32_16 : i32
    scf.if %24 {
      %cst_17 = arith.constant 0xFF800000 : f32
      %25 = vector.broadcast %cst_17 : f32 to vector<1x1xf32>
      %cst_18 = arith.constant 0xFF800000 : f32
      %26 = vector.broadcast %cst_18 : f32 to vector<1x1xf32>
      %c0_19 = arith.constant 0 : index
      %c0_20 = arith.constant 0 : index
      %c0_21 = arith.constant 0 : index
      %c0_22 = arith.constant 0 : index
      %27 = vector.load %arg6[%c0_19, %c0_20, %c0_21, %c0_22] : memref<1x1x8x32xbf16, #tpu.memory_space<vmem>>, vector<1x1x8x8xbf16>
      %28 = vector.shape_cast %27 : vector<1x1x8x8xbf16> to vector<8x8xbf16>
      %c0_23 = arith.constant 0 : index
      %c0_24 = arith.constant 0 : index
      %c0_25 = arith.constant 0 : index
      %c0_26 = arith.constant 0 : index
      %29 = vector.load %arg7[%c0_23, %c0_24, %c0_25, %c0_26] : memref<1x1x8x32xbf16, #tpu.memory_space<vmem>>, vector<1x1x8x8xbf16>
      %30 = vector.shape_cast %29 : vector<1x1x8x8xbf16> to vector<8x8xbf16>
      %cst_27 = arith.constant dense<0.000000e+00> : vector<8x8xf32>
      %31 = tpu.matmul %28, %30, %cst_27 {dimension_numbers = #tpu.dot_dimension_numbers<[1], [1], [0], [0], [0, 0, 1, 0], [], []>} : vector<8x8xbf16>, vector<8x8xbf16>, vector<8x8xf32> -> vector<8x8xf32>
      %cst_28 = arith.constant dense<0xFF800000> : vector<8xf32>
      %32 = vector.multi_reduction <maximumf>, %31, %cst_28 [1] : vector<8x8xf32> to vector<8xf32>
      %33 = vector.shape_cast %32 : vector<8xf32> to vector<8x1xf32>
      %34 = vector.broadcast %33 : vector<8x1xf32> to vector<8x8xf32>
      %35 = arith.subf %31, %34 : vector<8x8xf32>
      %36 = math.exp %35 : vector<8x8xf32>
      %cst_29 = arith.constant dense<0.000000e+00> : vector<8xf32>
      %37 = vector.multi_reduction <add>, %36, %cst_29 [1] : vector<8x8xf32> to vector<8xf32>
      %38 = vector.shape_cast %37 : vector<8xf32> to vector<8x1xf32>
      %39 = tpu.reciprocal %38 {approx = true} : vector<8x1xf32> -> vector<8x1xf32>
      %40 = vector.broadcast %39 : vector<8x1xf32> to vector<8x8xf32>
      %41 = arith.mulf %36, %40 : vector<8x8xf32>
      %c0_30 = arith.constant 0 : index
      %c0_31 = arith.constant 0 : index
      %c0_32 = arith.constant 0 : index
      %c0_33 = arith.constant 0 : index
      %42 = vector.load %arg8[%c0_30, %c0_31, %c0_32, %c0_33] : memref<1x1x8x32xf32, #tpu.memory_space<vmem>>, vector<1x1x8x8xf32>
      %43 = vector.shape_cast %42 : vector<1x1x8x8xf32> to vector<8x8xf32>
      %44 = vector.shape_cast %41 : vector<8x8xf32> to vector<1x1x8x8xf32>
      tpu.vector_store %arg8[%c0_30, %c0_31, %c0_32, %c0_33], %44 {strides = array<i32>} : memref<1x1x8x32xf32, #tpu.memory_space<vmem>>, vector<1x1x8x8xf32>,
      %cst_34 = arith.constant dense<0.000000e+00> : vector<8xf32>
      %45 = vector.multi_reduction <add>, %41, %cst_34 [1] : vector<8x8xf32> to vector<8xf32>
      %46 = vector.shape_cast %45 : vector<8xf32> to vector<8x1xf32>
      %cst_35 = arith.constant dense<0xFF800000> : vector<1xf32>
      %47 = vector.multi_reduction <maximumf>, %46, %cst_35 [0] : vector<8x1xf32> to vector<1xf32>
      %48 = vector.shape_cast %47 : vector<1xf32> to vector<1x1xf32>
      %cst_36 = arith.constant dense<0.000000e+00> : vector<8xf32>
      %49 = vector.multi_reduction <add>, %41, %cst_36 [0] : vector<8x8xf32> to vector<8xf32>
      %50 = vector.shape_cast %49 : vector<8xf32> to vector<1x8xf32>
      %cst_37 = arith.constant dense<0xFF800000> : vector<1xf32>
      %51 = vector.multi_reduction <maximumf>, %50, %cst_37 [1] : vector<1x8xf32> to vector<1xf32>
      %52 = vector.shape_cast %51 : vector<1xf32> to vector<1x1xf32>
      %53 = arith.maximumf %25, %48 : vector<1x1xf32>
      %54 = arith.maximumf %26, %52 : vector<1x1xf32>
      %c0_38 = arith.constant 0 : index
      %c0_39 = arith.constant 0 : index
      %c0_40 = arith.constant 0 : index
      %c8 = arith.constant 8 : index
      %55 = vector.load %arg6[%c0_38, %c0_39, %c0_40, %c8] : memref<1x1x8x32xbf16, #tpu.memory_space<vmem>>, vector<1x1x8x8xbf16>
      %56 = vector.shape_cast %55 : vector<1x1x8x8xbf16> to vector<8x8xbf16>
      %c0_41 = arith.constant 0 : index
      %c0_42 = arith.constant 0 : index
      %c0_43 = arith.constant 0 : index
      %c8_44 = arith.constant 8 : index
      %57 = vector.load %arg7[%c0_41, %c0_42, %c0_43, %c8_44] : memref<1x1x8x32xbf16, #tpu.memory_space<vmem>>, vector<1x1x8x8xbf16>
      %58 = vector.shape_cast %57 : vector<1x1x8x8xbf16> to vector<8x8xbf16>
      %cst_45 = arith.constant dense<0.000000e+00> : vector<8x8xf32>
      %59 = tpu.matmul %56, %58, %cst_45 {dimension_numbers = #tpu.dot_dimension_numbers<[1], [1], [0], [0], [0, 0, 1, 0], [], []>} : vector<8x8xbf16>, vector<8x8xbf16>, vector<8x8xf32> -> vector<8x8xf32>
      %cst_46 = arith.constant dense<0xFF800000> : vector<8xf32>
      %60 = vector.multi_reduction <maximumf>, %59, %cst_46 [1] : vector<8x8xf32> to vector<8xf32>
      %61 = vector.shape_cast %60 : vector<8xf32> to vector<8x1xf32>
      %62 = vector.broadcast %61 : vector<8x1xf32> to vector<8x8xf32>
      %63 = arith.subf %59, %62 : vector<8x8xf32>
      %64 = math.exp %63 : vector<8x8xf32>
      %cst_47 = arith.constant dense<0.000000e+00> : vector<8xf32>
      %65 = vector.multi_reduction <add>, %64, %cst_47 [1] : vector<8x8xf32> to vector<8xf32>
      %66 = vector.shape_cast %65 : vector<8xf32> to vector<8x1xf32>
      %67 = tpu.reciprocal %66 {approx = true} : vector<8x1xf32> -> vector<8x1xf32>
      %68 = vector.broadcast %67 : vector<8x1xf32> to vector<8x8xf32>
      %69 = arith.mulf %64, %68 : vector<8x8xf32>
      %c0_48 = arith.constant 0 : index
      %c0_49 = arith.constant 0 : index
      %c0_50 = arith.constant 0 : index
      %c8_51 = arith.constant 8 : index
      %70 = vector.load %arg8[%c0_48, %c0_49, %c0_50, %c8_51] : memref<1x1x8x32xf32, #tpu.memory_space<vmem>>, vector<1x1x8x8xf32>
      %71 = vector.shape_cast %70 : vector<1x1x8x8xf32> to vector<8x8xf32>
      %72 = vector.shape_cast %69 : vector<8x8xf32> to vector<1x1x8x8xf32>
      tpu.vector_store %arg8[%c0_48, %c0_49, %c0_50, %c8_51], %72 {strides = array<i32>} : memref<1x1x8x32xf32, #tpu.memory_space<vmem>>, vector<1x1x8x8xf32>,
      %cst_52 = arith.constant dense<0.000000e+00> : vector<8xf32>
      %73 = vector.multi_reduction <add>, %69, %cst_52 [1] : vector<8x8xf32> to vector<8xf32>
      %74 = vector.shape_cast %73 : vector<8xf32> to vector<8x1xf32>
      %cst_53 = arith.constant dense<0xFF800000> : vector<1xf32>
      %75 = vector.multi_reduction <maximumf>, %74, %cst_53 [0] : vector<8x1xf32> to vector<1xf32>
      %76 = vector.shape_cast %75 : vector<1xf32> to vector<1x1xf32>
      %cst_54 = arith.constant dense<0.000000e+00> : vector<8xf32>
      %77 = vector.multi_reduction <add>, %69, %cst_54 [0] : vector<8x8xf32> to vector<8xf32>
      %78 = vector.shape_cast %77 : vector<8xf32> to vector<1x8xf32>
      %cst_55 = arith.constant dense<0xFF800000> : vector<1xf32>
      %79 = vector.multi_reduction <maximumf>, %78, %cst_55 [1] : vector<1x8xf32> to vector<1xf32>
      %80 = vector.shape_cast %79 : vector<1xf32> to vector<1x1xf32>
      %81 = arith.maximumf %53, %76 : vector<1x1xf32>
      %82 = arith.maximumf %54, %80 : vector<1x1xf32>
      %c0_56 = arith.constant 0 : index
      %c0_57 = arith.constant 0 : index
      %c0_58 = arith.constant 0 : index
      %c16 = arith.constant 16 : index
      %83 = vector.load %arg6[%c0_56, %c0_57, %c0_58, %c16] : memref<1x1x8x32xbf16, #tpu.memory_space<vmem>>, vector<1x1x8x8xbf16>
      %84 = vector.shape_cast %83 : vector<1x1x8x8xbf16> to vector<8x8xbf16>
      %c0_59 = arith.constant 0 : index
      %c0_60 = arith.constant 0 : index
      %c0_61 = arith.constant 0 : index
      %c16_62 = arith.constant 16 : index
      %85 = vector.load %arg7[%c0_59, %c0_60, %c0_61, %c16_62] : memref<1x1x8x32xbf16, #tpu.memory_space<vmem>>, vector<1x1x8x8xbf16>
      %86 = vector.shape_cast %85 : vector<1x1x8x8xbf16> to vector<8x8xbf16>
      %cst_63 = arith.constant dense<0.000000e+00> : vector<8x8xf32>
      %87 = tpu.matmul %84, %86, %cst_63 {dimension_numbers = #tpu.dot_dimension_numbers<[1], [1], [0], [0], [0, 0, 1, 0], [], []>} : vector<8x8xbf16>, vector<8x8xbf16>, vector<8x8xf32> -> vector<8x8xf32>
      %cst_64 = arith.constant dense<0xFF800000> : vector<8xf32>
      %88 = vector.multi_reduction <maximumf>, %87, %cst_64 [1] : vector<8x8xf32> to vector<8xf32>
      %89 = vector.shape_cast %88 : vector<8xf32> to vector<8x1xf32>
      %90 = vector.broadcast %89 : vector<8x1xf32> to vector<8x8xf32>
      %91 = arith.subf %87, %90 : vector<8x8xf32>
      %92 = math.exp %91 : vector<8x8xf32>
      %cst_65 = arith.constant dense<0.000000e+00> : vector<8xf32>
      %93 = vector.multi_reduction <add>, %92, %cst_65 [1] : vector<8x8xf32> to vector<8xf32>
      %94 = vector.shape_cast %93 : vector<8xf32> to vector<8x1xf32>
      %95 = tpu.reciprocal %94 {approx = true} : vector<8x1xf32> -> vector<8x1xf32>
      %96 = vector.broadcast %95 : vector<8x1xf32> to vector<8x8xf32>
      %97 = arith.mulf %92, %96 : vector<8x8xf32>
      %c0_66 = arith.constant 0 : index
      %c0_67 = arith.constant 0 : index
      %c0_68 = arith.constant 0 : index
      %c16_69 = arith.constant 16 : index
      %98 = vector.load %arg8[%c0_66, %c0_67, %c0_68, %c16_69] : memref<1x1x8x32xf32, #tpu.memory_space<vmem>>, vector<1x1x8x8xf32>
      %99 = vector.shape_cast %98 : vector<1x1x8x8xf32> to vector<8x8xf32>
      %100 = vector.shape_cast %97 : vector<8x8xf32> to vector<1x1x8x8xf32>
      tpu.vector_store %arg8[%c0_66, %c0_67, %c0_68, %c16_69], %100 {strides = array<i32>} : memref<1x1x8x32xf32, #tpu.memory_space<vmem>>, vector<1x1x8x8xf32>,
      %cst_70 = arith.constant dense<0.000000e+00> : vector<8xf32>
      %101 = vector.multi_reduction <add>, %97, %cst_70 [1] : vector<8x8xf32> to vector<8xf32>
      %102 = vector.shape_cast %101 : vector<8xf32> to vector<8x1xf32>
      %cst_71 = arith.constant dense<0xFF800000> : vector<1xf32>
      %103 = vector.multi_reduction <maximumf>, %102, %cst_71 [0] : vector<8x1xf32> to vector<1xf32>
      %104 = vector.shape_cast %103 : vector<1xf32> to vector<1x1xf32>
      %cst_72 = arith.constant dense<0.000000e+00> : vector<8xf32>
      %105 = vector.multi_reduction <add>, %97, %cst_72 [0] : vector<8x8xf32> to vector<8xf32>
      %106 = vector.shape_cast %105 : vector<8xf32> to vector<1x8xf32>
      %cst_73 = arith.constant dense<0xFF800000> : vector<1xf32>
      %107 = vector.multi_reduction <maximumf>, %106, %cst_73 [1] : vector<1x8xf32> to vector<1xf32>
      %108 = vector.shape_cast %107 : vector<1xf32> to vector<1x1xf32>
      %109 = arith.maximumf %81, %104 : vector<1x1xf32>
      %110 = arith.maximumf %82, %108 : vector<1x1xf32>
      %c0_74 = arith.constant 0 : index
      %c0_75 = arith.constant 0 : index
      %c0_76 = arith.constant 0 : index
      %c24 = arith.constant 24 : index
      %111 = vector.load %arg6[%c0_74, %c0_75, %c0_76, %c24] : memref<1x1x8x32xbf16, #tpu.memory_space<vmem>>, vector<1x1x8x8xbf16>
      %112 = vector.shape_cast %111 : vector<1x1x8x8xbf16> to vector<8x8xbf16>
      %c0_77 = arith.constant 0 : index
      %c0_78 = arith.constant 0 : index
      %c0_79 = arith.constant 0 : index
      %c24_80 = arith.constant 24 : index
      %113 = vector.load %arg7[%c0_77, %c0_78, %c0_79, %c24_80] : memref<1x1x8x32xbf16, #tpu.memory_space<vmem>>, vector<1x1x8x8xbf16>
      %114 = vector.shape_cast %113 : vector<1x1x8x8xbf16> to vector<8x8xbf16>
      %cst_81 = arith.constant dense<0.000000e+00> : vector<8x8xf32>
      %115 = tpu.matmul %112, %114, %cst_81 {dimension_numbers = #tpu.dot_dimension_numbers<[1], [1], [0], [0], [0, 0, 1, 0], [], []>} : vector<8x8xbf16>, vector<8x8xbf16>, vector<8x8xf32> -> vector<8x8xf32>
      %cst_82 = arith.constant dense<0xFF800000> : vector<8xf32>
      %116 = vector.multi_reduction <maximumf>, %115, %cst_82 [1] : vector<8x8xf32> to vector<8xf32>
      %117 = vector.shape_cast %116 : vector<8xf32> to vector<8x1xf32>
      %118 = vector.broadcast %117 : vector<8x1xf32> to vector<8x8xf32>
      %119 = arith.subf %115, %118 : vector<8x8xf32>
      %120 = math.exp %119 : vector<8x8xf32>
      %cst_83 = arith.constant dense<0.000000e+00> : vector<8xf32>
      %121 = vector.multi_reduction <add>, %120, %cst_83 [1] : vector<8x8xf32> to vector<8xf32>
      %122 = vector.shape_cast %121 : vector<8xf32> to vector<8x1xf32>
      %123 = tpu.reciprocal %122 {approx = true} : vector<8x1xf32> -> vector<8x1xf32>
      %124 = vector.broadcast %123 : vector<8x1xf32> to vector<8x8xf32>
      %125 = arith.mulf %120, %124 : vector<8x8xf32>
      %c0_84 = arith.constant 0 : index
      %c0_85 = arith.constant 0 : index
      %c0_86 = arith.constant 0 : index
      %c24_87 = arith.constant 24 : index
      %126 = vector.load %arg8[%c0_84, %c0_85, %c0_86, %c24_87] : memref<1x1x8x32xf32, #tpu.memory_space<vmem>>, vector<1x1x8x8xf32>
      %127 = vector.shape_cast %126 : vector<1x1x8x8xf32> to vector<8x8xf32>
      %128 = vector.shape_cast %125 : vector<8x8xf32> to vector<1x1x8x8xf32>
      tpu.vector_store %arg8[%c0_84, %c0_85, %c0_86, %c24_87], %128 {strides = array<i32>} : memref<1x1x8x32xf32, #tpu.memory_space<vmem>>, vector<1x1x8x8xf32>,
      %cst_88 = arith.constant dense<0.000000e+00> : vector<8xf32>
      %129 = vector.multi_reduction <add>, %125, %cst_88 [1] : vector<8x8xf32> to vector<8xf32>
      %130 = vector.shape_cast %129 : vector<8xf32> to vector<8x1xf32>
      %cst_89 = arith.constant dense<0xFF800000> : vector<1xf32>
      %131 = vector.multi_reduction <maximumf>, %130, %cst_89 [0] : vector<8x1xf32> to vector<1xf32>
      %132 = vector.shape_cast %131 : vector<1xf32> to vector<1x1xf32>
      %cst_90 = arith.constant dense<0.000000e+00> : vector<8xf32>
      %133 = vector.multi_reduction <add>, %125, %cst_90 [0] : vector<8x8xf32> to vector<8xf32>
      %134 = vector.shape_cast %133 : vector<8xf32> to vector<1x8xf32>
      %cst_91 = arith.constant dense<0xFF800000> : vector<1xf32>
      %135 = vector.multi_reduction <maximumf>, %134, %cst_91 [1] : vector<1x8xf32> to vector<1xf32>
      %136 = vector.shape_cast %135 : vector<1xf32> to vector<1x1xf32>
      %137 = arith.maximumf %109, %132 : vector<1x1xf32>
      %138 = arith.maximumf %110, %136 : vector<1x1xf32>
      %139 = tpu.concatenate %137, %138 in 1 : vector<1x1xf32>, vector<1x1xf32> -> vector<1x2xf32>
      %c0_92 = arith.constant 0 : index
      %c0_93 = arith.constant 0 : index
      %c0_94 = arith.constant 0 : index
      %c0_95 = arith.constant 0 : index
      %140 = vector.load %arg9[%c0_92, %c0_93, %c0_94, %c0_95] : memref<1x1x1x2xf32, #tpu.memory_space<vmem>>, vector<1x1x1x2xf32>
      %141 = vector.shape_cast %140 : vector<1x1x1x2xf32> to vector<1x2xf32>
      %142 = vector.shape_cast %139 : vector<1x2xf32> to vector<1x1x1x2xf32>
      tpu.vector_store %arg9[%c0_92, %c0_93, %c0_94, %c0_95], %142 {strides = array<i32>} : memref<1x1x1x2xf32, #tpu.memory_space<vmem>>, vector<1x1x1x2xf32>,
    } else {
    }
    return
  }
  func.func @transform_0(%arg0: i32, %arg1: i32, %arg2: i32) -> (i32, i32, i32) {
    %c0_i32 = arith.constant 0 : i32
    return %arg0, %arg2, %arg1 : i32, i32, i32
  }
  func.func @transform_1(%arg0: i32, %arg1: i32, %arg2: i32) -> (i32, i32, i32) {
    %c0_i32 = arith.constant 0 : i32
    return %arg0, %arg2, %arg1 : i32, i32, i32
  }
  func.func @transform_2(%arg0: i32, %arg1: i32, %arg2: i32) -> (i32, i32) {
    %c0_i32 = arith.constant 0 : i32
    %c0_i32_0 = arith.constant 0 : i32
    %c0_i32_1 = arith.constant 0 : i32
    return %c0_i32, %c0_i32_0 : i32, i32
  }
  func.func @transform_3(%arg0: i32, %arg1: i32, %arg2: i32) -> (i32, i32, i32, i32) {
    %c0_i32 = arith.constant 0 : i32
    %c0_i32_0 = arith.constant 0 : i32
    %c0_i32_1 = arith.constant 0 : i32
    return %arg0, %arg1, %c0_i32, %c0_i32_0 : i32, i32, i32, i32
  }
  func.func @transform_4(%arg0: i32, %arg1: i32, %arg2: i32) -> (i32, i32, i32, i32) {
    %c0_i32 = arith.constant 0 : i32
    %c0_i32_0 = arith.constant 0 : i32
    %c0_i32_1 = arith.constant 0 : i32
    return %arg0, %arg1, %c0_i32, %c0_i32_0 : i32, i32, i32, i32
  }
  func.func @transform_5(%arg0: i32, %arg1: i32, %arg2: i32) -> (i32, i32, i32, i32) {
    %c0_i32 = arith.constant 0 : i32
    %c0_i32_0 = arith.constant 0 : i32
    %c0_i32_1 = arith.constant 0 : i32
    return %arg0, %arg1, %c0_i32, %c0_i32_0 : i32, i32, i32, i32
  }
  func.func @transform_6(%arg0: i32, %arg1: i32, %arg2: i32) -> (i32, i32, i32, i32) {
    %c0_i32 = arith.constant 0 : i32
    %c0_i32_0 = arith.constant 0 : i32
    %c0_i32_1 = arith.constant 0 : i32
    return %arg0, %arg1, %c0_i32, %c0_i32_0 : i32, i32, i32, i32
  }
}

module attributes {stable_mosaic.version = 11 : i64} {
  func.func @_colv_kernel(%arg0: i32, %arg1: i32, %arg2: i32, %arg3: memref<1x1x8x32xbf16, #tpu.memory_space<vmem>>, %arg4: memref<1x16x32xbf16, #tpu.memory_space<vmem>>, %arg5: memref<1x16x32xbf16, #tpu.memory_space<vmem>>, %arg6: memref<1x1x8x32xf32, #tpu.memory_space<vmem>>, %arg7: memref<8x4xf32, #tpu.memory_space<vmem>>, %arg8: memref<8x4xf32, #tpu.memory_space<vmem>>, %arg9: memref<8x32xf32, #tpu.memory_space<vmem>>) attributes {dimension_semantics = [#tpu.dimension_semantics<parallel>, #tpu.dimension_semantics<parallel>, #tpu.dimension_semantics<arbitrary>], iteration_bounds = array<i64: 2, 1, 1>, scalar_prefetch = 0 : i64, scratch_operands = 3 : i64, tpu.core_type = #tpu.core_type<tc>, window_params = [{transform_indices = @transform_0, window_bounds = array<i64: 1, 1, 8, 32>}, {transform_indices = @transform_1, window_bounds = array<i64: 1, 16, 32>}, {transform_indices = @transform_2, window_bounds = array<i64: 1, 16, 32>}, {transform_indices = @transform_3, window_bounds = array<i64: 1, 1, 8, 32>}]} {
    %c0_i32 = arith.constant 0 : i32
    %0 = arith.cmpi eq, %arg2, %c0_i32 : i32
    %1 = arith.extui %0 : i1 to i32
    %c0_i32_0 = arith.constant 0 : i32
    %2 = arith.cmpi ne, %1, %c0_i32_0 : i32
    scf.if %2 {
      %cst_99 = arith.constant -1.000000e+30 : f32
      %126 = vector.broadcast %cst_99 : f32 to vector<8x4xf32>
      %c0_100 = arith.constant 0 : index
      %c0_101 = arith.constant 0 : index
      %127 = vector.load %arg7[%c0_100, %c0_101] : memref<8x4xf32, #tpu.memory_space<vmem>>, vector<8x4xf32>
      tpu.vector_store %arg7[%c0_100, %c0_101], %126 {strides = array<i32>} : memref<8x4xf32, #tpu.memory_space<vmem>>, vector<8x4xf32>,
      %cst_102 = arith.constant 0.000000e+00 : f32
      %128 = vector.broadcast %cst_102 : f32 to vector<8x4xf32>
      %c0_103 = arith.constant 0 : index
      %c0_104 = arith.constant 0 : index
      %129 = vector.load %arg8[%c0_103, %c0_104] : memref<8x4xf32, #tpu.memory_space<vmem>>, vector<8x4xf32>
      tpu.vector_store %arg8[%c0_103, %c0_104], %128 {strides = array<i32>} : memref<8x4xf32, #tpu.memory_space<vmem>>, vector<8x4xf32>,
      %cst_105 = arith.constant 0.000000e+00 : f32
      %130 = vector.broadcast %cst_105 : f32 to vector<8x32xf32>
      %c0_106 = arith.constant 0 : index
      %c0_107 = arith.constant 0 : index
      %131 = vector.load %arg9[%c0_106, %c0_107] : memref<8x32xf32, #tpu.memory_space<vmem>>, vector<8x32xf32>
      tpu.vector_store %arg9[%c0_106, %c0_107], %130 {strides = array<i32>} : memref<8x32xf32, #tpu.memory_space<vmem>>, vector<8x32xf32>,
    } else {
    }
    %c0 = arith.constant 0 : index
    %c0_1 = arith.constant 0 : index
    %c0_2 = arith.constant 0 : index
    %c0_3 = arith.constant 0 : index
    %3 = vector.load %arg3[%c0, %c0_1, %c0_2, %c0_3] : memref<1x1x8x32xbf16, #tpu.memory_space<vmem>>, vector<1x1x8x8xbf16>
    %4 = vector.shape_cast %3 : vector<1x1x8x8xbf16> to vector<8x8xbf16>
    %c0_4 = arith.constant 0 : index
    %c0_5 = arith.constant 0 : index
    %c0_6 = arith.constant 0 : index
    %5 = vector.load %arg4[%c0_4, %c0_5, %c0_6] : memref<1x16x32xbf16, #tpu.memory_space<vmem>>, vector<1x16x8xbf16>
    %6 = vector.shape_cast %5 : vector<1x16x8xbf16> to vector<16x8xbf16>
    %c0_7 = arith.constant 0 : index
    %c0_8 = arith.constant 0 : index
    %c0_9 = arith.constant 0 : index
    %7 = vector.load %arg5[%c0_7, %c0_8, %c0_9] : memref<1x16x32xbf16, #tpu.memory_space<vmem>>, vector<1x16x8xbf16>
    %8 = vector.shape_cast %7 : vector<1x16x8xbf16> to vector<16x8xbf16>
    %cst = arith.constant dense<0.000000e+00> : vector<8x16xf32>
    %9 = tpu.matmul %4, %6, %cst {dimension_numbers = #tpu.dot_dimension_numbers<[1], [1], [0], [0], [0, 0, 1, 0], [], []>} : vector<8x8xbf16>, vector<16x8xbf16>, vector<8x16xf32> -> vector<8x16xf32>
    %c0_10 = arith.constant 0 : index
    %c0_11 = arith.constant 0 : index
    %10 = vector.load %arg7[%c0_10, %c0_11] : memref<8x4xf32, #tpu.memory_space<vmem>>, vector<8x1xf32>
    %cst_12 = arith.constant dense<0xFF800000> : vector<8xf32>
    %11 = vector.multi_reduction <maximumf>, %9, %cst_12 [1] : vector<8x16xf32> to vector<8xf32>
    %12 = vector.shape_cast %11 : vector<8xf32> to vector<8x1xf32>
    %13 = arith.maximumf %10, %12 : vector<8x1xf32>
    %14 = arith.subf %10, %13 : vector<8x1xf32>
    %15 = math.exp %14 : vector<8x1xf32>
    %16 = vector.broadcast %13 : vector<8x1xf32> to vector<8x16xf32>
    %17 = arith.subf %9, %16 : vector<8x16xf32>
    %18 = math.exp %17 : vector<8x16xf32>
    %c0_13 = arith.constant 0 : index
    %c0_14 = arith.constant 0 : index
    %19 = vector.load %arg8[%c0_13, %c0_14] : memref<8x4xf32, #tpu.memory_space<vmem>>, vector<8x1xf32>
    %20 = arith.mulf %15, %19 : vector<8x1xf32>
    %cst_15 = arith.constant dense<0.000000e+00> : vector<8xf32>
    %21 = vector.multi_reduction <add>, %18, %cst_15 [1] : vector<8x16xf32> to vector<8xf32>
    %22 = vector.shape_cast %21 : vector<8xf32> to vector<8x1xf32>
    %23 = arith.addf %20, %22 : vector<8x1xf32>
    %c0_16 = arith.constant 0 : index
    %c0_17 = arith.constant 0 : index
    %24 = vector.load %arg8[%c0_16, %c0_17] : memref<8x4xf32, #tpu.memory_space<vmem>>, vector<8x1xf32>
    tpu.vector_store %arg8[%c0_16, %c0_17], %23 {strides = array<i32>} : memref<8x4xf32, #tpu.memory_space<vmem>>, vector<8x1xf32>,
    %c0_18 = arith.constant 0 : index
    %c0_19 = arith.constant 0 : index
    %25 = vector.load %arg9[%c0_18, %c0_19] : memref<8x32xf32, #tpu.memory_space<vmem>>, vector<8x8xf32>
    %26 = vector.broadcast %15 : vector<8x1xf32> to vector<8x8xf32>
    %27 = arith.mulf %26, %25 : vector<8x8xf32>
    %28 = arith.truncf %18 : vector<8x16xf32> to vector<8x16xbf16>
    %cst_20 = arith.constant dense<0.000000e+00> : vector<8x8xf32>
    %29 = tpu.matmul %28, %8, %cst_20 {dimension_numbers = #tpu.dot_dimension_numbers<[1], [0], [0], [1], [0, 0, 1, 1], [], []>} : vector<8x16xbf16>, vector<16x8xbf16>, vector<8x8xf32> -> vector<8x8xf32>
    %30 = arith.addf %27, %29 : vector<8x8xf32>
    %c0_21 = arith.constant 0 : index
    %c0_22 = arith.constant 0 : index
    %31 = vector.load %arg9[%c0_21, %c0_22] : memref<8x32xf32, #tpu.memory_space<vmem>>, vector<8x8xf32>
    tpu.vector_store %arg9[%c0_21, %c0_22], %30 {strides = array<i32>} : memref<8x32xf32, #tpu.memory_space<vmem>>, vector<8x8xf32>,
    %c0_23 = arith.constant 0 : index
    %c0_24 = arith.constant 0 : index
    %32 = vector.load %arg7[%c0_23, %c0_24] : memref<8x4xf32, #tpu.memory_space<vmem>>, vector<8x1xf32>
    tpu.vector_store %arg7[%c0_23, %c0_24], %13 {strides = array<i32>} : memref<8x4xf32, #tpu.memory_space<vmem>>, vector<8x1xf32>,
    %c0_25 = arith.constant 0 : index
    %c0_26 = arith.constant 0 : index
    %c0_27 = arith.constant 0 : index
    %c8 = arith.constant 8 : index
    %33 = vector.load %arg3[%c0_25, %c0_26, %c0_27, %c8] : memref<1x1x8x32xbf16, #tpu.memory_space<vmem>>, vector<1x1x8x8xbf16>
    %34 = vector.shape_cast %33 : vector<1x1x8x8xbf16> to vector<8x8xbf16>
    %c0_28 = arith.constant 0 : index
    %c0_29 = arith.constant 0 : index
    %c8_30 = arith.constant 8 : index
    %35 = vector.load %arg4[%c0_28, %c0_29, %c8_30] : memref<1x16x32xbf16, #tpu.memory_space<vmem>>, vector<1x16x8xbf16>
    %36 = vector.shape_cast %35 : vector<1x16x8xbf16> to vector<16x8xbf16>
    %c0_31 = arith.constant 0 : index
    %c0_32 = arith.constant 0 : index
    %c8_33 = arith.constant 8 : index
    %37 = vector.load %arg5[%c0_31, %c0_32, %c8_33] : memref<1x16x32xbf16, #tpu.memory_space<vmem>>, vector<1x16x8xbf16>
    %38 = vector.shape_cast %37 : vector<1x16x8xbf16> to vector<16x8xbf16>
    %cst_34 = arith.constant dense<0.000000e+00> : vector<8x16xf32>
    %39 = tpu.matmul %34, %36, %cst_34 {dimension_numbers = #tpu.dot_dimension_numbers<[1], [1], [0], [0], [0, 0, 1, 0], [], []>} : vector<8x8xbf16>, vector<16x8xbf16>, vector<8x16xf32> -> vector<8x16xf32>
    %c0_35 = arith.constant 0 : index
    %c1 = arith.constant 1 : index
    %40 = vector.load %arg7[%c0_35, %c1] : memref<8x4xf32, #tpu.memory_space<vmem>>, vector<8x1xf32>
    %cst_36 = arith.constant dense<0xFF800000> : vector<8xf32>
    %41 = vector.multi_reduction <maximumf>, %39, %cst_36 [1] : vector<8x16xf32> to vector<8xf32>
    %42 = vector.shape_cast %41 : vector<8xf32> to vector<8x1xf32>
    %43 = arith.maximumf %40, %42 : vector<8x1xf32>
    %44 = arith.subf %40, %43 : vector<8x1xf32>
    %45 = math.exp %44 : vector<8x1xf32>
    %46 = vector.broadcast %43 : vector<8x1xf32> to vector<8x16xf32>
    %47 = arith.subf %39, %46 : vector<8x16xf32>
    %48 = math.exp %47 : vector<8x16xf32>
    %c0_37 = arith.constant 0 : index
    %c1_38 = arith.constant 1 : index
    %49 = vector.load %arg8[%c0_37, %c1_38] : memref<8x4xf32, #tpu.memory_space<vmem>>, vector<8x1xf32>
    %50 = arith.mulf %45, %49 : vector<8x1xf32>
    %cst_39 = arith.constant dense<0.000000e+00> : vector<8xf32>
    %51 = vector.multi_reduction <add>, %48, %cst_39 [1] : vector<8x16xf32> to vector<8xf32>
    %52 = vector.shape_cast %51 : vector<8xf32> to vector<8x1xf32>
    %53 = arith.addf %50, %52 : vector<8x1xf32>
    %c0_40 = arith.constant 0 : index
    %c1_41 = arith.constant 1 : index
    %54 = vector.load %arg8[%c0_40, %c1_41] : memref<8x4xf32, #tpu.memory_space<vmem>>, vector<8x1xf32>
    tpu.vector_store %arg8[%c0_40, %c1_41], %53 {strides = array<i32>} : memref<8x4xf32, #tpu.memory_space<vmem>>, vector<8x1xf32>,
    %c0_42 = arith.constant 0 : index
    %c8_43 = arith.constant 8 : index
    %55 = vector.load %arg9[%c0_42, %c8_43] : memref<8x32xf32, #tpu.memory_space<vmem>>, vector<8x8xf32>
    %56 = vector.broadcast %45 : vector<8x1xf32> to vector<8x8xf32>
    %57 = arith.mulf %56, %55 : vector<8x8xf32>
    %58 = arith.truncf %48 : vector<8x16xf32> to vector<8x16xbf16>
    %cst_44 = arith.constant dense<0.000000e+00> : vector<8x8xf32>
    %59 = tpu.matmul %58, %38, %cst_44 {dimension_numbers = #tpu.dot_dimension_numbers<[1], [0], [0], [1], [0, 0, 1, 1], [], []>} : vector<8x16xbf16>, vector<16x8xbf16>, vector<8x8xf32> -> vector<8x8xf32>
    %60 = arith.addf %57, %59 : vector<8x8xf32>
    %c0_45 = arith.constant 0 : index
    %c8_46 = arith.constant 8 : index
    %61 = vector.load %arg9[%c0_45, %c8_46] : memref<8x32xf32, #tpu.memory_space<vmem>>, vector<8x8xf32>
    tpu.vector_store %arg9[%c0_45, %c8_46], %60 {strides = array<i32>} : memref<8x32xf32, #tpu.memory_space<vmem>>, vector<8x8xf32>,
    %c0_47 = arith.constant 0 : index
    %c1_48 = arith.constant 1 : index
    %62 = vector.load %arg7[%c0_47, %c1_48] : memref<8x4xf32, #tpu.memory_space<vmem>>, vector<8x1xf32>
    tpu.vector_store %arg7[%c0_47, %c1_48], %43 {strides = array<i32>} : memref<8x4xf32, #tpu.memory_space<vmem>>, vector<8x1xf32>,
    %c0_49 = arith.constant 0 : index
    %c0_50 = arith.constant 0 : index
    %c0_51 = arith.constant 0 : index
    %c16 = arith.constant 16 : index
    %63 = vector.load %arg3[%c0_49, %c0_50, %c0_51, %c16] : memref<1x1x8x32xbf16, #tpu.memory_space<vmem>>, vector<1x1x8x8xbf16>
    %64 = vector.shape_cast %63 : vector<1x1x8x8xbf16> to vector<8x8xbf16>
    %c0_52 = arith.constant 0 : index
    %c0_53 = arith.constant 0 : index
    %c16_54 = arith.constant 16 : index
    %65 = vector.load %arg4[%c0_52, %c0_53, %c16_54] : memref<1x16x32xbf16, #tpu.memory_space<vmem>>, vector<1x16x8xbf16>
    %66 = vector.shape_cast %65 : vector<1x16x8xbf16> to vector<16x8xbf16>
    %c0_55 = arith.constant 0 : index
    %c0_56 = arith.constant 0 : index
    %c16_57 = arith.constant 16 : index
    %67 = vector.load %arg5[%c0_55, %c0_56, %c16_57] : memref<1x16x32xbf16, #tpu.memory_space<vmem>>, vector<1x16x8xbf16>
    %68 = vector.shape_cast %67 : vector<1x16x8xbf16> to vector<16x8xbf16>
    %cst_58 = arith.constant dense<0.000000e+00> : vector<8x16xf32>
    %69 = tpu.matmul %64, %66, %cst_58 {dimension_numbers = #tpu.dot_dimension_numbers<[1], [1], [0], [0], [0, 0, 1, 0], [], []>} : vector<8x8xbf16>, vector<16x8xbf16>, vector<8x16xf32> -> vector<8x16xf32>
    %c0_59 = arith.constant 0 : index
    %c2 = arith.constant 2 : index
    %70 = vector.load %arg7[%c0_59, %c2] : memref<8x4xf32, #tpu.memory_space<vmem>>, vector<8x1xf32>
    %cst_60 = arith.constant dense<0xFF800000> : vector<8xf32>
    %71 = vector.multi_reduction <maximumf>, %69, %cst_60 [1] : vector<8x16xf32> to vector<8xf32>
    %72 = vector.shape_cast %71 : vector<8xf32> to vector<8x1xf32>
    %73 = arith.maximumf %70, %72 : vector<8x1xf32>
    %74 = arith.subf %70, %73 : vector<8x1xf32>
    %75 = math.exp %74 : vector<8x1xf32>
    %76 = vector.broadcast %73 : vector<8x1xf32> to vector<8x16xf32>
    %77 = arith.subf %69, %76 : vector<8x16xf32>
    %78 = math.exp %77 : vector<8x16xf32>
    %c0_61 = arith.constant 0 : index
    %c2_62 = arith.constant 2 : index
    %79 = vector.load %arg8[%c0_61, %c2_62] : memref<8x4xf32, #tpu.memory_space<vmem>>, vector<8x1xf32>
    %80 = arith.mulf %75, %79 : vector<8x1xf32>
    %cst_63 = arith.constant dense<0.000000e+00> : vector<8xf32>
    %81 = vector.multi_reduction <add>, %78, %cst_63 [1] : vector<8x16xf32> to vector<8xf32>
    %82 = vector.shape_cast %81 : vector<8xf32> to vector<8x1xf32>
    %83 = arith.addf %80, %82 : vector<8x1xf32>
    %c0_64 = arith.constant 0 : index
    %c2_65 = arith.constant 2 : index
    %84 = vector.load %arg8[%c0_64, %c2_65] : memref<8x4xf32, #tpu.memory_space<vmem>>, vector<8x1xf32>
    tpu.vector_store %arg8[%c0_64, %c2_65], %83 {strides = array<i32>} : memref<8x4xf32, #tpu.memory_space<vmem>>, vector<8x1xf32>,
    %c0_66 = arith.constant 0 : index
    %c16_67 = arith.constant 16 : index
    %85 = vector.load %arg9[%c0_66, %c16_67] : memref<8x32xf32, #tpu.memory_space<vmem>>, vector<8x8xf32>
    %86 = vector.broadcast %75 : vector<8x1xf32> to vector<8x8xf32>
    %87 = arith.mulf %86, %85 : vector<8x8xf32>
    %88 = arith.truncf %78 : vector<8x16xf32> to vector<8x16xbf16>
    %cst_68 = arith.constant dense<0.000000e+00> : vector<8x8xf32>
    %89 = tpu.matmul %88, %68, %cst_68 {dimension_numbers = #tpu.dot_dimension_numbers<[1], [0], [0], [1], [0, 0, 1, 1], [], []>} : vector<8x16xbf16>, vector<16x8xbf16>, vector<8x8xf32> -> vector<8x8xf32>
    %90 = arith.addf %87, %89 : vector<8x8xf32>
    %c0_69 = arith.constant 0 : index
    %c16_70 = arith.constant 16 : index
    %91 = vector.load %arg9[%c0_69, %c16_70] : memref<8x32xf32, #tpu.memory_space<vmem>>, vector<8x8xf32>
    tpu.vector_store %arg9[%c0_69, %c16_70], %90 {strides = array<i32>} : memref<8x32xf32, #tpu.memory_space<vmem>>, vector<8x8xf32>,
    %c0_71 = arith.constant 0 : index
    %c2_72 = arith.constant 2 : index
    %92 = vector.load %arg7[%c0_71, %c2_72] : memref<8x4xf32, #tpu.memory_space<vmem>>, vector<8x1xf32>
    tpu.vector_store %arg7[%c0_71, %c2_72], %73 {strides = array<i32>} : memref<8x4xf32, #tpu.memory_space<vmem>>, vector<8x1xf32>,
    %c0_73 = arith.constant 0 : index
    %c0_74 = arith.constant 0 : index
    %c0_75 = arith.constant 0 : index
    %c24 = arith.constant 24 : index
    %93 = vector.load %arg3[%c0_73, %c0_74, %c0_75, %c24] : memref<1x1x8x32xbf16, #tpu.memory_space<vmem>>, vector<1x1x8x8xbf16>
    %94 = vector.shape_cast %93 : vector<1x1x8x8xbf16> to vector<8x8xbf16>
    %c0_76 = arith.constant 0 : index
    %c0_77 = arith.constant 0 : index
    %c24_78 = arith.constant 24 : index
    %95 = vector.load %arg4[%c0_76, %c0_77, %c24_78] : memref<1x16x32xbf16, #tpu.memory_space<vmem>>, vector<1x16x8xbf16>
    %96 = vector.shape_cast %95 : vector<1x16x8xbf16> to vector<16x8xbf16>
    %c0_79 = arith.constant 0 : index
    %c0_80 = arith.constant 0 : index
    %c24_81 = arith.constant 24 : index
    %97 = vector.load %arg5[%c0_79, %c0_80, %c24_81] : memref<1x16x32xbf16, #tpu.memory_space<vmem>>, vector<1x16x8xbf16>
    %98 = vector.shape_cast %97 : vector<1x16x8xbf16> to vector<16x8xbf16>
    %cst_82 = arith.constant dense<0.000000e+00> : vector<8x16xf32>
    %99 = tpu.matmul %94, %96, %cst_82 {dimension_numbers = #tpu.dot_dimension_numbers<[1], [1], [0], [0], [0, 0, 1, 0], [], []>} : vector<8x8xbf16>, vector<16x8xbf16>, vector<8x16xf32> -> vector<8x16xf32>
    %c0_83 = arith.constant 0 : index
    %c3 = arith.constant 3 : index
    %100 = vector.load %arg7[%c0_83, %c3] : memref<8x4xf32, #tpu.memory_space<vmem>>, vector<8x1xf32>
    %cst_84 = arith.constant dense<0xFF800000> : vector<8xf32>
    %101 = vector.multi_reduction <maximumf>, %99, %cst_84 [1] : vector<8x16xf32> to vector<8xf32>
    %102 = vector.shape_cast %101 : vector<8xf32> to vector<8x1xf32>
    %103 = arith.maximumf %100, %102 : vector<8x1xf32>
    %104 = arith.subf %100, %103 : vector<8x1xf32>
    %105 = math.exp %104 : vector<8x1xf32>
    %106 = vector.broadcast %103 : vector<8x1xf32> to vector<8x16xf32>
    %107 = arith.subf %99, %106 : vector<8x16xf32>
    %108 = math.exp %107 : vector<8x16xf32>
    %c0_85 = arith.constant 0 : index
    %c3_86 = arith.constant 3 : index
    %109 = vector.load %arg8[%c0_85, %c3_86] : memref<8x4xf32, #tpu.memory_space<vmem>>, vector<8x1xf32>
    %110 = arith.mulf %105, %109 : vector<8x1xf32>
    %cst_87 = arith.constant dense<0.000000e+00> : vector<8xf32>
    %111 = vector.multi_reduction <add>, %108, %cst_87 [1] : vector<8x16xf32> to vector<8xf32>
    %112 = vector.shape_cast %111 : vector<8xf32> to vector<8x1xf32>
    %113 = arith.addf %110, %112 : vector<8x1xf32>
    %c0_88 = arith.constant 0 : index
    %c3_89 = arith.constant 3 : index
    %114 = vector.load %arg8[%c0_88, %c3_89] : memref<8x4xf32, #tpu.memory_space<vmem>>, vector<8x1xf32>
    tpu.vector_store %arg8[%c0_88, %c3_89], %113 {strides = array<i32>} : memref<8x4xf32, #tpu.memory_space<vmem>>, vector<8x1xf32>,
    %c0_90 = arith.constant 0 : index
    %c24_91 = arith.constant 24 : index
    %115 = vector.load %arg9[%c0_90, %c24_91] : memref<8x32xf32, #tpu.memory_space<vmem>>, vector<8x8xf32>
    %116 = vector.broadcast %105 : vector<8x1xf32> to vector<8x8xf32>
    %117 = arith.mulf %116, %115 : vector<8x8xf32>
    %118 = arith.truncf %108 : vector<8x16xf32> to vector<8x16xbf16>
    %cst_92 = arith.constant dense<0.000000e+00> : vector<8x8xf32>
    %119 = tpu.matmul %118, %98, %cst_92 {dimension_numbers = #tpu.dot_dimension_numbers<[1], [0], [0], [1], [0, 0, 1, 1], [], []>} : vector<8x16xbf16>, vector<16x8xbf16>, vector<8x8xf32> -> vector<8x8xf32>
    %120 = arith.addf %117, %119 : vector<8x8xf32>
    %c0_93 = arith.constant 0 : index
    %c24_94 = arith.constant 24 : index
    %121 = vector.load %arg9[%c0_93, %c24_94] : memref<8x32xf32, #tpu.memory_space<vmem>>, vector<8x8xf32>
    tpu.vector_store %arg9[%c0_93, %c24_94], %120 {strides = array<i32>} : memref<8x32xf32, #tpu.memory_space<vmem>>, vector<8x8xf32>,
    %c0_95 = arith.constant 0 : index
    %c3_96 = arith.constant 3 : index
    %122 = vector.load %arg7[%c0_95, %c3_96] : memref<8x4xf32, #tpu.memory_space<vmem>>, vector<8x1xf32>
    tpu.vector_store %arg7[%c0_95, %c3_96], %103 {strides = array<i32>} : memref<8x4xf32, #tpu.memory_space<vmem>>, vector<8x1xf32>,
    %c0_i32_97 = arith.constant 0 : i32
    %123 = arith.cmpi eq, %arg2, %c0_i32_97 : i32
    %124 = arith.extui %123 : i1 to i32
    %c0_i32_98 = arith.constant 0 : i32
    %125 = arith.cmpi ne, %124, %c0_i32_98 : i32
    scf.if %125 {
      %c0_99 = arith.constant 0 : index
      %c0_100 = arith.constant 0 : index
      %126 = vector.load %arg8[%c0_99, %c0_100] : memref<8x4xf32, #tpu.memory_space<vmem>>, vector<8x1xf32>
      %127 = tpu.reciprocal %126 {approx = true} : vector<8x1xf32> -> vector<8x1xf32>
      %c0_101 = arith.constant 0 : index
      %c0_102 = arith.constant 0 : index
      %128 = vector.load %arg9[%c0_101, %c0_102] : memref<8x32xf32, #tpu.memory_space<vmem>>, vector<8x8xf32>
      %129 = vector.broadcast %127 : vector<8x1xf32> to vector<8x8xf32>
      %130 = arith.mulf %128, %129 : vector<8x8xf32>
      %c0_103 = arith.constant 0 : index
      %c0_104 = arith.constant 0 : index
      %c0_105 = arith.constant 0 : index
      %c0_106 = arith.constant 0 : index
      %131 = vector.load %arg6[%c0_103, %c0_104, %c0_105, %c0_106] : memref<1x1x8x32xf32, #tpu.memory_space<vmem>>, vector<1x1x8x8xf32>
      %132 = vector.shape_cast %131 : vector<1x1x8x8xf32> to vector<8x8xf32>
      %133 = vector.shape_cast %130 : vector<8x8xf32> to vector<1x1x8x8xf32>
      tpu.vector_store %arg6[%c0_103, %c0_104, %c0_105, %c0_106], %133 {strides = array<i32>} : memref<1x1x8x32xf32, #tpu.memory_space<vmem>>, vector<1x1x8x8xf32>,
      %c0_107 = arith.constant 0 : index
      %c1_108 = arith.constant 1 : index
      %134 = vector.load %arg8[%c0_107, %c1_108] : memref<8x4xf32, #tpu.memory_space<vmem>>, vector<8x1xf32>
      %135 = tpu.reciprocal %134 {approx = true} : vector<8x1xf32> -> vector<8x1xf32>
      %c0_109 = arith.constant 0 : index
      %c8_110 = arith.constant 8 : index
      %136 = vector.load %arg9[%c0_109, %c8_110] : memref<8x32xf32, #tpu.memory_space<vmem>>, vector<8x8xf32>
      %137 = vector.broadcast %135 : vector<8x1xf32> to vector<8x8xf32>
      %138 = arith.mulf %136, %137 : vector<8x8xf32>
      %c0_111 = arith.constant 0 : index
      %c0_112 = arith.constant 0 : index
      %c0_113 = arith.constant 0 : index
      %c8_114 = arith.constant 8 : index
      %139 = vector.load %arg6[%c0_111, %c0_112, %c0_113, %c8_114] : memref<1x1x8x32xf32, #tpu.memory_space<vmem>>, vector<1x1x8x8xf32>
      %140 = vector.shape_cast %139 : vector<1x1x8x8xf32> to vector<8x8xf32>
      %141 = vector.shape_cast %138 : vector<8x8xf32> to vector<1x1x8x8xf32>
      tpu.vector_store %arg6[%c0_111, %c0_112, %c0_113, %c8_114], %141 {strides = array<i32>} : memref<1x1x8x32xf32, #tpu.memory_space<vmem>>, vector<1x1x8x8xf32>,
      %c0_115 = arith.constant 0 : index
      %c2_116 = arith.constant 2 : index
      %142 = vector.load %arg8[%c0_115, %c2_116] : memref<8x4xf32, #tpu.memory_space<vmem>>, vector<8x1xf32>
      %143 = tpu.reciprocal %142 {approx = true} : vector<8x1xf32> -> vector<8x1xf32>
      %c0_117 = arith.constant 0 : index
      %c16_118 = arith.constant 16 : index
      %144 = vector.load %arg9[%c0_117, %c16_118] : memref<8x32xf32, #tpu.memory_space<vmem>>, vector<8x8xf32>
      %145 = vector.broadcast %143 : vector<8x1xf32> to vector<8x8xf32>
      %146 = arith.mulf %144, %145 : vector<8x8xf32>
      %c0_119 = arith.constant 0 : index
      %c0_120 = arith.constant 0 : index
      %c0_121 = arith.constant 0 : index
      %c16_122 = arith.constant 16 : index
      %147 = vector.load %arg6[%c0_119, %c0_120, %c0_121, %c16_122] : memref<1x1x8x32xf32, #tpu.memory_space<vmem>>, vector<1x1x8x8xf32>
      %148 = vector.shape_cast %147 : vector<1x1x8x8xf32> to vector<8x8xf32>
      %149 = vector.shape_cast %146 : vector<8x8xf32> to vector<1x1x8x8xf32>
      tpu.vector_store %arg6[%c0_119, %c0_120, %c0_121, %c16_122], %149 {strides = array<i32>} : memref<1x1x8x32xf32, #tpu.memory_space<vmem>>, vector<1x1x8x8xf32>,
      %c0_123 = arith.constant 0 : index
      %c3_124 = arith.constant 3 : index
      %150 = vector.load %arg8[%c0_123, %c3_124] : memref<8x4xf32, #tpu.memory_space<vmem>>, vector<8x1xf32>
      %151 = tpu.reciprocal %150 {approx = true} : vector<8x1xf32> -> vector<8x1xf32>
      %c0_125 = arith.constant 0 : index
      %c24_126 = arith.constant 24 : index
      %152 = vector.load %arg9[%c0_125, %c24_126] : memref<8x32xf32, #tpu.memory_space<vmem>>, vector<8x8xf32>
      %153 = vector.broadcast %151 : vector<8x1xf32> to vector<8x8xf32>
      %154 = arith.mulf %152, %153 : vector<8x8xf32>
      %c0_127 = arith.constant 0 : index
      %c0_128 = arith.constant 0 : index
      %c0_129 = arith.constant 0 : index
      %c24_130 = arith.constant 24 : index
      %155 = vector.load %arg6[%c0_127, %c0_128, %c0_129, %c24_130] : memref<1x1x8x32xf32, #tpu.memory_space<vmem>>, vector<1x1x8x8xf32>
      %156 = vector.shape_cast %155 : vector<1x1x8x8xf32> to vector<8x8xf32>
      %157 = vector.shape_cast %154 : vector<8x8xf32> to vector<1x1x8x8xf32>
      tpu.vector_store %arg6[%c0_127, %c0_128, %c0_129, %c24_130], %157 {strides = array<i32>} : memref<1x1x8x32xf32, #tpu.memory_space<vmem>>, vector<1x1x8x8xf32>,
    } else {
    }
    return
  }
  func.func @transform_0(%arg0: i32, %arg1: i32, %arg2: i32) -> (i32, i32, i32, i32) {
    %c0_i32 = arith.constant 0 : i32
    %c0_i32_0 = arith.constant 0 : i32
    %c0_i32_1 = arith.constant 0 : i32
    return %arg0, %arg1, %c0_i32, %c0_i32_0 : i32, i32, i32, i32
  }
  func.func @transform_1(%arg0: i32, %arg1: i32, %arg2: i32) -> (i32, i32, i32) {
    %c0_i32 = arith.constant 0 : i32
    return %arg0, %arg2, %arg1 : i32, i32, i32
  }
  func.func @transform_2(%arg0: i32, %arg1: i32, %arg2: i32) -> (i32, i32, i32) {
    %c0_i32 = arith.constant 0 : i32
    return %arg0, %arg2, %arg1 : i32, i32, i32
  }
  func.func @transform_3(%arg0: i32, %arg1: i32, %arg2: i32) -> (i32, i32, i32, i32) {
    %c0_i32 = arith.constant 0 : i32
    %c0_i32_0 = arith.constant 0 : i32
    %c0_i32_1 = arith.constant 0 : i32
    return %arg0, %arg1, %c0_i32, %c0_i32_0 : i32, i32, i32, i32
  }
}

module attributes {stable_mosaic.version = 11 : i64} {
  func.func @_pinv_w_kernel(%arg0: i32, %arg1: i32, %arg2: memref<1x1xf32, #tpu.memory_space<smem>>, %arg3: memref<1x1x8x32xf32, #tpu.memory_space<vmem>>, %arg4: memref<1x1x8x32xf32, #tpu.memory_space<vmem>>, %arg5: memref<8x8xf32, #tpu.memory_space<vmem>>, %arg6: memref<1x1x8x32xbf16, #tpu.memory_space<vmem>>) attributes {dimension_semantics = [#tpu.dimension_semantics<parallel>, #tpu.dimension_semantics<parallel>], iteration_bounds = array<i64: 2, 1>, scalar_prefetch = 0 : i64, scratch_operands = 0 : i64, tpu.core_type = #tpu.core_type<tc>, window_params = [{transform_indices = @transform_0, window_bounds = array<i64: 1, 1>}, {transform_indices = @transform_1, window_bounds = array<i64: 1, 1, 8, 32>}, {transform_indices = @transform_2, window_bounds = array<i64: 1, 1, 8, 32>}, {pipeline_mode = #tpu.pipeline_mode<synchronous>, transform_indices = @transform_3, window_bounds = array<i64: 8, 8>}, {transform_indices = @transform_4, window_bounds = array<i64: 1, 1, 8, 32>}]} {
    %c0 = arith.constant 0 : index
    %c0_0 = arith.constant 0 : index
    %0 = vector.load %arg5[%c0, %c0_0] : memref<8x8xf32, #tpu.memory_space<vmem>>, vector<8x8xf32>
    %1 = arith.truncf %0 : vector<8x8xf32> to vector<8x8xbf16>
    %c0_1 = arith.constant 0 : index
    %c0_2 = arith.constant 0 : index
    %2 = memref.load %arg2[%c0_1, %c0_2] : memref<1x1xf32, #tpu.memory_space<smem>>
    %cst = arith.constant 1.000000e+00 : f32
    %3 = arith.divf %cst, %2 : f32
    %c0_3 = arith.constant 0 : index
    %c0_4 = arith.constant 0 : index
    %c0_5 = arith.constant 0 : index
    %c0_6 = arith.constant 0 : index
    %4 = vector.load %arg3[%c0_3, %c0_4, %c0_5, %c0_6] : memref<1x1x8x32xf32, #tpu.memory_space<vmem>>, vector<1x1x8x8xf32>
    %5 = vector.shape_cast %4 : vector<1x1x8x8xf32> to vector<8x8xf32>
    %6 = arith.truncf %5 : vector<8x8xf32> to vector<8x8xbf16>
    %cst_7 = arith.constant dense<0.000000e+00> : vector<8x8xf32>
    %7 = tpu.matmul %1, %6, %cst_7 {dimension_numbers = #tpu.dot_dimension_numbers<[1], [1], [0], [0], [0, 0, 1, 0], [], []>} : vector<8x8xbf16>, vector<8x8xbf16>, vector<8x8xf32> -> vector<8x8xf32>
    %8 = vector.broadcast %3 : f32 to vector<8x8xf32>
    %9 = arith.mulf %7, %8 : vector<8x8xf32>
    %c0_i32 = arith.constant 0 : i32
    %c6_i32 = arith.constant 6 : i32
    %10 = arith.addi %c0_i32, %c6_i32 : i32
    %c1_i32 = arith.constant 1 : i32
    %11 = scf.for %arg7 = %c0_i32 to %10 step %c1_i32 iter_args(%arg8 = %9) -> (vector<8x8xf32>)  : i32 {
      %72 = arith.truncf %arg8 : vector<8x8xf32> to vector<8x8xbf16>
      %cst_65 = arith.constant dense<0.000000e+00> : vector<8x8xf32>
      %73 = tpu.matmul %6, %72, %cst_65 {dimension_numbers = #tpu.dot_dimension_numbers<[1], [0], [0], [1], [0, 0, 1, 1], [], []>} : vector<8x8xbf16>, vector<8x8xbf16>, vector<8x8xf32> -> vector<8x8xf32>
      %74 = arith.truncf %73 : vector<8x8xf32> to vector<8x8xbf16>
      %cst_66 = arith.constant 7.000000e+00 : f32
      %75 = vector.broadcast %cst_66 : f32 to vector<8x8xf32>
      %76 = arith.mulf %75, %0 : vector<8x8xf32>
      %77 = arith.subf %76, %73 : vector<8x8xf32>
      %cst_67 = arith.constant 1.500000e+01 : f32
      %78 = vector.broadcast %cst_67 : f32 to vector<8x8xf32>
      %79 = arith.mulf %78, %0 : vector<8x8xf32>
      %80 = arith.truncf %77 : vector<8x8xf32> to vector<8x8xbf16>
      %cst_68 = arith.constant dense<0.000000e+00> : vector<8x8xf32>
      %81 = tpu.matmul %74, %80, %cst_68 {dimension_numbers = #tpu.dot_dimension_numbers<[1], [0], [0], [1], [0, 0, 1, 1], [], []>} : vector<8x8xbf16>, vector<8x8xbf16>, vector<8x8xf32> -> vector<8x8xf32>
      %82 = arith.subf %79, %81 : vector<8x8xf32>
      %cst_69 = arith.constant 1.300000e+01 : f32
      %83 = vector.broadcast %cst_69 : f32 to vector<8x8xf32>
      %84 = arith.mulf %83, %0 : vector<8x8xf32>
      %85 = arith.truncf %82 : vector<8x8xf32> to vector<8x8xbf16>
      %cst_70 = arith.constant dense<0.000000e+00> : vector<8x8xf32>
      %86 = tpu.matmul %74, %85, %cst_70 {dimension_numbers = #tpu.dot_dimension_numbers<[1], [0], [0], [1], [0, 0, 1, 1], [], []>} : vector<8x8xbf16>, vector<8x8xbf16>, vector<8x8xf32> -> vector<8x8xf32>
      %87 = arith.subf %84, %86 : vector<8x8xf32>
      %88 = arith.truncf %arg8 : vector<8x8xf32> to vector<8x8xbf16>
      %89 = arith.truncf %87 : vector<8x8xf32> to vector<8x8xbf16>
      %cst_71 = arith.constant dense<0.000000e+00> : vector<8x8xf32>
      %90 = tpu.matmul %88, %89, %cst_71 {dimension_numbers = #tpu.dot_dimension_numbers<[1], [0], [0], [1], [0, 0, 1, 1], [], []>} : vector<8x8xbf16>, vector<8x8xbf16>, vector<8x8xf32> -> vector<8x8xf32>
      %cst_72 = arith.constant 2.500000e-01 : f32
      %91 = vector.broadcast %cst_72 : f32 to vector<8x8xf32>
      %92 = arith.mulf %91, %90 : vector<8x8xf32>
      scf.yield %92 : vector<8x8xf32>
    }
    %c0_8 = arith.constant 0 : index
    %c0_9 = arith.constant 0 : index
    %c0_10 = arith.constant 0 : index
    %c0_11 = arith.constant 0 : index
    %12 = vector.load %arg4[%c0_8, %c0_9, %c0_10, %c0_11] : memref<1x1x8x32xf32, #tpu.memory_space<vmem>>, vector<1x1x8x8xf32>
    %13 = vector.shape_cast %12 : vector<1x1x8x8xf32> to vector<8x8xf32>
    %14 = arith.truncf %11 : vector<8x8xf32> to vector<8x8xbf16>
    %15 = arith.truncf %13 : vector<8x8xf32> to vector<8x8xbf16>
    %cst_12 = arith.constant dense<0.000000e+00> : vector<8x8xf32>
    %16 = tpu.matmul %14, %15, %cst_12 {dimension_numbers = #tpu.dot_dimension_numbers<[1], [0], [0], [1], [0, 0, 1, 1], [], []>} : vector<8x8xbf16>, vector<8x8xbf16>, vector<8x8xf32> -> vector<8x8xf32>
    %17 = arith.truncf %16 : vector<8x8xf32> to vector<8x8xbf16>
    %c0_13 = arith.constant 0 : index
    %c0_14 = arith.constant 0 : index
    %c0_15 = arith.constant 0 : index
    %c0_16 = arith.constant 0 : index
    %18 = vector.load %arg6[%c0_13, %c0_14, %c0_15, %c0_16] : memref<1x1x8x32xbf16, #tpu.memory_space<vmem>>, vector<1x1x8x8xbf16>
    %19 = vector.shape_cast %18 : vector<1x1x8x8xbf16> to vector<8x8xbf16>
    %20 = vector.shape_cast %17 : vector<8x8xbf16> to vector<1x1x8x8xbf16>
    tpu.vector_store %arg6[%c0_13, %c0_14, %c0_15, %c0_16], %20 {strides = array<i32>} : memref<1x1x8x32xbf16, #tpu.memory_space<vmem>>, vector<1x1x8x8xbf16>,
    %c0_17 = arith.constant 0 : index
    %c0_18 = arith.constant 0 : index
    %c0_19 = arith.constant 0 : index
    %c8 = arith.constant 8 : index
    %21 = vector.load %arg3[%c0_17, %c0_18, %c0_19, %c8] : memref<1x1x8x32xf32, #tpu.memory_space<vmem>>, vector<1x1x8x8xf32>
    %22 = vector.shape_cast %21 : vector<1x1x8x8xf32> to vector<8x8xf32>
    %23 = arith.truncf %22 : vector<8x8xf32> to vector<8x8xbf16>
    %cst_20 = arith.constant dense<0.000000e+00> : vector<8x8xf32>
    %24 = tpu.matmul %1, %23, %cst_20 {dimension_numbers = #tpu.dot_dimension_numbers<[1], [1], [0], [0], [0, 0, 1, 0], [], []>} : vector<8x8xbf16>, vector<8x8xbf16>, vector<8x8xf32> -> vector<8x8xf32>
    %25 = vector.broadcast %3 : f32 to vector<8x8xf32>
    %26 = arith.mulf %24, %25 : vector<8x8xf32>
    %c0_i32_21 = arith.constant 0 : i32
    %c6_i32_22 = arith.constant 6 : i32
    %27 = arith.addi %c0_i32_21, %c6_i32_22 : i32
    %c1_i32_23 = arith.constant 1 : i32
    %28 = scf.for %arg7 = %c0_i32_21 to %27 step %c1_i32_23 iter_args(%arg8 = %26) -> (vector<8x8xf32>)  : i32 {
      %72 = arith.truncf %arg8 : vector<8x8xf32> to vector<8x8xbf16>
      %cst_65 = arith.constant dense<0.000000e+00> : vector<8x8xf32>
      %73 = tpu.matmul %23, %72, %cst_65 {dimension_numbers = #tpu.dot_dimension_numbers<[1], [0], [0], [1], [0, 0, 1, 1], [], []>} : vector<8x8xbf16>, vector<8x8xbf16>, vector<8x8xf32> -> vector<8x8xf32>
      %74 = arith.truncf %73 : vector<8x8xf32> to vector<8x8xbf16>
      %cst_66 = arith.constant 7.000000e+00 : f32
      %75 = vector.broadcast %cst_66 : f32 to vector<8x8xf32>
      %76 = arith.mulf %75, %0 : vector<8x8xf32>
      %77 = arith.subf %76, %73 : vector<8x8xf32>
      %cst_67 = arith.constant 1.500000e+01 : f32
      %78 = vector.broadcast %cst_67 : f32 to vector<8x8xf32>
      %79 = arith.mulf %78, %0 : vector<8x8xf32>
      %80 = arith.truncf %77 : vector<8x8xf32> to vector<8x8xbf16>
      %cst_68 = arith.constant dense<0.000000e+00> : vector<8x8xf32>
      %81 = tpu.matmul %74, %80, %cst_68 {dimension_numbers = #tpu.dot_dimension_numbers<[1], [0], [0], [1], [0, 0, 1, 1], [], []>} : vector<8x8xbf16>, vector<8x8xbf16>, vector<8x8xf32> -> vector<8x8xf32>
      %82 = arith.subf %79, %81 : vector<8x8xf32>
      %cst_69 = arith.constant 1.300000e+01 : f32
      %83 = vector.broadcast %cst_69 : f32 to vector<8x8xf32>
      %84 = arith.mulf %83, %0 : vector<8x8xf32>
      %85 = arith.truncf %82 : vector<8x8xf32> to vector<8x8xbf16>
      %cst_70 = arith.constant dense<0.000000e+00> : vector<8x8xf32>
      %86 = tpu.matmul %74, %85, %cst_70 {dimension_numbers = #tpu.dot_dimension_numbers<[1], [0], [0], [1], [0, 0, 1, 1], [], []>} : vector<8x8xbf16>, vector<8x8xbf16>, vector<8x8xf32> -> vector<8x8xf32>
      %87 = arith.subf %84, %86 : vector<8x8xf32>
      %88 = arith.truncf %arg8 : vector<8x8xf32> to vector<8x8xbf16>
      %89 = arith.truncf %87 : vector<8x8xf32> to vector<8x8xbf16>
      %cst_71 = arith.constant dense<0.000000e+00> : vector<8x8xf32>
      %90 = tpu.matmul %88, %89, %cst_71 {dimension_numbers = #tpu.dot_dimension_numbers<[1], [0], [0], [1], [0, 0, 1, 1], [], []>} : vector<8x8xbf16>, vector<8x8xbf16>, vector<8x8xf32> -> vector<8x8xf32>
      %cst_72 = arith.constant 2.500000e-01 : f32
      %91 = vector.broadcast %cst_72 : f32 to vector<8x8xf32>
      %92 = arith.mulf %91, %90 : vector<8x8xf32>
      scf.yield %92 : vector<8x8xf32>
    }
    %c0_24 = arith.constant 0 : index
    %c0_25 = arith.constant 0 : index
    %c0_26 = arith.constant 0 : index
    %c8_27 = arith.constant 8 : index
    %29 = vector.load %arg4[%c0_24, %c0_25, %c0_26, %c8_27] : memref<1x1x8x32xf32, #tpu.memory_space<vmem>>, vector<1x1x8x8xf32>
    %30 = vector.shape_cast %29 : vector<1x1x8x8xf32> to vector<8x8xf32>
    %31 = arith.truncf %28 : vector<8x8xf32> to vector<8x8xbf16>
    %32 = arith.truncf %30 : vector<8x8xf32> to vector<8x8xbf16>
    %cst_28 = arith.constant dense<0.000000e+00> : vector<8x8xf32>
    %33 = tpu.matmul %31, %32, %cst_28 {dimension_numbers = #tpu.dot_dimension_numbers<[1], [0], [0], [1], [0, 0, 1, 1], [], []>} : vector<8x8xbf16>, vector<8x8xbf16>, vector<8x8xf32> -> vector<8x8xf32>
    %34 = arith.truncf %33 : vector<8x8xf32> to vector<8x8xbf16>
    %c0_29 = arith.constant 0 : index
    %c0_30 = arith.constant 0 : index
    %c0_31 = arith.constant 0 : index
    %c8_32 = arith.constant 8 : index
    %35 = vector.load %arg6[%c0_29, %c0_30, %c0_31, %c8_32] : memref<1x1x8x32xbf16, #tpu.memory_space<vmem>>, vector<1x1x8x8xbf16>
    %36 = vector.shape_cast %35 : vector<1x1x8x8xbf16> to vector<8x8xbf16>
    %37 = vector.shape_cast %34 : vector<8x8xbf16> to vector<1x1x8x8xbf16>
    tpu.vector_store %arg6[%c0_29, %c0_30, %c0_31, %c8_32], %37 {strides = array<i32>} : memref<1x1x8x32xbf16, #tpu.memory_space<vmem>>, vector<1x1x8x8xbf16>,
    %c0_33 = arith.constant 0 : index
    %c0_34 = arith.constant 0 : index
    %c0_35 = arith.constant 0 : index
    %c16 = arith.constant 16 : index
    %38 = vector.load %arg3[%c0_33, %c0_34, %c0_35, %c16] : memref<1x1x8x32xf32, #tpu.memory_space<vmem>>, vector<1x1x8x8xf32>
    %39 = vector.shape_cast %38 : vector<1x1x8x8xf32> to vector<8x8xf32>
    %40 = arith.truncf %39 : vector<8x8xf32> to vector<8x8xbf16>
    %cst_36 = arith.constant dense<0.000000e+00> : vector<8x8xf32>
    %41 = tpu.matmul %1, %40, %cst_36 {dimension_numbers = #tpu.dot_dimension_numbers<[1], [1], [0], [0], [0, 0, 1, 0], [], []>} : vector<8x8xbf16>, vector<8x8xbf16>, vector<8x8xf32> -> vector<8x8xf32>
    %42 = vector.broadcast %3 : f32 to vector<8x8xf32>
    %43 = arith.mulf %41, %42 : vector<8x8xf32>
    %c0_i32_37 = arith.constant 0 : i32
    %c6_i32_38 = arith.constant 6 : i32
    %44 = arith.addi %c0_i32_37, %c6_i32_38 : i32
    %c1_i32_39 = arith.constant 1 : i32
    %45 = scf.for %arg7 = %c0_i32_37 to %44 step %c1_i32_39 iter_args(%arg8 = %43) -> (vector<8x8xf32>)  : i32 {
      %72 = arith.truncf %arg8 : vector<8x8xf32> to vector<8x8xbf16>
      %cst_65 = arith.constant dense<0.000000e+00> : vector<8x8xf32>
      %73 = tpu.matmul %40, %72, %cst_65 {dimension_numbers = #tpu.dot_dimension_numbers<[1], [0], [0], [1], [0, 0, 1, 1], [], []>} : vector<8x8xbf16>, vector<8x8xbf16>, vector<8x8xf32> -> vector<8x8xf32>
      %74 = arith.truncf %73 : vector<8x8xf32> to vector<8x8xbf16>
      %cst_66 = arith.constant 7.000000e+00 : f32
      %75 = vector.broadcast %cst_66 : f32 to vector<8x8xf32>
      %76 = arith.mulf %75, %0 : vector<8x8xf32>
      %77 = arith.subf %76, %73 : vector<8x8xf32>
      %cst_67 = arith.constant 1.500000e+01 : f32
      %78 = vector.broadcast %cst_67 : f32 to vector<8x8xf32>
      %79 = arith.mulf %78, %0 : vector<8x8xf32>
      %80 = arith.truncf %77 : vector<8x8xf32> to vector<8x8xbf16>
      %cst_68 = arith.constant dense<0.000000e+00> : vector<8x8xf32>
      %81 = tpu.matmul %74, %80, %cst_68 {dimension_numbers = #tpu.dot_dimension_numbers<[1], [0], [0], [1], [0, 0, 1, 1], [], []>} : vector<8x8xbf16>, vector<8x8xbf16>, vector<8x8xf32> -> vector<8x8xf32>
      %82 = arith.subf %79, %81 : vector<8x8xf32>
      %cst_69 = arith.constant 1.300000e+01 : f32
      %83 = vector.broadcast %cst_69 : f32 to vector<8x8xf32>
      %84 = arith.mulf %83, %0 : vector<8x8xf32>
      %85 = arith.truncf %82 : vector<8x8xf32> to vector<8x8xbf16>
      %cst_70 = arith.constant dense<0.000000e+00> : vector<8x8xf32>
      %86 = tpu.matmul %74, %85, %cst_70 {dimension_numbers = #tpu.dot_dimension_numbers<[1], [0], [0], [1], [0, 0, 1, 1], [], []>} : vector<8x8xbf16>, vector<8x8xbf16>, vector<8x8xf32> -> vector<8x8xf32>
      %87 = arith.subf %84, %86 : vector<8x8xf32>
      %88 = arith.truncf %arg8 : vector<8x8xf32> to vector<8x8xbf16>
      %89 = arith.truncf %87 : vector<8x8xf32> to vector<8x8xbf16>
      %cst_71 = arith.constant dense<0.000000e+00> : vector<8x8xf32>
      %90 = tpu.matmul %88, %89, %cst_71 {dimension_numbers = #tpu.dot_dimension_numbers<[1], [0], [0], [1], [0, 0, 1, 1], [], []>} : vector<8x8xbf16>, vector<8x8xbf16>, vector<8x8xf32> -> vector<8x8xf32>
      %cst_72 = arith.constant 2.500000e-01 : f32
      %91 = vector.broadcast %cst_72 : f32 to vector<8x8xf32>
      %92 = arith.mulf %91, %90 : vector<8x8xf32>
      scf.yield %92 : vector<8x8xf32>
    }
    %c0_40 = arith.constant 0 : index
    %c0_41 = arith.constant 0 : index
    %c0_42 = arith.constant 0 : index
    %c16_43 = arith.constant 16 : index
    %46 = vector.load %arg4[%c0_40, %c0_41, %c0_42, %c16_43] : memref<1x1x8x32xf32, #tpu.memory_space<vmem>>, vector<1x1x8x8xf32>
    %47 = vector.shape_cast %46 : vector<1x1x8x8xf32> to vector<8x8xf32>
    %48 = arith.truncf %45 : vector<8x8xf32> to vector<8x8xbf16>
    %49 = arith.truncf %47 : vector<8x8xf32> to vector<8x8xbf16>
    %cst_44 = arith.constant dense<0.000000e+00> : vector<8x8xf32>
    %50 = tpu.matmul %48, %49, %cst_44 {dimension_numbers = #tpu.dot_dimension_numbers<[1], [0], [0], [1], [0, 0, 1, 1], [], []>} : vector<8x8xbf16>, vector<8x8xbf16>, vector<8x8xf32> -> vector<8x8xf32>
    %51 = arith.truncf %50 : vector<8x8xf32> to vector<8x8xbf16>
    %c0_45 = arith.constant 0 : index
    %c0_46 = arith.constant 0 : index
    %c0_47 = arith.constant 0 : index
    %c16_48 = arith.constant 16 : index
    %52 = vector.load %arg6[%c0_45, %c0_46, %c0_47, %c16_48] : memref<1x1x8x32xbf16, #tpu.memory_space<vmem>>, vector<1x1x8x8xbf16>
    %53 = vector.shape_cast %52 : vector<1x1x8x8xbf16> to vector<8x8xbf16>
    %54 = vector.shape_cast %51 : vector<8x8xbf16> to vector<1x1x8x8xbf16>
    tpu.vector_store %arg6[%c0_45, %c0_46, %c0_47, %c16_48], %54 {strides = array<i32>} : memref<1x1x8x32xbf16, #tpu.memory_space<vmem>>, vector<1x1x8x8xbf16>,
    %c0_49 = arith.constant 0 : index
    %c0_50 = arith.constant 0 : index
    %c0_51 = arith.constant 0 : index
    %c24 = arith.constant 24 : index
    %55 = vector.load %arg3[%c0_49, %c0_50, %c0_51, %c24] : memref<1x1x8x32xf32, #tpu.memory_space<vmem>>, vector<1x1x8x8xf32>
    %56 = vector.shape_cast %55 : vector<1x1x8x8xf32> to vector<8x8xf32>
    %57 = arith.truncf %56 : vector<8x8xf32> to vector<8x8xbf16>
    %cst_52 = arith.constant dense<0.000000e+00> : vector<8x8xf32>
    %58 = tpu.matmul %1, %57, %cst_52 {dimension_numbers = #tpu.dot_dimension_numbers<[1], [1], [0], [0], [0, 0, 1, 0], [], []>} : vector<8x8xbf16>, vector<8x8xbf16>, vector<8x8xf32> -> vector<8x8xf32>
    %59 = vector.broadcast %3 : f32 to vector<8x8xf32>
    %60 = arith.mulf %58, %59 : vector<8x8xf32>
    %c0_i32_53 = arith.constant 0 : i32
    %c6_i32_54 = arith.constant 6 : i32
    %61 = arith.addi %c0_i32_53, %c6_i32_54 : i32
    %c1_i32_55 = arith.constant 1 : i32
    %62 = scf.for %arg7 = %c0_i32_53 to %61 step %c1_i32_55 iter_args(%arg8 = %60) -> (vector<8x8xf32>)  : i32 {
      %72 = arith.truncf %arg8 : vector<8x8xf32> to vector<8x8xbf16>
      %cst_65 = arith.constant dense<0.000000e+00> : vector<8x8xf32>
      %73 = tpu.matmul %57, %72, %cst_65 {dimension_numbers = #tpu.dot_dimension_numbers<[1], [0], [0], [1], [0, 0, 1, 1], [], []>} : vector<8x8xbf16>, vector<8x8xbf16>, vector<8x8xf32> -> vector<8x8xf32>
      %74 = arith.truncf %73 : vector<8x8xf32> to vector<8x8xbf16>
      %cst_66 = arith.constant 7.000000e+00 : f32
      %75 = vector.broadcast %cst_66 : f32 to vector<8x8xf32>
      %76 = arith.mulf %75, %0 : vector<8x8xf32>
      %77 = arith.subf %76, %73 : vector<8x8xf32>
      %cst_67 = arith.constant 1.500000e+01 : f32
      %78 = vector.broadcast %cst_67 : f32 to vector<8x8xf32>
      %79 = arith.mulf %78, %0 : vector<8x8xf32>
      %80 = arith.truncf %77 : vector<8x8xf32> to vector<8x8xbf16>
      %cst_68 = arith.constant dense<0.000000e+00> : vector<8x8xf32>
      %81 = tpu.matmul %74, %80, %cst_68 {dimension_numbers = #tpu.dot_dimension_numbers<[1], [0], [0], [1], [0, 0, 1, 1], [], []>} : vector<8x8xbf16>, vector<8x8xbf16>, vector<8x8xf32> -> vector<8x8xf32>
      %82 = arith.subf %79, %81 : vector<8x8xf32>
      %cst_69 = arith.constant 1.300000e+01 : f32
      %83 = vector.broadcast %cst_69 : f32 to vector<8x8xf32>
      %84 = arith.mulf %83, %0 : vector<8x8xf32>
      %85 = arith.truncf %82 : vector<8x8xf32> to vector<8x8xbf16>
      %cst_70 = arith.constant dense<0.000000e+00> : vector<8x8xf32>
      %86 = tpu.matmul %74, %85, %cst_70 {dimension_numbers = #tpu.dot_dimension_numbers<[1], [0], [0], [1], [0, 0, 1, 1], [], []>} : vector<8x8xbf16>, vector<8x8xbf16>, vector<8x8xf32> -> vector<8x8xf32>
      %87 = arith.subf %84, %86 : vector<8x8xf32>
      %88 = arith.truncf %arg8 : vector<8x8xf32> to vector<8x8xbf16>
      %89 = arith.truncf %87 : vector<8x8xf32> to vector<8x8xbf16>
      %cst_71 = arith.constant dense<0.000000e+00> : vector<8x8xf32>
      %90 = tpu.matmul %88, %89, %cst_71 {dimension_numbers = #tpu.dot_dimension_numbers<[1], [0], [0], [1], [0, 0, 1, 1], [], []>} : vector<8x8xbf16>, vector<8x8xbf16>, vector<8x8xf32> -> vector<8x8xf32>
      %cst_72 = arith.constant 2.500000e-01 : f32
      %91 = vector.broadcast %cst_72 : f32 to vector<8x8xf32>
      %92 = arith.mulf %91, %90 : vector<8x8xf32>
      scf.yield %92 : vector<8x8xf32>
    }
    %c0_56 = arith.constant 0 : index
    %c0_57 = arith.constant 0 : index
    %c0_58 = arith.constant 0 : index
    %c24_59 = arith.constant 24 : index
    %63 = vector.load %arg4[%c0_56, %c0_57, %c0_58, %c24_59] : memref<1x1x8x32xf32, #tpu.memory_space<vmem>>, vector<1x1x8x8xf32>
    %64 = vector.shape_cast %63 : vector<1x1x8x8xf32> to vector<8x8xf32>
    %65 = arith.truncf %62 : vector<8x8xf32> to vector<8x8xbf16>
    %66 = arith.truncf %64 : vector<8x8xf32> to vector<8x8xbf16>
    %cst_60 = arith.constant dense<0.000000e+00> : vector<8x8xf32>
    %67 = tpu.matmul %65, %66, %cst_60 {dimension_numbers = #tpu.dot_dimension_numbers<[1], [0], [0], [1], [0, 0, 1, 1], [], []>} : vector<8x8xbf16>, vector<8x8xbf16>, vector<8x8xf32> -> vector<8x8xf32>
    %68 = arith.truncf %67 : vector<8x8xf32> to vector<8x8xbf16>
    %c0_61 = arith.constant 0 : index
    %c0_62 = arith.constant 0 : index
    %c0_63 = arith.constant 0 : index
    %c24_64 = arith.constant 24 : index
    %69 = vector.load %arg6[%c0_61, %c0_62, %c0_63, %c24_64] : memref<1x1x8x32xbf16, #tpu.memory_space<vmem>>, vector<1x1x8x8xbf16>
    %70 = vector.shape_cast %69 : vector<1x1x8x8xbf16> to vector<8x8xbf16>
    %71 = vector.shape_cast %68 : vector<8x8xbf16> to vector<1x1x8x8xbf16>
    tpu.vector_store %arg6[%c0_61, %c0_62, %c0_63, %c24_64], %71 {strides = array<i32>} : memref<1x1x8x32xbf16, #tpu.memory_space<vmem>>, vector<1x1x8x8xbf16>,
    return
  }
  func.func @transform_0(%arg0: i32, %arg1: i32) -> (i32, i32) {
    %c0_i32 = arith.constant 0 : i32
    %c0_i32_0 = arith.constant 0 : i32
    %c0_i32_1 = arith.constant 0 : i32
    return %c0_i32, %c0_i32_0 : i32, i32
  }
  func.func @transform_1(%arg0: i32, %arg1: i32) -> (i32, i32, i32, i32) {
    %c0_i32 = arith.constant 0 : i32
    %c0_i32_0 = arith.constant 0 : i32
    %c0_i32_1 = arith.constant 0 : i32
    return %arg0, %arg1, %c0_i32, %c0_i32_0 : i32, i32, i32, i32
  }
  func.func @transform_2(%arg0: i32, %arg1: i32) -> (i32, i32, i32, i32) {
    %c0_i32 = arith.constant 0 : i32
    %c0_i32_0 = arith.constant 0 : i32
    %c0_i32_1 = arith.constant 0 : i32
    return %arg0, %arg1, %c0_i32, %c0_i32_0 : i32, i32, i32, i32
  }
  func.func @transform_3(%arg0: i32, %arg1: i32) -> (i32, i32) {
    %c0_i32 = arith.constant 0 : i32
    %c0_i32_0 = arith.constant 0 : i32
    %c0_i32_1 = arith.constant 0 : i32
    return %c0_i32, %c0_i32_0 : i32, i32
  }
  func.func @transform_4(%arg0: i32, %arg1: i32) -> (i32, i32, i32, i32) {
    %c0_i32 = arith.constant 0 : i32
    %c0_i32_0 = arith.constant 0 : i32
    %c0_i32_1 = arith.constant 0 : i32
    return %arg0, %arg1, %c0_i32, %c0_i32_0 : i32, i32, i32, i32
  }
}

module attributes {stable_mosaic.version = 11 : i64} {
  func.func @_out_proj_kernel(%arg0: i32, %arg1: memref<32x32xbf16, #tpu.memory_space<vmem>>, %arg2: memref<32x32xbf16, #tpu.memory_space<vmem>>, %arg3: memref<1x32xf32, #tpu.memory_space<vmem>>, %arg4: memref<32x32xf32, #tpu.memory_space<vmem>>) attributes {dimension_semantics = [#tpu.dimension_semantics<parallel>], iteration_bounds = array<i64: 1>, scalar_prefetch = 0 : i64, scratch_operands = 0 : i64, tpu.core_type = #tpu.core_type<tc>, window_params = [{transform_indices = @transform_0, window_bounds = array<i64: 32, 32>}, {pipeline_mode = #tpu.pipeline_mode<synchronous>, transform_indices = @transform_1, window_bounds = array<i64: 32, 32>}, {pipeline_mode = #tpu.pipeline_mode<synchronous>, transform_indices = @transform_2, window_bounds = array<i64: 1, 32>}, {transform_indices = @transform_3, window_bounds = array<i64: 32, 32>}]} {
    %c0 = arith.constant 0 : index
    %c0_0 = arith.constant 0 : index
    %0 = vector.load %arg1[%c0, %c0_0] : memref<32x32xbf16, #tpu.memory_space<vmem>>, vector<32x32xbf16>
    %c0_1 = arith.constant 0 : index
    %c0_2 = arith.constant 0 : index
    %1 = vector.load %arg2[%c0_1, %c0_2] : memref<32x32xbf16, #tpu.memory_space<vmem>>, vector<32x32xbf16>
    %cst = arith.constant dense<0.000000e+00> : vector<32x32xf32>
    %2 = tpu.matmul %0, %1, %cst {dimension_numbers = #tpu.dot_dimension_numbers<[1], [0], [0], [1], [0, 0, 1, 1], [], []>} : vector<32x32xbf16>, vector<32x32xbf16>, vector<32x32xf32> -> vector<32x32xf32>
    %c0_3 = arith.constant 0 : index
    %c0_4 = arith.constant 0 : index
    %3 = vector.load %arg3[%c0_3, %c0_4] : memref<1x32xf32, #tpu.memory_space<vmem>>, vector<1x32xf32>
    %4 = vector.broadcast %3 : vector<1x32xf32> to vector<32x32xf32>
    %5 = arith.addf %2, %4 : vector<32x32xf32>
    %c0_5 = arith.constant 0 : index
    %c0_6 = arith.constant 0 : index
    %6 = vector.load %arg4[%c0_5, %c0_6] : memref<32x32xf32, #tpu.memory_space<vmem>>, vector<32x32xf32>
    tpu.vector_store %arg4[%c0_5, %c0_6], %5 {strides = array<i32>} : memref<32x32xf32, #tpu.memory_space<vmem>>, vector<32x32xf32>,
    return
  }
  func.func @transform_0(%arg0: i32) -> (i32, i32) {
    %c0_i32 = arith.constant 0 : i32
    %c0_i32_0 = arith.constant 0 : i32
    return %arg0, %c0_i32 : i32, i32
  }
  func.func @transform_1(%arg0: i32) -> (i32, i32) {
    %c0_i32 = arith.constant 0 : i32
    %c0_i32_0 = arith.constant 0 : i32
    %c0_i32_1 = arith.constant 0 : i32
    return %c0_i32, %c0_i32_0 : i32, i32
  }
  func.func @transform_2(%arg0: i32) -> (i32, i32) {
    %c0_i32 = arith.constant 0 : i32
    %c0_i32_0 = arith.constant 0 : i32
    %c0_i32_1 = arith.constant 0 : i32
    return %c0_i32, %c0_i32_0 : i32, i32
  }
  func.func @transform_3(%arg0: i32) -> (i32, i32) {
    %c0_i32 = arith.constant 0 : i32
    %c0_i32_0 = arith.constant 0 : i32
    return %arg0, %c0_i32 : i32, i32
  }
}

module attributes {stable_mosaic.version = 11 : i64} {
  func.func @_out_kernel(%arg0: i32, %arg1: i32, %arg2: i32, %arg3: memref<1x16x32xbf16, #tpu.memory_space<vmem>>, %arg4: memref<1x1x8x32xbf16, #tpu.memory_space<vmem>>, %arg5: memref<1x1x8x32xbf16, #tpu.memory_space<vmem>>, %arg6: memref<1x16x32xbf16, #tpu.memory_space<vmem>>, %arg7: memref<1x1x32x32xbf16, #tpu.memory_space<vmem>>, %arg8: memref<1x33x32xf32, #tpu.memory_space<vmem>>, %arg9: memref<1x16x32xbf16, #tpu.memory_space<vmem>>) attributes {dimension_semantics = [#tpu.dimension_semantics<parallel>, #tpu.dimension_semantics<parallel>, #tpu.dimension_semantics<parallel>], iteration_bounds = array<i64: 2, 1, 1>, scalar_prefetch = 0 : i64, scratch_operands = 0 : i64, tpu.core_type = #tpu.core_type<tc>, window_params = [{transform_indices = @transform_0, window_bounds = array<i64: 1, 16, 32>}, {transform_indices = @transform_1, window_bounds = array<i64: 1, 1, 8, 32>}, {transform_indices = @transform_2, window_bounds = array<i64: 1, 1, 8, 32>}, {transform_indices = @transform_3, window_bounds = array<i64: 1, 16, 32>}, {transform_indices = @transform_4, window_bounds = array<i64: 1, 1, 32, 32>}, {transform_indices = @transform_5, window_bounds = array<i64: 1, 33, 32>}, {transform_indices = @transform_6, window_bounds = array<i64: 1, 16, 32>}]} {
    %c0 = arith.constant 0 : index
    %c0_0 = arith.constant 0 : index
    %c0_1 = arith.constant 0 : index
    %0 = vector.load %arg6[%c0, %c0_0, %c0_1] : memref<1x16x32xbf16, #tpu.memory_space<vmem>>, vector<1x16x32xbf16>
    %1 = vector.shape_cast %0 : vector<1x16x32xbf16> to vector<16x32xbf16>
    %2 = arith.extf %1 : vector<16x32xbf16> to vector<16x32xf32>
    %c0_2 = arith.constant 0 : index
    %c0_3 = arith.constant 0 : index
    %c0_4 = arith.constant 0 : index
    %c0_5 = arith.constant 0 : index
    %3 = vector.load %arg7[%c0_2, %c0_3, %c0_4, %c0_5] : memref<1x1x32x32xbf16, #tpu.memory_space<vmem>>, vector<1x1x16x32xbf16>
    %4 = vector.shape_cast %3 : vector<1x1x16x32xbf16> to vector<16x32xbf16>
    %5 = arith.extf %4 : vector<16x32xbf16> to vector<16x32xf32>
    %c0_6 = arith.constant 0 : index
    %c0_7 = arith.constant 0 : index
    %c16 = arith.constant 16 : index
    %c0_8 = arith.constant 0 : index
    %6 = vector.load %arg7[%c0_6, %c0_7, %c16, %c0_8] : memref<1x1x32x32xbf16, #tpu.memory_space<vmem>>, vector<1x1x16x32xbf16>
    %7 = vector.shape_cast %6 : vector<1x1x16x32xbf16> to vector<16x32xbf16>
    %8 = arith.extf %7 : vector<16x32xbf16> to vector<16x32xf32>
    %9 = tpu.concatenate %5, %2, %8 in 0 : vector<16x32xf32>, vector<16x32xf32>, vector<16x32xf32> -> vector<48x32xf32>
    %cst = arith.constant 0.000000e+00 : f32
    %10 = vector.broadcast %cst : f32 to vector<16x32xf32>
    %c0_9 = arith.constant 0 : index
    %c0_10 = arith.constant 0 : index
    %c0_11 = arith.constant 0 : index
    %11 = vector.load %arg8[%c0_9, %c0_10, %c0_11] : memref<1x33x32xf32, #tpu.memory_space<vmem>>, vector<1x1x32xf32>
    %12 = vector.shape_cast %11 : vector<1x1x32xf32> to vector<1x32xf32>
    %13 = vector.extract_strided_slice %9 {offsets = [0, 0], sizes = [16, 32], strides = [1, 1]} : vector<48x32xf32> to vector<16x32xf32>
    %14 = vector.broadcast %12 : vector<1x32xf32> to vector<16x32xf32>
    %15 = arith.mulf %14, %13 : vector<16x32xf32>
    %16 = arith.addf %10, %15 : vector<16x32xf32>
    %c0_12 = arith.constant 0 : index
    %c1 = arith.constant 1 : index
    %c0_13 = arith.constant 0 : index
    %17 = vector.load %arg8[%c0_12, %c1, %c0_13] : memref<1x33x32xf32, #tpu.memory_space<vmem>>, vector<1x1x32xf32>
    %18 = vector.shape_cast %17 : vector<1x1x32xf32> to vector<1x32xf32>
    %19 = vector.extract_strided_slice %9 {offsets = [1, 0], sizes = [16, 32], strides = [1, 1]} : vector<48x32xf32> to vector<16x32xf32>
    %20 = vector.broadcast %18 : vector<1x32xf32> to vector<16x32xf32>
    %21 = arith.mulf %20, %19 : vector<16x32xf32>
    %22 = arith.addf %16, %21 : vector<16x32xf32>
    %c0_14 = arith.constant 0 : index
    %c2 = arith.constant 2 : index
    %c0_15 = arith.constant 0 : index
    %23 = vector.load %arg8[%c0_14, %c2, %c0_15] : memref<1x33x32xf32, #tpu.memory_space<vmem>>, vector<1x1x32xf32>
    %24 = vector.shape_cast %23 : vector<1x1x32xf32> to vector<1x32xf32>
    %25 = vector.extract_strided_slice %9 {offsets = [2, 0], sizes = [16, 32], strides = [1, 1]} : vector<48x32xf32> to vector<16x32xf32>
    %26 = vector.broadcast %24 : vector<1x32xf32> to vector<16x32xf32>
    %27 = arith.mulf %26, %25 : vector<16x32xf32>
    %28 = arith.addf %22, %27 : vector<16x32xf32>
    %c0_16 = arith.constant 0 : index
    %c3 = arith.constant 3 : index
    %c0_17 = arith.constant 0 : index
    %29 = vector.load %arg8[%c0_16, %c3, %c0_17] : memref<1x33x32xf32, #tpu.memory_space<vmem>>, vector<1x1x32xf32>
    %30 = vector.shape_cast %29 : vector<1x1x32xf32> to vector<1x32xf32>
    %31 = vector.extract_strided_slice %9 {offsets = [3, 0], sizes = [16, 32], strides = [1, 1]} : vector<48x32xf32> to vector<16x32xf32>
    %32 = vector.broadcast %30 : vector<1x32xf32> to vector<16x32xf32>
    %33 = arith.mulf %32, %31 : vector<16x32xf32>
    %34 = arith.addf %28, %33 : vector<16x32xf32>
    %c0_18 = arith.constant 0 : index
    %c4 = arith.constant 4 : index
    %c0_19 = arith.constant 0 : index
    %35 = vector.load %arg8[%c0_18, %c4, %c0_19] : memref<1x33x32xf32, #tpu.memory_space<vmem>>, vector<1x1x32xf32>
    %36 = vector.shape_cast %35 : vector<1x1x32xf32> to vector<1x32xf32>
    %37 = vector.extract_strided_slice %9 {offsets = [4, 0], sizes = [16, 32], strides = [1, 1]} : vector<48x32xf32> to vector<16x32xf32>
    %38 = vector.broadcast %36 : vector<1x32xf32> to vector<16x32xf32>
    %39 = arith.mulf %38, %37 : vector<16x32xf32>
    %40 = arith.addf %34, %39 : vector<16x32xf32>
    %c0_20 = arith.constant 0 : index
    %c5 = arith.constant 5 : index
    %c0_21 = arith.constant 0 : index
    %41 = vector.load %arg8[%c0_20, %c5, %c0_21] : memref<1x33x32xf32, #tpu.memory_space<vmem>>, vector<1x1x32xf32>
    %42 = vector.shape_cast %41 : vector<1x1x32xf32> to vector<1x32xf32>
    %43 = vector.extract_strided_slice %9 {offsets = [5, 0], sizes = [16, 32], strides = [1, 1]} : vector<48x32xf32> to vector<16x32xf32>
    %44 = vector.broadcast %42 : vector<1x32xf32> to vector<16x32xf32>
    %45 = arith.mulf %44, %43 : vector<16x32xf32>
    %46 = arith.addf %40, %45 : vector<16x32xf32>
    %c0_22 = arith.constant 0 : index
    %c6 = arith.constant 6 : index
    %c0_23 = arith.constant 0 : index
    %47 = vector.load %arg8[%c0_22, %c6, %c0_23] : memref<1x33x32xf32, #tpu.memory_space<vmem>>, vector<1x1x32xf32>
    %48 = vector.shape_cast %47 : vector<1x1x32xf32> to vector<1x32xf32>
    %49 = vector.extract_strided_slice %9 {offsets = [6, 0], sizes = [16, 32], strides = [1, 1]} : vector<48x32xf32> to vector<16x32xf32>
    %50 = vector.broadcast %48 : vector<1x32xf32> to vector<16x32xf32>
    %51 = arith.mulf %50, %49 : vector<16x32xf32>
    %52 = arith.addf %46, %51 : vector<16x32xf32>
    %c0_24 = arith.constant 0 : index
    %c7 = arith.constant 7 : index
    %c0_25 = arith.constant 0 : index
    %53 = vector.load %arg8[%c0_24, %c7, %c0_25] : memref<1x33x32xf32, #tpu.memory_space<vmem>>, vector<1x1x32xf32>
    %54 = vector.shape_cast %53 : vector<1x1x32xf32> to vector<1x32xf32>
    %55 = vector.extract_strided_slice %9 {offsets = [7, 0], sizes = [16, 32], strides = [1, 1]} : vector<48x32xf32> to vector<16x32xf32>
    %56 = vector.broadcast %54 : vector<1x32xf32> to vector<16x32xf32>
    %57 = arith.mulf %56, %55 : vector<16x32xf32>
    %58 = arith.addf %52, %57 : vector<16x32xf32>
    %c0_26 = arith.constant 0 : index
    %c8 = arith.constant 8 : index
    %c0_27 = arith.constant 0 : index
    %59 = vector.load %arg8[%c0_26, %c8, %c0_27] : memref<1x33x32xf32, #tpu.memory_space<vmem>>, vector<1x1x32xf32>
    %60 = vector.shape_cast %59 : vector<1x1x32xf32> to vector<1x32xf32>
    %61 = vector.extract_strided_slice %9 {offsets = [8, 0], sizes = [16, 32], strides = [1, 1]} : vector<48x32xf32> to vector<16x32xf32>
    %62 = vector.broadcast %60 : vector<1x32xf32> to vector<16x32xf32>
    %63 = arith.mulf %62, %61 : vector<16x32xf32>
    %64 = arith.addf %58, %63 : vector<16x32xf32>
    %c0_28 = arith.constant 0 : index
    %c9 = arith.constant 9 : index
    %c0_29 = arith.constant 0 : index
    %65 = vector.load %arg8[%c0_28, %c9, %c0_29] : memref<1x33x32xf32, #tpu.memory_space<vmem>>, vector<1x1x32xf32>
    %66 = vector.shape_cast %65 : vector<1x1x32xf32> to vector<1x32xf32>
    %67 = vector.extract_strided_slice %9 {offsets = [9, 0], sizes = [16, 32], strides = [1, 1]} : vector<48x32xf32> to vector<16x32xf32>
    %68 = vector.broadcast %66 : vector<1x32xf32> to vector<16x32xf32>
    %69 = arith.mulf %68, %67 : vector<16x32xf32>
    %70 = arith.addf %64, %69 : vector<16x32xf32>
    %c0_30 = arith.constant 0 : index
    %c10 = arith.constant 10 : index
    %c0_31 = arith.constant 0 : index
    %71 = vector.load %arg8[%c0_30, %c10, %c0_31] : memref<1x33x32xf32, #tpu.memory_space<vmem>>, vector<1x1x32xf32>
    %72 = vector.shape_cast %71 : vector<1x1x32xf32> to vector<1x32xf32>
    %73 = vector.extract_strided_slice %9 {offsets = [10, 0], sizes = [16, 32], strides = [1, 1]} : vector<48x32xf32> to vector<16x32xf32>
    %74 = vector.broadcast %72 : vector<1x32xf32> to vector<16x32xf32>
    %75 = arith.mulf %74, %73 : vector<16x32xf32>
    %76 = arith.addf %70, %75 : vector<16x32xf32>
    %c0_32 = arith.constant 0 : index
    %c11 = arith.constant 11 : index
    %c0_33 = arith.constant 0 : index
    %77 = vector.load %arg8[%c0_32, %c11, %c0_33] : memref<1x33x32xf32, #tpu.memory_space<vmem>>, vector<1x1x32xf32>
    %78 = vector.shape_cast %77 : vector<1x1x32xf32> to vector<1x32xf32>
    %79 = vector.extract_strided_slice %9 {offsets = [11, 0], sizes = [16, 32], strides = [1, 1]} : vector<48x32xf32> to vector<16x32xf32>
    %80 = vector.broadcast %78 : vector<1x32xf32> to vector<16x32xf32>
    %81 = arith.mulf %80, %79 : vector<16x32xf32>
    %82 = arith.addf %76, %81 : vector<16x32xf32>
    %c0_34 = arith.constant 0 : index
    %c12 = arith.constant 12 : index
    %c0_35 = arith.constant 0 : index
    %83 = vector.load %arg8[%c0_34, %c12, %c0_35] : memref<1x33x32xf32, #tpu.memory_space<vmem>>, vector<1x1x32xf32>
    %84 = vector.shape_cast %83 : vector<1x1x32xf32> to vector<1x32xf32>
    %85 = vector.extract_strided_slice %9 {offsets = [12, 0], sizes = [16, 32], strides = [1, 1]} : vector<48x32xf32> to vector<16x32xf32>
    %86 = vector.broadcast %84 : vector<1x32xf32> to vector<16x32xf32>
    %87 = arith.mulf %86, %85 : vector<16x32xf32>
    %88 = arith.addf %82, %87 : vector<16x32xf32>
    %c0_36 = arith.constant 0 : index
    %c13 = arith.constant 13 : index
    %c0_37 = arith.constant 0 : index
    %89 = vector.load %arg8[%c0_36, %c13, %c0_37] : memref<1x33x32xf32, #tpu.memory_space<vmem>>, vector<1x1x32xf32>
    %90 = vector.shape_cast %89 : vector<1x1x32xf32> to vector<1x32xf32>
    %91 = vector.extract_strided_slice %9 {offsets = [13, 0], sizes = [16, 32], strides = [1, 1]} : vector<48x32xf32> to vector<16x32xf32>
    %92 = vector.broadcast %90 : vector<1x32xf32> to vector<16x32xf32>
    %93 = arith.mulf %92, %91 : vector<16x32xf32>
    %94 = arith.addf %88, %93 : vector<16x32xf32>
    %c0_38 = arith.constant 0 : index
    %c14 = arith.constant 14 : index
    %c0_39 = arith.constant 0 : index
    %95 = vector.load %arg8[%c0_38, %c14, %c0_39] : memref<1x33x32xf32, #tpu.memory_space<vmem>>, vector<1x1x32xf32>
    %96 = vector.shape_cast %95 : vector<1x1x32xf32> to vector<1x32xf32>
    %97 = vector.extract_strided_slice %9 {offsets = [14, 0], sizes = [16, 32], strides = [1, 1]} : vector<48x32xf32> to vector<16x32xf32>
    %98 = vector.broadcast %96 : vector<1x32xf32> to vector<16x32xf32>
    %99 = arith.mulf %98, %97 : vector<16x32xf32>
    %100 = arith.addf %94, %99 : vector<16x32xf32>
    %c0_40 = arith.constant 0 : index
    %c15 = arith.constant 15 : index
    %c0_41 = arith.constant 0 : index
    %101 = vector.load %arg8[%c0_40, %c15, %c0_41] : memref<1x33x32xf32, #tpu.memory_space<vmem>>, vector<1x1x32xf32>
    %102 = vector.shape_cast %101 : vector<1x1x32xf32> to vector<1x32xf32>
    %103 = vector.extract_strided_slice %9 {offsets = [15, 0], sizes = [16, 32], strides = [1, 1]} : vector<48x32xf32> to vector<16x32xf32>
    %104 = vector.broadcast %102 : vector<1x32xf32> to vector<16x32xf32>
    %105 = arith.mulf %104, %103 : vector<16x32xf32>
    %106 = arith.addf %100, %105 : vector<16x32xf32>
    %c0_42 = arith.constant 0 : index
    %c16_43 = arith.constant 16 : index
    %c0_44 = arith.constant 0 : index
    %107 = vector.load %arg8[%c0_42, %c16_43, %c0_44] : memref<1x33x32xf32, #tpu.memory_space<vmem>>, vector<1x1x32xf32>
    %108 = vector.shape_cast %107 : vector<1x1x32xf32> to vector<1x32xf32>
    %109 = vector.extract_strided_slice %9 {offsets = [16, 0], sizes = [16, 32], strides = [1, 1]} : vector<48x32xf32> to vector<16x32xf32>
    %110 = vector.broadcast %108 : vector<1x32xf32> to vector<16x32xf32>
    %111 = arith.mulf %110, %109 : vector<16x32xf32>
    %112 = arith.addf %106, %111 : vector<16x32xf32>
    %c0_45 = arith.constant 0 : index
    %c17 = arith.constant 17 : index
    %c0_46 = arith.constant 0 : index
    %113 = vector.load %arg8[%c0_45, %c17, %c0_46] : memref<1x33x32xf32, #tpu.memory_space<vmem>>, vector<1x1x32xf32>
    %114 = vector.shape_cast %113 : vector<1x1x32xf32> to vector<1x32xf32>
    %115 = vector.extract_strided_slice %9 {offsets = [17, 0], sizes = [16, 32], strides = [1, 1]} : vector<48x32xf32> to vector<16x32xf32>
    %116 = vector.broadcast %114 : vector<1x32xf32> to vector<16x32xf32>
    %117 = arith.mulf %116, %115 : vector<16x32xf32>
    %118 = arith.addf %112, %117 : vector<16x32xf32>
    %c0_47 = arith.constant 0 : index
    %c18 = arith.constant 18 : index
    %c0_48 = arith.constant 0 : index
    %119 = vector.load %arg8[%c0_47, %c18, %c0_48] : memref<1x33x32xf32, #tpu.memory_space<vmem>>, vector<1x1x32xf32>
    %120 = vector.shape_cast %119 : vector<1x1x32xf32> to vector<1x32xf32>
    %121 = vector.extract_strided_slice %9 {offsets = [18, 0], sizes = [16, 32], strides = [1, 1]} : vector<48x32xf32> to vector<16x32xf32>
    %122 = vector.broadcast %120 : vector<1x32xf32> to vector<16x32xf32>
    %123 = arith.mulf %122, %121 : vector<16x32xf32>
    %124 = arith.addf %118, %123 : vector<16x32xf32>
    %c0_49 = arith.constant 0 : index
    %c19 = arith.constant 19 : index
    %c0_50 = arith.constant 0 : index
    %125 = vector.load %arg8[%c0_49, %c19, %c0_50] : memref<1x33x32xf32, #tpu.memory_space<vmem>>, vector<1x1x32xf32>
    %126 = vector.shape_cast %125 : vector<1x1x32xf32> to vector<1x32xf32>
    %127 = vector.extract_strided_slice %9 {offsets = [19, 0], sizes = [16, 32], strides = [1, 1]} : vector<48x32xf32> to vector<16x32xf32>
    %128 = vector.broadcast %126 : vector<1x32xf32> to vector<16x32xf32>
    %129 = arith.mulf %128, %127 : vector<16x32xf32>
    %130 = arith.addf %124, %129 : vector<16x32xf32>
    %c0_51 = arith.constant 0 : index
    %c20 = arith.constant 20 : index
    %c0_52 = arith.constant 0 : index
    %131 = vector.load %arg8[%c0_51, %c20, %c0_52] : memref<1x33x32xf32, #tpu.memory_space<vmem>>, vector<1x1x32xf32>
    %132 = vector.shape_cast %131 : vector<1x1x32xf32> to vector<1x32xf32>
    %133 = vector.extract_strided_slice %9 {offsets = [20, 0], sizes = [16, 32], strides = [1, 1]} : vector<48x32xf32> to vector<16x32xf32>
    %134 = vector.broadcast %132 : vector<1x32xf32> to vector<16x32xf32>
    %135 = arith.mulf %134, %133 : vector<16x32xf32>
    %136 = arith.addf %130, %135 : vector<16x32xf32>
    %c0_53 = arith.constant 0 : index
    %c21 = arith.constant 21 : index
    %c0_54 = arith.constant 0 : index
    %137 = vector.load %arg8[%c0_53, %c21, %c0_54] : memref<1x33x32xf32, #tpu.memory_space<vmem>>, vector<1x1x32xf32>
    %138 = vector.shape_cast %137 : vector<1x1x32xf32> to vector<1x32xf32>
    %139 = vector.extract_strided_slice %9 {offsets = [21, 0], sizes = [16, 32], strides = [1, 1]} : vector<48x32xf32> to vector<16x32xf32>
    %140 = vector.broadcast %138 : vector<1x32xf32> to vector<16x32xf32>
    %141 = arith.mulf %140, %139 : vector<16x32xf32>
    %142 = arith.addf %136, %141 : vector<16x32xf32>
    %c0_55 = arith.constant 0 : index
    %c22 = arith.constant 22 : index
    %c0_56 = arith.constant 0 : index
    %143 = vector.load %arg8[%c0_55, %c22, %c0_56] : memref<1x33x32xf32, #tpu.memory_space<vmem>>, vector<1x1x32xf32>
    %144 = vector.shape_cast %143 : vector<1x1x32xf32> to vector<1x32xf32>
    %145 = vector.extract_strided_slice %9 {offsets = [22, 0], sizes = [16, 32], strides = [1, 1]} : vector<48x32xf32> to vector<16x32xf32>
    %146 = vector.broadcast %144 : vector<1x32xf32> to vector<16x32xf32>
    %147 = arith.mulf %146, %145 : vector<16x32xf32>
    %148 = arith.addf %142, %147 : vector<16x32xf32>
    %c0_57 = arith.constant 0 : index
    %c23 = arith.constant 23 : index
    %c0_58 = arith.constant 0 : index
    %149 = vector.load %arg8[%c0_57, %c23, %c0_58] : memref<1x33x32xf32, #tpu.memory_space<vmem>>, vector<1x1x32xf32>
    %150 = vector.shape_cast %149 : vector<1x1x32xf32> to vector<1x32xf32>
    %151 = vector.extract_strided_slice %9 {offsets = [23, 0], sizes = [16, 32], strides = [1, 1]} : vector<48x32xf32> to vector<16x32xf32>
    %152 = vector.broadcast %150 : vector<1x32xf32> to vector<16x32xf32>
    %153 = arith.mulf %152, %151 : vector<16x32xf32>
    %154 = arith.addf %148, %153 : vector<16x32xf32>
    %c0_59 = arith.constant 0 : index
    %c24 = arith.constant 24 : index
    %c0_60 = arith.constant 0 : index
    %155 = vector.load %arg8[%c0_59, %c24, %c0_60] : memref<1x33x32xf32, #tpu.memory_space<vmem>>, vector<1x1x32xf32>
    %156 = vector.shape_cast %155 : vector<1x1x32xf32> to vector<1x32xf32>
    %157 = vector.extract_strided_slice %9 {offsets = [24, 0], sizes = [16, 32], strides = [1, 1]} : vector<48x32xf32> to vector<16x32xf32>
    %158 = vector.broadcast %156 : vector<1x32xf32> to vector<16x32xf32>
    %159 = arith.mulf %158, %157 : vector<16x32xf32>
    %160 = arith.addf %154, %159 : vector<16x32xf32>
    %c0_61 = arith.constant 0 : index
    %c25 = arith.constant 25 : index
    %c0_62 = arith.constant 0 : index
    %161 = vector.load %arg8[%c0_61, %c25, %c0_62] : memref<1x33x32xf32, #tpu.memory_space<vmem>>, vector<1x1x32xf32>
    %162 = vector.shape_cast %161 : vector<1x1x32xf32> to vector<1x32xf32>
    %163 = vector.extract_strided_slice %9 {offsets = [25, 0], sizes = [16, 32], strides = [1, 1]} : vector<48x32xf32> to vector<16x32xf32>
    %164 = vector.broadcast %162 : vector<1x32xf32> to vector<16x32xf32>
    %165 = arith.mulf %164, %163 : vector<16x32xf32>
    %166 = arith.addf %160, %165 : vector<16x32xf32>
    %c0_63 = arith.constant 0 : index
    %c26 = arith.constant 26 : index
    %c0_64 = arith.constant 0 : index
    %167 = vector.load %arg8[%c0_63, %c26, %c0_64] : memref<1x33x32xf32, #tpu.memory_space<vmem>>, vector<1x1x32xf32>
    %168 = vector.shape_cast %167 : vector<1x1x32xf32> to vector<1x32xf32>
    %169 = vector.extract_strided_slice %9 {offsets = [26, 0], sizes = [16, 32], strides = [1, 1]} : vector<48x32xf32> to vector<16x32xf32>
    %170 = vector.broadcast %168 : vector<1x32xf32> to vector<16x32xf32>
    %171 = arith.mulf %170, %169 : vector<16x32xf32>
    %172 = arith.addf %166, %171 : vector<16x32xf32>
    %c0_65 = arith.constant 0 : index
    %c27 = arith.constant 27 : index
    %c0_66 = arith.constant 0 : index
    %173 = vector.load %arg8[%c0_65, %c27, %c0_66] : memref<1x33x32xf32, #tpu.memory_space<vmem>>, vector<1x1x32xf32>
    %174 = vector.shape_cast %173 : vector<1x1x32xf32> to vector<1x32xf32>
    %175 = vector.extract_strided_slice %9 {offsets = [27, 0], sizes = [16, 32], strides = [1, 1]} : vector<48x32xf32> to vector<16x32xf32>
    %176 = vector.broadcast %174 : vector<1x32xf32> to vector<16x32xf32>
    %177 = arith.mulf %176, %175 : vector<16x32xf32>
    %178 = arith.addf %172, %177 : vector<16x32xf32>
    %c0_67 = arith.constant 0 : index
    %c28 = arith.constant 28 : index
    %c0_68 = arith.constant 0 : index
    %179 = vector.load %arg8[%c0_67, %c28, %c0_68] : memref<1x33x32xf32, #tpu.memory_space<vmem>>, vector<1x1x32xf32>
    %180 = vector.shape_cast %179 : vector<1x1x32xf32> to vector<1x32xf32>
    %181 = vector.extract_strided_slice %9 {offsets = [28, 0], sizes = [16, 32], strides = [1, 1]} : vector<48x32xf32> to vector<16x32xf32>
    %182 = vector.broadcast %180 : vector<1x32xf32> to vector<16x32xf32>
    %183 = arith.mulf %182, %181 : vector<16x32xf32>
    %184 = arith.addf %178, %183 : vector<16x32xf32>
    %c0_69 = arith.constant 0 : index
    %c29 = arith.constant 29 : index
    %c0_70 = arith.constant 0 : index
    %185 = vector.load %arg8[%c0_69, %c29, %c0_70] : memref<1x33x32xf32, #tpu.memory_space<vmem>>, vector<1x1x32xf32>
    %186 = vector.shape_cast %185 : vector<1x1x32xf32> to vector<1x32xf32>
    %187 = vector.extract_strided_slice %9 {offsets = [29, 0], sizes = [16, 32], strides = [1, 1]} : vector<48x32xf32> to vector<16x32xf32>
    %188 = vector.broadcast %186 : vector<1x32xf32> to vector<16x32xf32>
    %189 = arith.mulf %188, %187 : vector<16x32xf32>
    %190 = arith.addf %184, %189 : vector<16x32xf32>
    %c0_71 = arith.constant 0 : index
    %c30 = arith.constant 30 : index
    %c0_72 = arith.constant 0 : index
    %191 = vector.load %arg8[%c0_71, %c30, %c0_72] : memref<1x33x32xf32, #tpu.memory_space<vmem>>, vector<1x1x32xf32>
    %192 = vector.shape_cast %191 : vector<1x1x32xf32> to vector<1x32xf32>
    %193 = vector.extract_strided_slice %9 {offsets = [30, 0], sizes = [16, 32], strides = [1, 1]} : vector<48x32xf32> to vector<16x32xf32>
    %194 = vector.broadcast %192 : vector<1x32xf32> to vector<16x32xf32>
    %195 = arith.mulf %194, %193 : vector<16x32xf32>
    %196 = arith.addf %190, %195 : vector<16x32xf32>
    %c0_73 = arith.constant 0 : index
    %c31 = arith.constant 31 : index
    %c0_74 = arith.constant 0 : index
    %197 = vector.load %arg8[%c0_73, %c31, %c0_74] : memref<1x33x32xf32, #tpu.memory_space<vmem>>, vector<1x1x32xf32>
    %198 = vector.shape_cast %197 : vector<1x1x32xf32> to vector<1x32xf32>
    %199 = vector.extract_strided_slice %9 {offsets = [31, 0], sizes = [16, 32], strides = [1, 1]} : vector<48x32xf32> to vector<16x32xf32>
    %200 = vector.broadcast %198 : vector<1x32xf32> to vector<16x32xf32>
    %201 = arith.mulf %200, %199 : vector<16x32xf32>
    %202 = arith.addf %196, %201 : vector<16x32xf32>
    %c0_75 = arith.constant 0 : index
    %c32 = arith.constant 32 : index
    %c0_76 = arith.constant 0 : index
    %203 = vector.load %arg8[%c0_75, %c32, %c0_76] : memref<1x33x32xf32, #tpu.memory_space<vmem>>, vector<1x1x32xf32>
    %204 = vector.shape_cast %203 : vector<1x1x32xf32> to vector<1x32xf32>
    %205 = vector.extract_strided_slice %9 {offsets = [32, 0], sizes = [16, 32], strides = [1, 1]} : vector<48x32xf32> to vector<16x32xf32>
    %206 = vector.broadcast %204 : vector<1x32xf32> to vector<16x32xf32>
    %207 = arith.mulf %206, %205 : vector<16x32xf32>
    %208 = arith.addf %202, %207 : vector<16x32xf32>
    %c0_77 = arith.constant 0 : index
    %c0_78 = arith.constant 0 : index
    %c0_79 = arith.constant 0 : index
    %209 = vector.load %arg3[%c0_77, %c0_78, %c0_79] : memref<1x16x32xbf16, #tpu.memory_space<vmem>>, vector<1x16x8xbf16>
    %210 = vector.shape_cast %209 : vector<1x16x8xbf16> to vector<16x8xbf16>
    %c0_80 = arith.constant 0 : index
    %c0_81 = arith.constant 0 : index
    %c0_82 = arith.constant 0 : index
    %c0_83 = arith.constant 0 : index
    %211 = vector.load %arg4[%c0_80, %c0_81, %c0_82, %c0_83] : memref<1x1x8x32xbf16, #tpu.memory_space<vmem>>, vector<1x1x8x8xbf16>
    %212 = vector.shape_cast %211 : vector<1x1x8x8xbf16> to vector<8x8xbf16>
    %cst_84 = arith.constant dense<0.000000e+00> : vector<16x8xf32>
    %213 = tpu.matmul %210, %212, %cst_84 {dimension_numbers = #tpu.dot_dimension_numbers<[1], [1], [0], [0], [0, 0, 1, 0], [], []>} : vector<16x8xbf16>, vector<8x8xbf16>, vector<16x8xf32> -> vector<16x8xf32>
    %cst_85 = arith.constant dense<0xFF800000> : vector<16xf32>
    %214 = vector.multi_reduction <maximumf>, %213, %cst_85 [1] : vector<16x8xf32> to vector<16xf32>
    %215 = vector.shape_cast %214 : vector<16xf32> to vector<16x1xf32>
    %216 = vector.broadcast %215 : vector<16x1xf32> to vector<16x8xf32>
    %217 = arith.subf %213, %216 : vector<16x8xf32>
    %218 = math.exp %217 : vector<16x8xf32>
    %cst_86 = arith.constant dense<0.000000e+00> : vector<16xf32>
    %219 = vector.multi_reduction <add>, %218, %cst_86 [1] : vector<16x8xf32> to vector<16xf32>
    %220 = vector.shape_cast %219 : vector<16xf32> to vector<16x1xf32>
    %221 = tpu.reciprocal %220 {approx = true} : vector<16x1xf32> -> vector<16x1xf32>
    %222 = vector.broadcast %221 : vector<16x1xf32> to vector<16x8xf32>
    %223 = arith.mulf %218, %222 : vector<16x8xf32>
    %224 = arith.truncf %223 : vector<16x8xf32> to vector<16x8xbf16>
    %c0_87 = arith.constant 0 : index
    %c0_88 = arith.constant 0 : index
    %c0_89 = arith.constant 0 : index
    %c0_90 = arith.constant 0 : index
    %225 = vector.load %arg5[%c0_87, %c0_88, %c0_89, %c0_90] : memref<1x1x8x32xbf16, #tpu.memory_space<vmem>>, vector<1x1x8x8xbf16>
    %226 = vector.shape_cast %225 : vector<1x1x8x8xbf16> to vector<8x8xbf16>
    %cst_91 = arith.constant dense<0.000000e+00> : vector<16x8xf32>
    %227 = tpu.matmul %224, %226, %cst_91 {dimension_numbers = #tpu.dot_dimension_numbers<[1], [0], [0], [1], [0, 0, 1, 1], [], []>} : vector<16x8xbf16>, vector<8x8xbf16>, vector<16x8xf32> -> vector<16x8xf32>
    %228 = vector.extract_strided_slice %208 {offsets = [0, 0], sizes = [16, 8], strides = [1, 1]} : vector<16x32xf32> to vector<16x8xf32>
    %229 = arith.addf %227, %228 : vector<16x8xf32>
    %230 = arith.truncf %229 : vector<16x8xf32> to vector<16x8xbf16>
    %c0_92 = arith.constant 0 : index
    %c0_93 = arith.constant 0 : index
    %c0_94 = arith.constant 0 : index
    %231 = vector.load %arg9[%c0_92, %c0_93, %c0_94] : memref<1x16x32xbf16, #tpu.memory_space<vmem>>, vector<1x16x8xbf16>
    %232 = vector.shape_cast %231 : vector<1x16x8xbf16> to vector<16x8xbf16>
    %233 = vector.shape_cast %230 : vector<16x8xbf16> to vector<1x16x8xbf16>
    tpu.vector_store %arg9[%c0_92, %c0_93, %c0_94], %233 {strides = array<i32>} : memref<1x16x32xbf16, #tpu.memory_space<vmem>>, vector<1x16x8xbf16>,
    %c0_95 = arith.constant 0 : index
    %c0_96 = arith.constant 0 : index
    %c8_97 = arith.constant 8 : index
    %234 = vector.load %arg3[%c0_95, %c0_96, %c8_97] : memref<1x16x32xbf16, #tpu.memory_space<vmem>>, vector<1x16x8xbf16>
    %235 = vector.shape_cast %234 : vector<1x16x8xbf16> to vector<16x8xbf16>
    %c0_98 = arith.constant 0 : index
    %c0_99 = arith.constant 0 : index
    %c0_100 = arith.constant 0 : index
    %c8_101 = arith.constant 8 : index
    %236 = vector.load %arg4[%c0_98, %c0_99, %c0_100, %c8_101] : memref<1x1x8x32xbf16, #tpu.memory_space<vmem>>, vector<1x1x8x8xbf16>
    %237 = vector.shape_cast %236 : vector<1x1x8x8xbf16> to vector<8x8xbf16>
    %cst_102 = arith.constant dense<0.000000e+00> : vector<16x8xf32>
    %238 = tpu.matmul %235, %237, %cst_102 {dimension_numbers = #tpu.dot_dimension_numbers<[1], [1], [0], [0], [0, 0, 1, 0], [], []>} : vector<16x8xbf16>, vector<8x8xbf16>, vector<16x8xf32> -> vector<16x8xf32>
    %cst_103 = arith.constant dense<0xFF800000> : vector<16xf32>
    %239 = vector.multi_reduction <maximumf>, %238, %cst_103 [1] : vector<16x8xf32> to vector<16xf32>
    %240 = vector.shape_cast %239 : vector<16xf32> to vector<16x1xf32>
    %241 = vector.broadcast %240 : vector<16x1xf32> to vector<16x8xf32>
    %242 = arith.subf %238, %241 : vector<16x8xf32>
    %243 = math.exp %242 : vector<16x8xf32>
    %cst_104 = arith.constant dense<0.000000e+00> : vector<16xf32>
    %244 = vector.multi_reduction <add>, %243, %cst_104 [1] : vector<16x8xf32> to vector<16xf32>
    %245 = vector.shape_cast %244 : vector<16xf32> to vector<16x1xf32>
    %246 = tpu.reciprocal %245 {approx = true} : vector<16x1xf32> -> vector<16x1xf32>
    %247 = vector.broadcast %246 : vector<16x1xf32> to vector<16x8xf32>
    %248 = arith.mulf %243, %247 : vector<16x8xf32>
    %249 = arith.truncf %248 : vector<16x8xf32> to vector<16x8xbf16>
    %c0_105 = arith.constant 0 : index
    %c0_106 = arith.constant 0 : index
    %c0_107 = arith.constant 0 : index
    %c8_108 = arith.constant 8 : index
    %250 = vector.load %arg5[%c0_105, %c0_106, %c0_107, %c8_108] : memref<1x1x8x32xbf16, #tpu.memory_space<vmem>>, vector<1x1x8x8xbf16>
    %251 = vector.shape_cast %250 : vector<1x1x8x8xbf16> to vector<8x8xbf16>
    %cst_109 = arith.constant dense<0.000000e+00> : vector<16x8xf32>
    %252 = tpu.matmul %249, %251, %cst_109 {dimension_numbers = #tpu.dot_dimension_numbers<[1], [0], [0], [1], [0, 0, 1, 1], [], []>} : vector<16x8xbf16>, vector<8x8xbf16>, vector<16x8xf32> -> vector<16x8xf32>
    %253 = vector.extract_strided_slice %208 {offsets = [0, 8], sizes = [16, 8], strides = [1, 1]} : vector<16x32xf32> to vector<16x8xf32>
    %254 = arith.addf %252, %253 : vector<16x8xf32>
    %255 = arith.truncf %254 : vector<16x8xf32> to vector<16x8xbf16>
    %c0_110 = arith.constant 0 : index
    %c0_111 = arith.constant 0 : index
    %c8_112 = arith.constant 8 : index
    %256 = vector.load %arg9[%c0_110, %c0_111, %c8_112] : memref<1x16x32xbf16, #tpu.memory_space<vmem>>, vector<1x16x8xbf16>
    %257 = vector.shape_cast %256 : vector<1x16x8xbf16> to vector<16x8xbf16>
    %258 = vector.shape_cast %255 : vector<16x8xbf16> to vector<1x16x8xbf16>
    tpu.vector_store %arg9[%c0_110, %c0_111, %c8_112], %258 {strides = array<i32>} : memref<1x16x32xbf16, #tpu.memory_space<vmem>>, vector<1x16x8xbf16>,
    %c0_113 = arith.constant 0 : index
    %c0_114 = arith.constant 0 : index
    %c16_115 = arith.constant 16 : index
    %259 = vector.load %arg3[%c0_113, %c0_114, %c16_115] : memref<1x16x32xbf16, #tpu.memory_space<vmem>>, vector<1x16x8xbf16>
    %260 = vector.shape_cast %259 : vector<1x16x8xbf16> to vector<16x8xbf16>
    %c0_116 = arith.constant 0 : index
    %c0_117 = arith.constant 0 : index
    %c0_118 = arith.constant 0 : index
    %c16_119 = arith.constant 16 : index
    %261 = vector.load %arg4[%c0_116, %c0_117, %c0_118, %c16_119] : memref<1x1x8x32xbf16, #tpu.memory_space<vmem>>, vector<1x1x8x8xbf16>
    %262 = vector.shape_cast %261 : vector<1x1x8x8xbf16> to vector<8x8xbf16>
    %cst_120 = arith.constant dense<0.000000e+00> : vector<16x8xf32>
    %263 = tpu.matmul %260, %262, %cst_120 {dimension_numbers = #tpu.dot_dimension_numbers<[1], [1], [0], [0], [0, 0, 1, 0], [], []>} : vector<16x8xbf16>, vector<8x8xbf16>, vector<16x8xf32> -> vector<16x8xf32>
    %cst_121 = arith.constant dense<0xFF800000> : vector<16xf32>
    %264 = vector.multi_reduction <maximumf>, %263, %cst_121 [1] : vector<16x8xf32> to vector<16xf32>
    %265 = vector.shape_cast %264 : vector<16xf32> to vector<16x1xf32>
    %266 = vector.broadcast %265 : vector<16x1xf32> to vector<16x8xf32>
    %267 = arith.subf %263, %266 : vector<16x8xf32>
    %268 = math.exp %267 : vector<16x8xf32>
    %cst_122 = arith.constant dense<0.000000e+00> : vector<16xf32>
    %269 = vector.multi_reduction <add>, %268, %cst_122 [1] : vector<16x8xf32> to vector<16xf32>
    %270 = vector.shape_cast %269 : vector<16xf32> to vector<16x1xf32>
    %271 = tpu.reciprocal %270 {approx = true} : vector<16x1xf32> -> vector<16x1xf32>
    %272 = vector.broadcast %271 : vector<16x1xf32> to vector<16x8xf32>
    %273 = arith.mulf %268, %272 : vector<16x8xf32>
    %274 = arith.truncf %273 : vector<16x8xf32> to vector<16x8xbf16>
    %c0_123 = arith.constant 0 : index
    %c0_124 = arith.constant 0 : index
    %c0_125 = arith.constant 0 : index
    %c16_126 = arith.constant 16 : index
    %275 = vector.load %arg5[%c0_123, %c0_124, %c0_125, %c16_126] : memref<1x1x8x32xbf16, #tpu.memory_space<vmem>>, vector<1x1x8x8xbf16>
    %276 = vector.shape_cast %275 : vector<1x1x8x8xbf16> to vector<8x8xbf16>
    %cst_127 = arith.constant dense<0.000000e+00> : vector<16x8xf32>
    %277 = tpu.matmul %274, %276, %cst_127 {dimension_numbers = #tpu.dot_dimension_numbers<[1], [0], [0], [1], [0, 0, 1, 1], [], []>} : vector<16x8xbf16>, vector<8x8xbf16>, vector<16x8xf32> -> vector<16x8xf32>
    %278 = vector.extract_strided_slice %208 {offsets = [0, 16], sizes = [16, 8], strides = [1, 1]} : vector<16x32xf32> to vector<16x8xf32>
    %279 = arith.addf %277, %278 : vector<16x8xf32>
    %280 = arith.truncf %279 : vector<16x8xf32> to vector<16x8xbf16>
    %c0_128 = arith.constant 0 : index
    %c0_129 = arith.constant 0 : index
    %c16_130 = arith.constant 16 : index
    %281 = vector.load %arg9[%c0_128, %c0_129, %c16_130] : memref<1x16x32xbf16, #tpu.memory_space<vmem>>, vector<1x16x8xbf16>
    %282 = vector.shape_cast %281 : vector<1x16x8xbf16> to vector<16x8xbf16>
    %283 = vector.shape_cast %280 : vector<16x8xbf16> to vector<1x16x8xbf16>
    tpu.vector_store %arg9[%c0_128, %c0_129, %c16_130], %283 {strides = array<i32>} : memref<1x16x32xbf16, #tpu.memory_space<vmem>>, vector<1x16x8xbf16>,
    %c0_131 = arith.constant 0 : index
    %c0_132 = arith.constant 0 : index
    %c24_133 = arith.constant 24 : index
    %284 = vector.load %arg3[%c0_131, %c0_132, %c24_133] : memref<1x16x32xbf16, #tpu.memory_space<vmem>>, vector<1x16x8xbf16>
    %285 = vector.shape_cast %284 : vector<1x16x8xbf16> to vector<16x8xbf16>
    %c0_134 = arith.constant 0 : index
    %c0_135 = arith.constant 0 : index
    %c0_136 = arith.constant 0 : index
    %c24_137 = arith.constant 24 : index
    %286 = vector.load %arg4[%c0_134, %c0_135, %c0_136, %c24_137] : memref<1x1x8x32xbf16, #tpu.memory_space<vmem>>, vector<1x1x8x8xbf16>
    %287 = vector.shape_cast %286 : vector<1x1x8x8xbf16> to vector<8x8xbf16>
    %cst_138 = arith.constant dense<0.000000e+00> : vector<16x8xf32>
    %288 = tpu.matmul %285, %287, %cst_138 {dimension_numbers = #tpu.dot_dimension_numbers<[1], [1], [0], [0], [0, 0, 1, 0], [], []>} : vector<16x8xbf16>, vector<8x8xbf16>, vector<16x8xf32> -> vector<16x8xf32>
    %cst_139 = arith.constant dense<0xFF800000> : vector<16xf32>
    %289 = vector.multi_reduction <maximumf>, %288, %cst_139 [1] : vector<16x8xf32> to vector<16xf32>
    %290 = vector.shape_cast %289 : vector<16xf32> to vector<16x1xf32>
    %291 = vector.broadcast %290 : vector<16x1xf32> to vector<16x8xf32>
    %292 = arith.subf %288, %291 : vector<16x8xf32>
    %293 = math.exp %292 : vector<16x8xf32>
    %cst_140 = arith.constant dense<0.000000e+00> : vector<16xf32>
    %294 = vector.multi_reduction <add>, %293, %cst_140 [1] : vector<16x8xf32> to vector<16xf32>
    %295 = vector.shape_cast %294 : vector<16xf32> to vector<16x1xf32>
    %296 = tpu.reciprocal %295 {approx = true} : vector<16x1xf32> -> vector<16x1xf32>
    %297 = vector.broadcast %296 : vector<16x1xf32> to vector<16x8xf32>
    %298 = arith.mulf %293, %297 : vector<16x8xf32>
    %299 = arith.truncf %298 : vector<16x8xf32> to vector<16x8xbf16>
    %c0_141 = arith.constant 0 : index
    %c0_142 = arith.constant 0 : index
    %c0_143 = arith.constant 0 : index
    %c24_144 = arith.constant 24 : index
    %300 = vector.load %arg5[%c0_141, %c0_142, %c0_143, %c24_144] : memref<1x1x8x32xbf16, #tpu.memory_space<vmem>>, vector<1x1x8x8xbf16>
    %301 = vector.shape_cast %300 : vector<1x1x8x8xbf16> to vector<8x8xbf16>
    %cst_145 = arith.constant dense<0.000000e+00> : vector<16x8xf32>
    %302 = tpu.matmul %299, %301, %cst_145 {dimension_numbers = #tpu.dot_dimension_numbers<[1], [0], [0], [1], [0, 0, 1, 1], [], []>} : vector<16x8xbf16>, vector<8x8xbf16>, vector<16x8xf32> -> vector<16x8xf32>
    %303 = vector.extract_strided_slice %208 {offsets = [0, 24], sizes = [16, 8], strides = [1, 1]} : vector<16x32xf32> to vector<16x8xf32>
    %304 = arith.addf %302, %303 : vector<16x8xf32>
    %305 = arith.truncf %304 : vector<16x8xf32> to vector<16x8xbf16>
    %c0_146 = arith.constant 0 : index
    %c0_147 = arith.constant 0 : index
    %c24_148 = arith.constant 24 : index
    %306 = vector.load %arg9[%c0_146, %c0_147, %c24_148] : memref<1x16x32xbf16, #tpu.memory_space<vmem>>, vector<1x16x8xbf16>
    %307 = vector.shape_cast %306 : vector<1x16x8xbf16> to vector<16x8xbf16>
    %308 = vector.shape_cast %305 : vector<16x8xbf16> to vector<1x16x8xbf16>
    tpu.vector_store %arg9[%c0_146, %c0_147, %c24_148], %308 {strides = array<i32>} : memref<1x16x32xbf16, #tpu.memory_space<vmem>>, vector<1x16x8xbf16>,
    return
  }
  func.func @transform_0(%arg0: i32, %arg1: i32, %arg2: i32) -> (i32, i32, i32) {
    %c0_i32 = arith.constant 0 : i32
    return %arg0, %arg2, %arg1 : i32, i32, i32
  }
  func.func @transform_1(%arg0: i32, %arg1: i32, %arg2: i32) -> (i32, i32, i32, i32) {
    %c0_i32 = arith.constant 0 : i32
    %c0_i32_0 = arith.constant 0 : i32
    %c0_i32_1 = arith.constant 0 : i32
    return %arg0, %arg1, %c0_i32, %c0_i32_0 : i32, i32, i32, i32
  }
  func.func @transform_2(%arg0: i32, %arg1: i32, %arg2: i32) -> (i32, i32, i32, i32) {
    %c0_i32 = arith.constant 0 : i32
    %c0_i32_0 = arith.constant 0 : i32
    %c0_i32_1 = arith.constant 0 : i32
    return %arg0, %arg1, %c0_i32, %c0_i32_0 : i32, i32, i32, i32
  }
  func.func @transform_3(%arg0: i32, %arg1: i32, %arg2: i32) -> (i32, i32, i32) {
    %c0_i32 = arith.constant 0 : i32
    return %arg0, %arg2, %arg1 : i32, i32, i32
  }
  func.func @transform_4(%arg0: i32, %arg1: i32, %arg2: i32) -> (i32, i32, i32, i32) {
    %c0_i32 = arith.constant 0 : i32
    %c0_i32_0 = arith.constant 0 : i32
    return %arg0, %arg2, %c0_i32, %arg1 : i32, i32, i32, i32
  }
  func.func @transform_5(%arg0: i32, %arg1: i32, %arg2: i32) -> (i32, i32, i32) {
    %c0_i32 = arith.constant 0 : i32
    %c0_i32_0 = arith.constant 0 : i32
    %c0_i32_1 = arith.constant 0 : i32
    return %arg1, %c0_i32, %c0_i32_0 : i32, i32, i32
  }
  func.func @transform_6(%arg0: i32, %arg1: i32, %arg2: i32) -> (i32, i32, i32) {
    %c0_i32 = arith.constant 0 : i32
    return %arg0, %arg2, %arg1 : i32, i32, i32
  }
}

</mosaic_0001>

<llo_original>
// kernel: nystrom_attention.6
$region0: #{nystrom_attention.6}
  #allocation0 [shape = 'u32[]', space=smem, size = 0x4, offset = 0x4, fixed_abs, tag = 'smem constant byte address 0x4 - core index']
  #allocation1 [shape = 'u32[72,128]{1,0:T(1,128)}', space=vmem, size = 0x9000, scoped, tag = 'internal scratch']
  %s0 = inlined_call_operand.vmem [shape: f32[32,32], index: 0, kind: input, shape index: {}]
  %s1 = inlined_call_operand.vmem [shape: bf16[32,96], index: 1, kind: input, shape index: {}]
  %s2 = inlined_call_operand.vmem [shape: bf16[32,32], index: 2, kind: output, shape index: {0}]
  %s3 = inlined_call_operand.vmem [shape: bf16[32,32], index: 3, kind: output, shape index: {1}]
  %s4 = inlined_call_operand.vmem [shape: bf16[32,32], index: 4, kind: output, shape index: {2}]
  %5 = xla_tuple %s2, %s3, %s4
  %s6 = sld [smem:[#allocation0]]
  $region34: #{nystrom_attention.6} parent=0
    _
  %s8 = ssub.s32 1, %s6
  %s9 = scalar_select 0, %s8, %s6
  // Predicated region
  $region2: #{nystrom_attention.6} parent=0 // pred_check
    _
  $region3: #{nystrom_attention.6} parent=0 // pred_check_branch
    %11 = sbr.rel (0) target = $region5
  $region4: #{nystrom_attention.6} parent=0 // pred_region
    _
  $region5: #{nystrom_attention.6} parent=0 // pred_fallthru
    _
  // Predicated region
  $region6: #{nystrom_attention.6} parent=0 // pred_check
    _
  $region7: #{nystrom_attention.6} parent=0 // pred_check_branch
    %13 = sbr.rel (0) target = $region9
  $region8: #{nystrom_attention.6} parent=0 // pred_region
    _
  $region9: #{nystrom_attention.6} parent=0 // pred_fallthru
    _
  %v15 = vld [vmem:[%s0] sm:$0xff]
  %v16 = vld [vmem:[%s0 + $0x8] sm:$0xff]
  %v17 = vld [vmem:[%s0 + $0x10] sm:$0xff]
  %v18 = vld [vmem:[%s0 + $0x18] sm:$0xff]
  %v19 = vpack.c.bf16 %v16, %v15
  %v20 = vpack.c.bf16 %v18, %v17
  %v21 = vld [vmem:[%s1] sm:$0xf]
  %v22 = vld [vmem:[%s1 + $0x4] sm:$0xf]
  %v23 = vld [vmem:[%s1 + $0x8] sm:$0xf]
  %v24 = vld [vmem:[%s1 + $0xc] sm:$0xf]
  %v29 = vunpack.c.l.b16 %v21
  %v30 = vunpack.c.l.b16 %v22
  %v31 = vunpack.c.l.b16 %v23
  %v32 = vunpack.c.l.b16 %v24
  %v33 = vpack.c.b16 %v30, %v29
  %v34 = vpack.c.b16 %v32, %v31
  %vm37 = vcmask 261120
  %v39 = vsel %vm37, %v19, 0
  %v42 = vsel %vm37, %v20, 0
  %44 = vmatpush.bf16.msra.mxu0 0
  %45 = vmatpush.bf16.msra.mxu0 0
  %46 = vmatpush.bf16.msra.mxu0 0
  %47 = vmatpush.bf16.msra.mxu0 0
  %48 = vmatpush.bf16.msra.mxu0 0
  %49 = vmatpush.bf16.msra.mxu0 0
  %50 = vmatpush.bf16.msra.mxu0 %v34
  %51 = vmatpush.bf16.msra.mxu0 %v33
  %52 = vmatmul.bf16.gmra.mxu0 %v39
  %v53 = vpop.f32.mrf.mxu0
  %v54 = vadd.f32 0.0, %v53
  %v55 = vpop.f32.mrf.mxu0
  %v56 = vadd.f32 0.0, %v55
  %57 = vmatmul.bf16.gmra.mxu0 %v42
  %v58 = vpop.f32.mrf.mxu0
  %v59 = vadd.f32 0.0, %v58
  %v60 = vpop.f32.mrf.mxu0
  %v61 = vadd.f32 0.0, %v60
  %62 = vdwg.mxu0
  %v63 = vpack.c.bf16 %v54, %v54
  %v64 = vpack.c.bf16 %v56, %v56
  %v65 = vpack.c.bf16 %v59, %v59
  %v66 = vpack.c.bf16 %v61, %v61
  %vm67 = vcmask 257024
  %68 = vst.msk [vmem:[%s2] sm:$0xf] %vm67, %v63
  %69 = vst.msk [vmem:[%s2 + $0x4] sm:$0xf] %vm67, %v64
  %70 = vst.msk [vmem:[%s2 + $0x8] sm:$0xf] %vm67, %v65
  %71 = vst.msk [vmem:[%s2 + $0xc] sm:$0xf] %vm67, %v66
  %76 = vrot.lane.b32.xlu0 %v63, 96
  %v77 = vpop.permute.xlu0 %76
  %78 = vrot.lane.b32.xlu0 %v64, 96
  %v79 = vpop.permute.xlu0 %78
  %80 = vrot.lane.b32.xlu0 %v65, 96
  %v81 = vpop.permute.xlu0 %80
  %82 = vrot.lane.b32.xlu0 %v66, 96
  %v83 = vpop.permute.xlu0 %82
  %88 = vst.msk [vmem:[%s3] sm:$0xf] %vm67, %v77
  %89 = vst.msk [vmem:[%s3 + $0x4] sm:$0xf] %vm67, %v79
  %90 = vst.msk [vmem:[%s3 + $0x8] sm:$0xf] %vm67, %v81
  %91 = vst.msk [vmem:[%s3 + $0xc] sm:$0xf] %vm67, %v83
  %92 = vrot.lane.b32.xlu0 %v63, 64
  %v93 = vpop.permute.xlu0 %92
  %94 = vrot.lane.b32.xlu0 %v64, 64
  %v95 = vpop.permute.xlu0 %94
  %96 = vrot.lane.b32.xlu0 %v65, 64
  %v97 = vpop.permute.xlu0 %96
  %98 = vrot.lane.b32.xlu0 %v66, 64
  %v99 = vpop.permute.xlu0 %98
  %104 = vst.msk [vmem:[%s4] sm:$0xf] %vm67, %v93
  %105 = vst.msk [vmem:[%s4 + $0x4] sm:$0xf] %vm67, %v95
  %106 = vst.msk [vmem:[%s4 + $0x8] sm:$0xf] %vm67, %v97
  %107 = vst.msk [vmem:[%s4 + $0xc] sm:$0xf] %vm67, %v99
  // Predicated region
  $region10: #{nystrom_attention.6} parent=0 // pred_check
    _
  $region11: #{nystrom_attention.6} parent=0 // pred_check_branch
    %109 = sbr.rel (0) target = $region13
  $region12: #{nystrom_attention.6} parent=0 // pred_region
    _
  $region13: #{nystrom_attention.6} parent=0 // pred_fallthru
    _
  // Predicated region
  $region14: #{nystrom_attention.6} parent=0 // pred_check
    _
  $region15: #{nystrom_attention.6} parent=0 // pred_check_branch
    %111 = sbr.rel (0) target = $region17
  $region16: #{nystrom_attention.6} parent=0 // pred_region
    _
  $region17: #{nystrom_attention.6} parent=0 // pred_fallthru
    _
  // Predicated region
  $region18: #{nystrom_attention.6} parent=0 // pred_check
    _
  $region19: #{nystrom_attention.6} parent=0 // pred_check_branch
    %113 = sbr.rel (0) target = $region21
  $region20: #{nystrom_attention.6} parent=0 // pred_region
    _
  $region21: #{nystrom_attention.6} parent=0 // pred_fallthru
    _
  // Predicated region
  $region22: #{nystrom_attention.6} parent=0 // pred_check
    _
  $region23: #{nystrom_attention.6} parent=0 // pred_check_branch
    %115 = sbr.rel (0) target = $region25
  $region24: #{nystrom_attention.6} parent=0 // pred_region
    _
  $region25: #{nystrom_attention.6} parent=0 // pred_fallthru
    _
  // Predicated region
  $region26: #{nystrom_attention.6} parent=0 // pred_check
    _
  $region27: #{nystrom_attention.6} parent=0 // pred_check_branch
    %117 = sbr.rel (0) target = $region29
  $region28: #{nystrom_attention.6} parent=0 // pred_region
    _
  $region29: #{nystrom_attention.6} parent=0 // pred_fallthru
    _
  // Predicated region
  $region30: #{nystrom_attention.6} parent=0 // pred_check
    _
  $region31: #{nystrom_attention.6} parent=0 // pred_check_branch
    %119 = sbr.rel (0) target = $region33
  $region32: #{nystrom_attention.6} parent=0 // pred_region
    _
  $region33: #{nystrom_attention.6} parent=0 // pred_fallthru
    _

// kernel: nystrom_attention.7
$region0: #{nystrom_attention.7}
  #allocation0 [shape = 'u32[]', space=smem, size = 0x4, offset = 0x4, fixed_abs, tag = 'smem constant byte address 0x4 - core index']
  #allocation1 [shape = 'u32[72,128]{1,0:T(1,128)}', space=vmem, size = 0x9000, scoped, tag = 'internal scratch']
  %s0 = inlined_call_operand.vmem [shape: bf16[2,16,32], index: 0, kind: input, shape index: {}]
  %s1 = inlined_call_operand.vmem [shape: bf16[2,16,32], index: 1, kind: input, shape index: {}]
  %s2 = inlined_call_operand.vmem [shape: bf16[8,16], index: 2, kind: input, shape index: {}]
  %s3 = inlined_call_operand.vmem [shape: bf16[2,1,8,32], index: 3, kind: output, shape index: {0}]
  %s4 = inlined_call_operand.vmem [shape: bf16[2,1,8,32], index: 4, kind: output, shape index: {1}]
  %s5 = inlined_call_operand.vmem [shape: f32[2,1,8,32], index: 5, kind: output, shape index: {2}]
  %s6 = inlined_call_operand.vmem [shape: f32[2,1,1,2], index: 6, kind: output, shape index: {3}]
  %7 = xla_tuple %s3, %s4, %s5, %s6
  %s8 = sld [smem:[#allocation0]]
  $region73: #{nystrom_attention.7} parent=0
    _
  %s10 = ssub.s32 1, %s8
  %s11 = scalar_select 0, %s10, %s8
  loop: start=0, step=1, limit=4
  $region2: #{nystrom_attention.7} parent=0 // loop_pre_header
    _
  $region3: #{nystrom_attention.7} parent=0 // loop_header
    %s13 = sphi 0, %s17
    %p14 = scmp.ge.s32.totalorder %s13, 4
    %s20 = sphi 0, %s39
    %s21 = sphi 0, %s35
    %s22 = sphi 0, %s31
    %s23 = sphi 0, %s20
    %s24 = sphi 0, %s21
    %s25 = sphi 0, %s22
    %s26 = sphi 0, %s23
    %s27 = sphi 0, %s24
    %s28 = sphi 0, %s25
    %s46 = sphi 0, %s48
    %s49 = sphi 0, %s46
    %s50 = sphi 0, %s49
    %s66 = sphi 0, %s50
    %s76 = sphi 0, %s78
    %s79 = sphi 0, %s76
    %s80 = sphi 0, %s79
    %s96 = sphi 0, %s80
    %s100 = sphi 0, %s100
    %s102 = sphi 0, %s100
    %s103 = sphi 0, %s102
    %s117 = sphi 0, %s103
    %s125 = sphi 0, %s127
    %s128 = sphi 0, %s125
    %s129 = sphi 0, %s128
    %s145 = sphi 0, %s129
    %s153 = sphi 0, %s155
    %s156 = sphi 0, %s153
    %s157 = sphi 0, %s156
    %s173 = sphi 0, %s157
    %s181 = sphi 0, %s183
    %s184 = sphi 0, %s181
    %s185 = sphi 0, %s184
    %s201 = sphi 0, %s185
    %s209 = sphi 0, %s211
    %s212 = sphi 0, %s209
    %s213 = sphi 0, %s212
    %s229 = sphi 0, %s213
  $region4: #{nystrom_attention.7} parent=0 // loop_header_branch
    %16 = sbr.rel (%p14) target = $region8
  $region5: #{nystrom_attention.7} parent=0 // loop_body
    %s18 = ssub.s32 %s13, 1
    %s19 = ssub.s32 %s13, 2
    %s29 = sadd.s32 1, %s22
    %p30 = scmp.ge.s32.totalorder %s29, 1
    %s31 = scalar_select %p30, 0, %s29
    %s32 = sadd.s32 1, %s21
    %s33 = scalar_select %p30, %s32, %s21
    %p34 = scmp.ge.s32.totalorder %s33, 1
    %s35 = scalar_select %p34, 0, %s33
    %s36 = sadd.s32 1, %s20
    %s37 = scalar_select %p34, %s36, %s20
    %p38 = scmp.ge.s32.totalorder %s37, 2
    %s39 = scalar_select %p38, 0, %s37
    %s40 = ssub.s32 %s20, %s39
    %s41 = ssub.s32 %s22, %s31
    %s42 = sor.u32 %s40, %s41
    %s43 = ssub.s32 %s21, %s35
    %s44 = sor.u32 %s42, %s43
    %p45 = scmp.eq.s32.totalorder %s44, 0
    %s47 = sadd.s32 %s46, 1
    %s48 = scalar_select %p45, %s46, %s47
    %p51 = pneg %p45
    %p52 = scmp.eq.s32.totalorder %s13, 1
    %p53 = por %p51, %p52
    %p54 = scmp.ne.s32.totalorder %s46, %s49
    %p55 = scmp.eq.s32.totalorder %s13, 0
    %p56 = por %p54, %p55
    %p57 = scmp.ne.s32.totalorder %s46, %s49
    %p58 = scmp.eq.s32.totalorder %s18, 1
    %p59 = por %p57, %p58
    %p60 = scmp.ne.s32.totalorder %s49, %s50
    %p61 = scmp.eq.s32.totalorder %s18, 0
    %p62 = por %p60, %p61
    %p63 = scmp.ne.s32.totalorder %s49, %s50
    %p64 = scmp.eq.s32.totalorder %s19, 1
    %p65 = por %p63, %p64
    %p67 = scmp.ne.s32.totalorder %s50, %s66
    %p68 = scmp.eq.s32.totalorder %s19, 0
    %p69 = por %p67, %p68
    %s70 = ssub.s32 %s20, %s39
    %s71 = ssub.s32 %s22, %s31
    %s72 = sor.u32 %s70, %s71
    %s73 = ssub.s32 %s21, %s35
    %s74 = sor.u32 %s72, %s73
    %p75 = scmp.eq.s32.totalorder %s74, 0
    %s77 = sadd.s32 %s76, 1
    %s78 = scalar_select %p75, %s76, %s77
    %p81 = pneg %p75
    %p82 = scmp.eq.s32.totalorder %s13, 1
    %p83 = por %p81, %p82
    %p84 = scmp.ne.s32.totalorder %s76, %s79
    %p85 = scmp.eq.s32.totalorder %s13, 0
    %p86 = por %p84, %p85
    %p87 = scmp.ne.s32.totalorder %s76, %s79
    %p88 = scmp.eq.s32.totalorder %s18, 1
    %p89 = por %p87, %p88
    %p90 = scmp.ne.s32.totalorder %s79, %s80
    %p91 = scmp.eq.s32.totalorder %s18, 0
    %p92 = por %p90, %p91
    %p93 = scmp.ne.s32.totalorder %s79, %s80
    %p94 = scmp.eq.s32.totalorder %s19, 1
    %p95 = por %p93, %p94
    %p97 = scmp.ne.s32.totalorder %s80, %s96
    %p98 = scmp.eq.s32.totalorder %s19, 0
    %p99 = por %p97, %p98
    %s101 = sadd.s32 %s100, 1
    %p104 = scmp.eq.s32.totalorder %s13, 1
    %p105 = scmp.ne.s32.totalorder %s100, %s102
    %p106 = scmp.eq.s32.totalorder %s13, 0
    %p107 = por %p105, %p106
    %p108 = scmp.ne.s32.totalorder %s100, %s102
    %p109 = scmp.eq.s32.totalorder %s18, 1
    %p110 = por %p108, %p109
    %p111 = scmp.ne.s32.totalorder %s102, %s103
    %p112 = scmp.eq.s32.totalorder %s18, 0
    %p113 = por %p111, %p112
    %p114 = scmp.ne.s32.totalorder %s102, %s103
    %p115 = scmp.eq.s32.totalorder %s19, 1
    %p116 = por %p114, %p115
    %p118 = scmp.ne.s32.totalorder %s103, %s117
    %p119 = scmp.eq.s32.totalorder %s19, 0
    %p120 = por %p118, %p119
    %s121 = ssub.s32 %s20, %s39
    %s122 = ssub.s32 %s21, %s35
    %s123 = sor.u32 %s121, %s122
    %p124 = scmp.eq.s32.totalorder %s123, 0
    %s126 = sadd.s32 %s125, 1
    %s127 = scalar_select %p124, %s125, %s126
    %p130 = pneg %p124
    %p131 = scmp.eq.s32.totalorder %s13, 1
    %p132 = por %p130, %p131
    %p133 = scmp.ne.s32.totalorder %s125, %s128
    %p134 = scmp.eq.s32.totalorder %s13, 0
    %p135 = por %p133, %p134
    %p136 = scmp.ne.s32.totalorder %s125, %s128
    %p137 = scmp.eq.s32.totalorder %s18, 1
    %p138 = por %p136, %p137
    %p139 = scmp.ne.s32.totalorder %s128, %s129
    %p140 = scmp.eq.s32.totalorder %s18, 0
    %p141 = por %p139, %p140
    %p142 = scmp.ne.s32.totalorder %s128, %s129
    %p143 = scmp.eq.s32.totalorder %s19, 1
    %p144 = por %p142, %p143
    %p146 = scmp.ne.s32.totalorder %s129, %s145
    %p147 = scmp.eq.s32.totalorder %s19, 0
    %p148 = por %p146, %p147
    %s149 = ssub.s32 %s20, %s39
    %s150 = ssub.s32 %s21, %s35
    %s151 = sor.u32 %s149, %s150
    %p152 = scmp.eq.s32.totalorder %s151, 0
    %s154 = sadd.s32 %s153, 1
    %s155 = scalar_select %p152, %s153, %s154
    %p158 = pneg %p152
    %p159 = scmp.eq.s32.totalorder %s13, 1
    %p160 = por %p158, %p159
    %p161 = scmp.ne.s32.totalorder %s153, %s156
    %p162 = scmp.eq.s32.totalorder %s13, 0
    %p163 = por %p161, %p162
    %p164 = scmp.ne.s32.totalorder %s153, %s156
    %p165 = scmp.eq.s32.totalorder %s18, 1
    %p166 = por %p164, %p165
    %p167 = scmp.ne.s32.totalorder %s156, %s157
    %p168 = scmp.eq.s32.totalorder %s18, 0
    %p169 = por %p167, %p168
    %p170 = scmp.ne.s32.totalorder %s156, %s157
    %p171 = scmp.eq.s32.totalorder %s19, 1
    %p172 = por %p170, %p171
    %p174 = scmp.ne.s32.totalorder %s157, %s173
    %p175 = scmp.eq.s32.totalorder %s19, 0
    %p176 = por %p174, %p175
    %s177 = ssub.s32 %s20, %s39
    %s178 = ssub.s32 %s21, %s35
    %s179 = sor.u32 %s177, %s178
    %p180 = scmp.eq.s32.totalorder %s179, 0
    %s182 = sadd.s32 %s181, 1
    %s183 = scalar_select %p180, %s181, %s182
    %p186 = pneg %p180
    %p187 = scmp.eq.s32.totalorder %s13, 1
    %p188 = por %p186, %p187
    %p189 = scmp.ne.s32.totalorder %s181, %s184
    %p190 = scmp.eq.s32.totalorder %s13, 0
    %p191 = por %p189, %p190
    %p192 = scmp.ne.s32.totalorder %s181, %s184
    %p193 = scmp.eq.s32.totalorder %s18, 1
    %p194 = por %p192, %p193
    %p195 = scmp.ne.s32.totalorder %s184, %s185
    %p196 = scmp.eq.s32.totalorder %s18, 0
    %p197 = por %p195, %p196
    %p198 = scmp.ne.s32.totalorder %s184, %s185
    %p199 = scmp.eq.s32.totalorder %s19, 1
    %p200 = por %p198, %p199
    %p202 = scmp.ne.s32.totalorder %s185, %s201
    %p203 = scmp.eq.s32.totalorder %s19, 0
    %p204 = por %p202, %p203
    %s205 = ssub.s32 %s20, %s39
    %s206 = ssub.s32 %s21, %s35
    %s207 = sor.u32 %s205, %s206
    %p208 = scmp.eq.s32.totalorder %s207, 0
    %s210 = sadd.s32 %s209, 1
    %s211 = scalar_select %p208, %s209, %s210
    %p214 = pneg %p208
    %p215 = scmp.eq.s32.totalorder %s13, 1
    %p216 = por %p214, %p215
    %p217 = scmp.ne.s32.totalorder %s209, %s212
    %p218 = scmp.eq.s32.totalorder %s13, 0
    %p219 = por %p217, %p218
    %p220 = scmp.ne.s32.totalorder %s209, %s212
    %p221 = scmp.eq.s32.totalorder %s18, 1
    %p222 = por %p220, %p221
    %p223 = scmp.ne.s32.totalorder %s212, %s213
    %p224 = scmp.eq.s32.totalorder %s18, 0
    %p225 = por %p223, %p224
    %p226 = scmp.ne.s32.totalorder %s212, %s213
    %p227 = scmp.eq.s32.totalorder %s19, 1
    %p228 = por %p226, %p227
    %p230 = scmp.ne.s32.totalorder %s213, %s229
    %p231 = scmp.eq.s32.totalorder %s19, 0
    %p232 = por %p230, %p231
    %p233 = scmp.le.s32.totalorder 1, %s13
    %p234 = scmp.lt.s32.totalorder %s13, 3
    %p235 = pnand %p233, %p234
    %p236 = pneg %p235
    // Predicated region
    $region9: #{nystrom_attention.7} parent=5 // pred_check
      _
    $region10: #{nystrom_attention.7} parent=5 // pred_check_branch
      %238 = sbr.rel (%p235) target = $region12
    $region11: #{nystrom_attention.7} parent=5 // pred_region
      %s239 = ssub.s32 %s13, 1
      // Predicated region
      $region13: #{nystrom_attention.7} parent=11 // pred_check
        %p240 = pneg %p113
      $region14: #{nystrom_attention.7} parent=11 // pred_check_branch
        %242 = sbr.rel (%p240) target = $region16
      $region15: #{nystrom_attention.7} parent=11 // pred_region
        _
      $region16: #{nystrom_attention.7} parent=11 // pred_fallthru
        _
    $region12: #{nystrom_attention.7} parent=5 // pred_fallthru
      _
    %p243 = scmp.lt.s32.totalorder %s13, 2
    // Predicated region
    $region17: #{nystrom_attention.7} parent=5 // pred_check
      %p244 = pneg %p243
    $region18: #{nystrom_attention.7} parent=5 // pred_check_branch
      %246 = sbr.rel (%p244) target = $region20
    $region19: #{nystrom_attention.7} parent=5 // pred_region
      // Predicated region
      $region21: #{nystrom_attention.7} parent=19 // pred_check
        %p247 = pneg %p56
      $region22: #{nystrom_attention.7} parent=19 // pred_check_branch
        %249 = sbr.rel (%p247) target = $region24
      $region23: #{nystrom_attention.7} parent=19 // pred_region
        %s250 = smul.u32 2, %s22
        %p251 = scmp.lt.s32.totalorder %s20, 1
        %s252 = scalar_select %p251, %s20, 1
        %p253 = scmp.lt.s32.totalorder %s250, 1
        %s254 = scalar_select %p253, %s250, 1
        %p255 = scmp.lt.s32.totalorder %s21, 0
        %s256 = scalar_select %p255, %s21, 0
        %s257 = sadd.s32 %s256, %s254
        %s258 = smul.addr %s252, 2
        %s259 = sadd.s32 %s257, %s258
        %s260 = smul.addr %s259, 4
        %s261 = scalar_lea.vmem %s0, %s260
        %s262 = smul.u32 2, %s22
      $region24: #{nystrom_attention.7} parent=19 // pred_fallthru
        _
      // Predicated region
      $region25: #{nystrom_attention.7} parent=19 // pred_check
        %p263 = pneg %p86
      $region26: #{nystrom_attention.7} parent=19 // pred_check_branch
        %265 = sbr.rel (%p263) target = $region28
      $region27: #{nystrom_attention.7} parent=19 // pred_region
        %s266 = smul.u32 2, %s22
        %p267 = scmp.lt.s32.totalorder %s20, 1
        %s268 = scalar_select %p267, %s20, 1
        %p269 = scmp.lt.s32.totalorder %s266, 1
        %s270 = scalar_select %p269, %s266, 1
        %p271 = scmp.lt.s32.totalorder %s21, 0
        %s272 = scalar_select %p271, %s21, 0
        %s273 = sadd.s32 %s272, %s270
        %s274 = smul.addr %s268, 2
        %s275 = sadd.s32 %s273, %s274
        %s276 = smul.addr %s275, 4
        %s277 = scalar_lea.vmem %s1, %s276
        %s278 = smul.u32 2, %s22
      $region28: #{nystrom_attention.7} parent=19 // pred_fallthru
        _
    $region20: #{nystrom_attention.7} parent=5 // pred_fallthru
      _
    %p279 = scmp.le.s32.totalorder 1, %s13
    %p280 = scmp.lt.s32.totalorder %s13, 3
    %p281 = pnand %p279, %p280
    %p282 = pneg %p281
    // Predicated region
    $region29: #{nystrom_attention.7} parent=5 // pred_check
      _
    $region30: #{nystrom_attention.7} parent=5 // pred_check_branch
      %284 = sbr.rel (%p281) target = $region32
    $region31: #{nystrom_attention.7} parent=5 // pred_region
      %s285 = ssub.s32 %s13, 1
      %s286 = smul.u32 2, %s25
      %p287 = scmp.lt.s32.totalorder %s23, 1
      %s288 = scalar_select %p287, %s23, 1
      %p289 = scmp.lt.s32.totalorder %s286, 1
      %s290 = scalar_select %p289, %s286, 1
      %p291 = scmp.lt.s32.totalorder %s24, 0
      %s292 = scalar_select %p291, %s24, 0
      %s293 = sadd.s32 %s292, %s290
      %s294 = smul.addr %s288, 2
      %s295 = sadd.s32 %s293, %s294
      %s296 = smul.addr %s295, 4
      %s297 = scalar_lea.vmem %s0, %s296
      %p298 = pneg %p62
      %p299 = pneg %p59
      %s300 = smul.u32 2, %s25
      %p301 = scmp.lt.s32.totalorder %s23, 1
      %s302 = scalar_select %p301, %s23, 1
      %p303 = scmp.lt.s32.totalorder %s300, 1
      %s304 = scalar_select %p303, %s300, 1
      %p305 = scmp.lt.s32.totalorder %s24, 0
      %s306 = scalar_select %p305, %s24, 0
      %s307 = sadd.s32 %s306, %s304
      %s308 = smul.addr %s302, 2
      %s309 = sadd.s32 %s307, %s308
      %s310 = smul.addr %s309, 4
      %s311 = scalar_lea.vmem %s1, %s310
      %p312 = pneg %p92
      %p313 = pneg %p89
      %p314 = pneg %p113
      %p315 = pneg %p110
      %p316 = pneg %p141
      %p317 = pneg %p138
      %p318 = scmp.lt.s32.totalorder %s23, 1
      %s319 = scalar_select %p318, %s23, 1
      %p320 = scmp.lt.s32.totalorder %s24, 0
      %s321 = scalar_select %p320, %s24, 0
      %s322 = sadd.s32 %s321, %s319
      %s323 = smul.addr %s322, 4
      %s324 = scalar_lea.vmem %s3, %s323
      %p325 = pneg %p169
      %p326 = pneg %p166
      %p327 = scmp.lt.s32.totalorder %s23, 1
      %s328 = scalar_select %p327, %s23, 1
      %p329 = scmp.lt.s32.totalorder %s24, 0
      %s330 = scalar_select %p329, %s24, 0
      %s331 = sadd.s32 %s330, %s328
      %s332 = smul.addr %s331, 4
      %s333 = scalar_lea.vmem %s4, %s332
      %p334 = pneg %p197
      %p335 = pneg %p194
      %p336 = scmp.lt.s32.totalorder %s23, 1
      %s337 = scalar_select %p336, %s23, 1
      %p338 = scmp.lt.s32.totalorder %s24, 0
      %s339 = scalar_select %p338, %s24, 0
      %s340 = sadd.s32 %s339, %s337
      %s341 = smul.addr %s340, 8
      %s342 = scalar_lea.vmem %s5, %s341
      %p343 = pneg %p225
      %p344 = pneg %p222
      %p345 = scmp.lt.s32.totalorder %s23, 1
      %s346 = scalar_select %p345, %s23, 1
      %p347 = scmp.lt.s32.totalorder %s24, 0
      %s348 = scalar_select %p347, %s24, 0
      %s349 = sadd.s32 %s348, %s346
      %s350 = scalar_lea.vmem %s6, %s349
      %s351 = smul.u32 2, %s25
      %p352 = scmp.lt.s32.totalorder %s23, 1
      %s353 = scalar_select %p352, %s23, 1
      %p354 = scmp.lt.s32.totalorder %s351, 1
      %s355 = scalar_select %p354, %s351, 1
      %p356 = scmp.lt.s32.totalorder %s24, 0
      %s357 = scalar_select %p356, %s24, 0
      %s358 = sadd.s32 %s357, %s355
      %s359 = smul.addr %s353, 2
      %s360 = sadd.s32 %s358, %s359
      %s361 = smul.addr %s360, 4
      %s362 = scalar_lea.vmem %s0, %s361
      %s363 = smul.u32 2, %s25
      %s364 = smul.u32 2, %s25
      %p365 = scmp.lt.s32.totalorder %s23, 1
      %s366 = scalar_select %p365, %s23, 1
      %p367 = scmp.lt.s32.totalorder %s364, 1
      %s368 = scalar_select %p367, %s364, 1
      %p369 = scmp.lt.s32.totalorder %s24, 0
      %s370 = scalar_select %p369, %s24, 0
      %s371 = sadd.s32 %s370, %s368
      %s372 = smul.addr %s366, 2
      %s373 = sadd.s32 %s371, %s372
      %s374 = smul.addr %s373, 4
      %s375 = scalar_lea.vmem %s1, %s374
      %s376 = smul.u32 2, %s25
      %p377 = scmp.lt.s32.totalorder %s23, 1
      %s378 = scalar_select %p377, %s23, 1
      %p379 = scmp.lt.s32.totalorder %s24, 0
      %s380 = scalar_select %p379, %s24, 0
      %s381 = sadd.s32 %s380, %s378
      %s382 = smul.addr %s381, 4
      %s383 = scalar_lea.vmem %s3, %s382
      %p384 = scmp.lt.s32.totalorder %s23, 1
      %s385 = scalar_select %p384, %s23, 1
      %p386 = scmp.lt.s32.totalorder %s24, 0
      %s387 = scalar_select %p386, %s24, 0
      %s388 = sadd.s32 %s387, %s385
      %s389 = smul.addr %s388, 4
      %s390 = scalar_lea.vmem %s4, %s389
      %p391 = scmp.lt.s32.totalorder %s23, 1
      %s392 = scalar_select %p391, %s23, 1
      %p393 = scmp.lt.s32.totalorder %s24, 0
      %s394 = scalar_select %p393, %s24, 0
      %s395 = sadd.s32 %s394, %s392
      %s396 = smul.addr %s395, 8
      %s397 = scalar_lea.vmem %s5, %s396
      %p398 = scmp.lt.s32.totalorder %s23, 1
      %s399 = scalar_select %p398, %s23, 1
      %p400 = scmp.lt.s32.totalorder %s24, 0
      %s401 = scalar_select %p400, %s24, 0
      %s402 = sadd.s32 %s401, %s399
      %s403 = scalar_lea.vmem %s6, %s402
      %v405 = vld [vmem:[%s2] sm:$0xf]
      %v406 = vld [vmem:[%s362] sm:$0xf]
      %v407 = vld [vmem:[%s362 + $0x4] sm:$0xf]
      %v410 = vunpack.c.l.b16 %v406
      %v411 = vunpack.c.l.b16 %v407
      %v412 = vpack.c.b16 %v411, %v410
      %vm414 = vcmask 130048
      %v416 = vsel %vm414, %v405, 0
      %418 = vmatpush.bf16.msra.mxu0 0
      %419 = vmatpush.bf16.msra.mxu0 0
      %420 = vmatpush.bf16.msra.mxu0 0
      %421 = vmatpush.bf16.msra.mxu0 0
      %422 = vmatpush.bf16.msra.mxu0 0
      %423 = vmatpush.bf16.msra.mxu0 0
      %424 = vmatpush.bf16.msra.mxu0 0
      %425 = vmatpush.bf16.msra.mxu0 %v412
      %426 = vmatmul.bf16.gmra.mxu0 %v416
      %v427 = vpop.f32.mrf.mxu0
      %v428 = vadd.f32 0.0, %v427
      %v429 = vpop.f32.mrf.mxu0
      %430 = vdwg.mxu0
      %v431 = vmul.f32 %v428, 0.5
      %v432 = vld [vmem:[%s375] sm:$0xf]
      %v433 = vld [vmem:[%s375 + $0x4] sm:$0xf]
      %v436 = vunpack.c.l.b16 %v432
      %v437 = vunpack.c.l.b16 %v433
      %v438 = vpack.c.b16 %v437, %v436
      %440 = vmatpush.bf16.msra.mxu0 0
      %441 = vmatpush.bf16.msra.mxu0 0
      %442 = vmatpush.bf16.msra.mxu0 0
      %443 = vmatpush.bf16.msra.mxu0 0
      %444 = vmatpush.bf16.msra.mxu0 0
      %445 = vmatpush.bf16.msra.mxu0 0
      %446 = vmatpush.bf16.msra.mxu0 0
      %447 = vmatpush.bf16.msra.mxu0 %v438
      %448 = vmatmul.bf16.gmra.mxu0 %v416
      %v449 = vpop.f32.mrf.mxu0
      %v450 = vadd.f32 0.0, %v449
      %v451 = vpop.f32.mrf.mxu0
      %452 = vdwg.mxu0
      %v453 = vmul.f32 %v450, 0.5
      %s454 = smul.u32 %s25, 8
      %v455 = vpack.c.bf16 %v431, %v431
      %s456 = sshra.s32 %s454, 3
      %s457 = sand.u32 %s454, 7
      %s458 = smul.addr %s456, 4
      %s459 = scalar_lea.vmem %s383, %s458
      %vm460 = vcmask 257024
      %461 = vst.msk [vmem:[%s459] sm:$0xf] %vm460, %v455
      %v462 = vpack.c.bf16 %v453, %v453
      %s463 = smul.addr %s456, 4
      %s464 = scalar_lea.vmem %s390, %s463
      %465 = vst.msk [vmem:[%s464] sm:$0xf] %vm460, %v462
      %p466 = scmp.eq.s32.totalorder %s25, 0
      // Predicated region
      $region33: #{nystrom_attention.7} parent=31 // pred_check
        %p467 = pneg %p466
      $region34: #{nystrom_attention.7} parent=31 // pred_check_branch
        %469 = sbr.rel (%p467) target = $region36
      $region35: #{nystrom_attention.7} parent=31 // pred_region
        %v470 = vld [vmem:[%s383] sm:$0xf]
        %v471 = vld [vmem:[%s390] sm:$0xf]
        %vm472 = vcmask 64512
        %v474 = vsel %vm472, %v470, 0
        %v477 = vsel %vm472, %v471, 0
        %479 = vmatpush.bf16.xpose.msra.mxu0 0
        %480 = vmatpush.bf16.xpose.msra.mxu0 0
        %481 = vmatpush.bf16.xpose.msra.mxu0 0
        %482 = vmatpush.bf16.xpose.msra.mxu0 0
        %483 = vmatpush.bf16.xpose.msra.mxu0 0
        %484 = vmatpush.bf16.xpose.msra.mxu0 0
        %485 = vmatpush.bf16.xpose.msra.mxu0 0
        %486 = vmatpush.bf16.xpose.msra.mxu0 %v477
        %487 = vmatmul.bf16.gmra.mxu0 %v474
        %v488 = vpop.f32.mrf.mxu0
        %v489 = vadd.f32 0.0, %v488
        %v490 = vpop.f32.mrf.mxu0
        %491 = vdwg.mxu0
        %v492 = vsel %vm472, %v489, -inf
        %493 = vmax.xlane.f32.xlu0 %v492
        %v494 = vpop.xlane.xlu0 %493
        %v495 = vsub.f32 %v489, %v494
        %v496 = vmul.f32 %v495, 1.442695
        %v497 = vpow.pop %v496
        %v498 = vsel %vm472, %v497, 0.0
        %499 = vadd.xlane.f32.xlu0 %v498
        %v500 = vpop.xlane.xlu0 %499
        %v501 = vrcp.pop %v500
        %v502 = vmul.f32 %v497, %v501
        %503 = vst.msk [vmem:[%s397] sm:$0xff] %vm472, %v502
        %v504 = vsel %vm472, %v502, 0.0
        %505 = vadd.xlane.f32.xlu0 %v504
        %v506 = vpop.xlane.xlu0 %505
        %v507 = vrot.slane %v506, 4
        %v508 = vmax.f32 %v506, %v507
        %v509 = vrot.slane %v508, 2
        %v510 = vmax.f32 %v508, %v509
        %v511 = vrot.slane %v510, 1
        %v512 = vmax.f32 %v510, %v511
        %v513 = vrot.slane %v504, 4
        %v514 = vadd.f32 %v504, %v513
        %v515 = vrot.slane %v514, 2
        %v516 = vadd.f32 %v514, %v515
        %v517 = vrot.slane %v516, 1
        %v518 = vadd.f32 %v516, %v517
        %v519 = vsel %vm472, %v518, -inf
        %520 = vmax.xlane.f32.xlu0 %v519
        %v521 = vpop.xlane.xlu0 %520
        %v522 = vld [vmem:[%s383] sm:$0xf]
        %v523 = vld [vmem:[%s390] sm:$0xf]
        %v525 = vunpack.c.l.b16 %v522
        %v526 = vpack.c.b16 %v525, %v525
        %527 = vrot.lane.b32.xlu0 %v526, 120
        %v528 = vpop.permute.xlu0 %527
        %v530 = vunpack.c.l.b16 %v523
        %v531 = vpack.c.b16 %v530, %v530
        %532 = vrot.lane.b32.xlu0 %v531, 120
        %v533 = vpop.permute.xlu0 %532
        %v535 = vsel %vm472, %v528, 0
        %v538 = vsel %vm472, %v533, 0
        %540 = vmatpush.bf16.xpose.msra.mxu0 0
        %541 = vmatpush.bf16.xpose.msra.mxu0 0
        %542 = vmatpush.bf16.xpose.msra.mxu0 0
        %543 = vmatpush.bf16.xpose.msra.mxu0 0
        %544 = vmatpush.bf16.xpose.msra.mxu0 0
        %545 = vmatpush.bf16.xpose.msra.mxu0 0
        %546 = vmatpush.bf16.xpose.msra.mxu0 0
        %547 = vmatpush.bf16.xpose.msra.mxu0 %v538
        %548 = vmatmul.bf16.gmra.mxu0 %v535
        %v549 = vpop.f32.mrf.mxu0
        %v550 = vadd.f32 0.0, %v549
        %v551 = vpop.f32.mrf.mxu0
        %552 = vdwg.mxu0
        %v553 = vsel %vm472, %v550, -inf
        %554 = vmax.xlane.f32.xlu0 %v553
        %v555 = vpop.xlane.xlu0 %554
        %v556 = vsub.f32 %v550, %v555
        %v557 = vmul.f32 %v556, 1.442695
        %v558 = vpow.pop %v557
        %v559 = vsel %vm472, %v558, 0.0
        %560 = vadd.xlane.f32.xlu0 %v559
        %v561 = vpop.xlane.xlu0 %560
        %v562 = vrcp.pop %v561
        %v563 = vmul.f32 %v558, %v562
        %565 = vrot.lane.b32.xlu0 %v563, 8
        %v566 = vpop.permute.xlu0 %565
        %vm568 = vcmask 130112
        %569 = vst.msk [vmem:[%s397] sm:$0xff] %vm568, %v566
        %v570 = vsel %vm472, %v563, 0.0
        %571 = vadd.xlane.f32.xlu0 %v570
        %v572 = vpop.xlane.xlu0 %571
        %v573 = vrot.slane %v572, 4
        %v574 = vmax.f32 %v572, %v573
        %v575 = vrot.slane %v574, 2
        %v576 = vmax.f32 %v574, %v575
        %v577 = vrot.slane %v576, 1
        %v578 = vmax.f32 %v576, %v577
        %v579 = vrot.slane %v570, 4
        %v580 = vadd.f32 %v570, %v579
        %v581 = vrot.slane %v580, 2
        %v582 = vadd.f32 %v580, %v581
        %v583 = vrot.slane %v582, 1
        %v584 = vadd.f32 %v582, %v583
        %v585 = vsel %vm472, %v584, -inf
        %586 = vmax.xlane.f32.xlu0 %v585
        %v587 = vpop.xlane.xlu0 %586
        %v588 = vmax.f32 %v512, %v578
        %v589 = vmax.f32 %v521, %v587
        %v590 = vld [vmem:[%s383] sm:$0xf]
        %v591 = vld [vmem:[%s390] sm:$0xf]
        %v593 = vunpack.c.l.b16 %v590
        %v594 = vpack.c.b16 %v593, %v593
        %595 = vrot.lane.b32.xlu0 %v594, 112
        %v596 = vpop.permute.xlu0 %595
        %v598 = vunpack.c.l.b16 %v591
        %v599 = vpack.c.b16 %v598, %v598
        %600 = vrot.lane.b32.xlu0 %v599, 112
        %v601 = vpop.permute.xlu0 %600
        %v603 = vsel %vm472, %v596, 0
        %v606 = vsel %vm472, %v601, 0
        %608 = vmatpush.bf16.xpose.msra.mxu0 0
        %609 = vmatpush.bf16.xpose.msra.mxu0 0
        %610 = vmatpush.bf16.xpose.msra.mxu0 0
        %611 = vmatpush.bf16.xpose.msra.mxu0 0
        %612 = vmatpush.bf16.xpose.msra.mxu0 0
        %613 = vmatpush.bf16.xpose.msra.mxu0 0
        %614 = vmatpush.bf16.xpose.msra.mxu0 0
        %615 = vmatpush.bf16.xpose.msra.mxu0 %v606
        %616 = vmatmul.bf16.gmra.mxu0 %v603
        %v617 = vpop.f32.mrf.mxu0
        %v618 = vadd.f32 0.0, %v617
        %v619 = vpop.f32.mrf.mxu0
        %620 = vdwg.mxu0
        %v621 = vsel %vm472, %v618, -inf
        %622 = vmax.xlane.f32.xlu0 %v621
        %v623 = vpop.xlane.xlu0 %622
        %v624 = vsub.f32 %v618, %v623
        %v625 = vmul.f32 %v624, 1.442695
        %v626 = vpow.pop %v625
        %v627 = vsel %vm472, %v626, 0.0
        %628 = vadd.xlane.f32.xlu0 %v627
        %v629 = vpop.xlane.xlu0 %628
        %v630 = vrcp.pop %v629
        %v631 = vmul.f32 %v626, %v630
        %633 = vrot.lane.b32.xlu0 %v631, 16
        %v634 = vpop.permute.xlu0 %633
        %vm636 = vcmask 195712
        %637 = vst.msk [vmem:[%s397] sm:$0xff] %vm636, %v634
        %v638 = vsel %vm472, %v631, 0.0
        %639 = vadd.xlane.f32.xlu0 %v638
        %v640 = vpop.xlane.xlu0 %639
        %v641 = vrot.slane %v640, 4
        %v642 = vmax.f32 %v640, %v641
        %v643 = vrot.slane %v642, 2
        %v644 = vmax.f32 %v642, %v643
        %v645 = vrot.slane %v644, 1
        %v646 = vmax.f32 %v644, %v645
        %v647 = vrot.slane %v638, 4
        %v648 = vadd.f32 %v638, %v647
        %v649 = vrot.slane %v648, 2
        %v650 = vadd.f32 %v648, %v649
        %v651 = vrot.slane %v650, 1
        %v652 = vadd.f32 %v650, %v651
        %v653 = vsel %vm472, %v652, -inf
        %654 = vmax.xlane.f32.xlu0 %v653
        %v655 = vpop.xlane.xlu0 %654
        %v656 = vmax.f32 %v588, %v646
        %v657 = vmax.f32 %v589, %v655
        %v658 = vld [vmem:[%s383] sm:$0xf]
        %v659 = vld [vmem:[%s390] sm:$0xf]
        %v661 = vunpack.c.l.b16 %v658
        %v662 = vpack.c.b16 %v661, %v661
        %663 = vrot.lane.b32.xlu0 %v662, 104
        %v664 = vpop.permute.xlu0 %663
        %v666 = vunpack.c.l.b16 %v659
        %v667 = vpack.c.b16 %v666, %v666
        %668 = vrot.lane.b32.xlu0 %v667, 104
        %v669 = vpop.permute.xlu0 %668
        %v671 = vsel %vm472, %v664, 0
        %v674 = vsel %vm472, %v669, 0
        %676 = vmatpush.bf16.xpose.msra.mxu0 0
        %677 = vmatpush.bf16.xpose.msra.mxu0 0
        %678 = vmatpush.bf16.xpose.msra.mxu0 0
        %679 = vmatpush.bf16.xpose.msra.mxu0 0
        %680 = vmatpush.bf16.xpose.msra.mxu0 0
        %681 = vmatpush.bf16.xpose.msra.mxu0 0
        %682 = vmatpush.bf16.xpose.msra.mxu0 0
        %683 = vmatpush.bf16.xpose.msra.mxu0 %v674
        %684 = vmatmul.bf16.gmra.mxu0 %v671
        %v685 = vpop.f32.mrf.mxu0
        %v686 = vadd.f32 0.0, %v685
        %v687 = vpop.f32.mrf.mxu0
        %688 = vdwg.mxu0
        %v689 = vsel %vm472, %v686, -inf
        %690 = vmax.xlane.f32.xlu0 %v689
        %v691 = vpop.xlane.xlu0 %690
        %v692 = vsub.f32 %v686, %v691
        %v693 = vmul.f32 %v692, 1.442695
        %v694 = vpow.pop %v693
        %v695 = vsel %vm472, %v694, 0.0
        %696 = vadd.xlane.f32.xlu0 %v695
        %v697 = vpop.xlane.xlu0 %696
        %v698 = vrcp.pop %v697
        %v699 = vmul.f32 %v694, %v698
        %701 = vrot.lane.b32.xlu0 %v699, 24
        %v702 = vpop.permute.xlu0 %701
        %vm704 = vcmask 261312
        %705 = vst.msk [vmem:[%s397] sm:$0xff] %vm704, %v702
        %v706 = vsel %vm472, %v699, 0.0
        %707 = vadd.xlane.f32.xlu0 %v706
        %v708 = vpop.xlane.xlu0 %707
        %v709 = vrot.slane %v708, 4
        %v710 = vmax.f32 %v708, %v709
        %v711 = vrot.slane %v710, 2
        %v712 = vmax.f32 %v710, %v711
        %v713 = vrot.slane %v712, 1
        %v714 = vmax.f32 %v712, %v713
        %v715 = vrot.slane %v706, 4
        %v716 = vadd.f32 %v706, %v715
        %v717 = vrot.slane %v716, 2
        %v718 = vadd.f32 %v716, %v717
        %v719 = vrot.slane %v718, 1
        %v720 = vadd.f32 %v718, %v719
        %v721 = vsel %vm472, %v720, -inf
        %722 = vmax.xlane.f32.xlu0 %v721
        %v723 = vpop.xlane.xlu0 %722
        %v724 = vmax.f32 %v656, %v714
        %v725 = vmax.f32 %v657, %v723
        %vm726 = vcmask 7168
        %v727 = vsel %vm726, %v724, %v725
        %vm728 = vcmask 8192
        %729 = vst.msk [vmem:[%s403] sm:$0x1] %vm728, %v727
      $region36: #{nystrom_attention.7} parent=31 // pred_fallthru
        _
      %p730 = scmp.lt.s32.totalorder %s23, 1
      %s731 = scalar_select %p730, %s23, 1
      %p732 = scmp.lt.s32.totalorder %s24, 0
      %s733 = scalar_select %p732, %s24, 0
      %s734 = sadd.s32 %s733, %s731
      %s735 = smul.addr %s734, 4
      %s736 = scalar_lea.vmem %s3, %s735
      %p737 = scmp.lt.s32.totalorder %s23, 1
      %s738 = scalar_select %p737, %s23, 1
      %p739 = scmp.lt.s32.totalorder %s24, 0
      %s740 = scalar_select %p739, %s24, 0
      %s741 = sadd.s32 %s740, %s738
      %s742 = smul.addr %s741, 4
      %s743 = scalar_lea.vmem %s4, %s742
      %p744 = scmp.lt.s32.totalorder %s23, 1
      %s745 = scalar_select %p744, %s23, 1
      %p746 = scmp.lt.s32.totalorder %s24, 0
      %s747 = scalar_select %p746, %s24, 0
      %s748 = sadd.s32 %s747, %s745
      %s749 = smul.addr %s748, 8
      %s750 = scalar_lea.vmem %s5, %s749
      %p751 = scmp.lt.s32.totalorder %s23, 1
      %s752 = scalar_select %p751, %s23, 1
      %p753 = scmp.lt.s32.totalorder %s24, 0
      %s754 = scalar_select %p753, %s24, 0
      %s755 = sadd.s32 %s754, %s752
      %s756 = scalar_lea.vmem %s6, %s755
      // Predicated region
      $region37: #{nystrom_attention.7} parent=31 // pred_check
        %p757 = pneg %p138
      $region38: #{nystrom_attention.7} parent=31 // pred_check_branch
        %759 = sbr.rel (%p757) target = $region40
      $region39: #{nystrom_attention.7} parent=31 // pred_region
        _
      $region40: #{nystrom_attention.7} parent=31 // pred_fallthru
        _
      // Predicated region
      $region41: #{nystrom_attention.7} parent=31 // pred_check
        %p760 = pneg %p166
      $region42: #{nystrom_attention.7} parent=31 // pred_check_branch
        %762 = sbr.rel (%p760) target = $region44
      $region43: #{nystrom_attention.7} parent=31 // pred_region
        _
      $region44: #{nystrom_attention.7} parent=31 // pred_fallthru
        _
      // Predicated region
      $region45: #{nystrom_attention.7} parent=31 // pred_check
        %p763 = pneg %p194
      $region46: #{nystrom_attention.7} parent=31 // pred_check_branch
        %765 = sbr.rel (%p763) target = $region48
      $region47: #{nystrom_attention.7} parent=31 // pred_region
        _
      $region48: #{nystrom_attention.7} parent=31 // pred_fallthru
        _
      // Predicated region
      $region49: #{nystrom_attention.7} parent=31 // pred_check
        %p766 = pneg %p222
      $region50: #{nystrom_attention.7} parent=31 // pred_check_branch
        %768 = sbr.rel (%p766) target = $region52
      $region51: #{nystrom_attention.7} parent=31 // pred_region
        _
      $region52: #{nystrom_attention.7} parent=31 // pred_fallthru
        _
    $region32: #{nystrom_attention.7} parent=5 // pred_fallthru
      _
    %p769 = scmp.le.s32.totalorder 2, %s13
    // Predicated region
    $region53: #{nystrom_attention.7} parent=5 // pred_check
      %p770 = pneg %p769
    $region54: #{nystrom_attention.7} parent=5 // pred_check_branch
      %772 = sbr.rel (%p770) target = $region56
    $region55: #{nystrom_attention.7} parent=5 // pred_region
      %s773 = ssub.s32 %s13, 2
      // Predicated region
      $region57: #{nystrom_attention.7} parent=55 // pred_check
        %p774 = pneg %p144
      $region58: #{nystrom_attention.7} parent=55 // pred_check_branch
        %776 = sbr.rel (%p774) target = $region60
      $region59: #{nystrom_attention.7} parent=55 // pred_region
        %p777 = scmp.lt.s32.totalorder %s26, 1
        %s778 = scalar_select %p777, %s26, 1
        %p779 = scmp.lt.s32.totalorder %s27, 0
        %s780 = scalar_select %p779, %s27, 0
        %s781 = sadd.s32 %s780, %s778
        %s782 = smul.addr %s781, 4
        %s783 = scalar_lea.vmem %s3, %s782
      $region60: #{nystrom_attention.7} parent=55 // pred_fallthru
        _
      // Predicated region
      $region61: #{nystrom_attention.7} parent=55 // pred_check
        %p784 = pneg %p172
      $region62: #{nystrom_attention.7} parent=55 // pred_check_branch
        %786 = sbr.rel (%p784) target = $region64
      $region63: #{nystrom_attention.7} parent=55 // pred_region
        %p787 = scmp.lt.s32.totalorder %s26, 1
        %s788 = scalar_select %p787, %s26, 1
        %p789 = scmp.lt.s32.totalorder %s27, 0
        %s790 = scalar_select %p789, %s27, 0
        %s791 = sadd.s32 %s790, %s788
        %s792 = smul.addr %s791, 4
        %s793 = scalar_lea.vmem %s4, %s792
      $region64: #{nystrom_attention.7} parent=55 // pred_fallthru
        _
      // Predicated region
      $region65: #{nystrom_attention.7} parent=55 // pred_check
        %p794 = pneg %p200
      $region66: #{nystrom_attention.7} parent=55 // pred_check_branch
        %796 = sbr.rel (%p794) target = $region68
      $region67: #{nystrom_attention.7} parent=55 // pred_region
        %p797 = scmp.lt.s32.totalorder %s26, 1
        %s798 = scalar_select %p797, %s26, 1
        %p799 = scmp.lt.s32.totalorder %s27, 0
        %s800 = scalar_select %p799, %s27, 0
        %s801 = sadd.s32 %s800, %s798
        %s802 = smul.addr %s801, 8
        %s803 = scalar_lea.vmem %s5, %s802
      $region68: #{nystrom_attention.7} parent=55 // pred_fallthru
        _
      // Predicated region
      $region69: #{nystrom_attention.7} parent=55 // pred_check
        %p804 = pneg %p228
      $region70: #{nystrom_attention.7} parent=55 // pred_check_branch
        %806 = sbr.rel (%p804) target = $region72
      $region71: #{nystrom_attention.7} parent=55 // pred_region
        %p807 = scmp.lt.s32.totalorder %s26, 1
        %s808 = scalar_select %p807, %s26, 1
        %p809 = scmp.lt.s32.totalorder %s27, 0
        %s810 = scalar_select %p809, %s27, 0
        %s811 = sadd.s32 %s810, %s808
        %s812 = scalar_lea.vmem %s6, %s811
      $region72: #{nystrom_attention.7} parent=55 // pred_fallthru
        _
    $region56: #{nystrom_attention.7} parent=5 // pred_fallthru
      _
  $region6: #{nystrom_attention.7} parent=0 // loop_footer
    %s17 = sadd.s32 1, %s13
  $region7: #{nystrom_attention.7} parent=0 // loop_footer_branch
    %12 = sbr.rel target = $region3
  $region8: #{nystrom_attention.7} parent=0 // loop_exit
    _

// kernel: nystrom_attention.8
$region0: #{nystrom_attention.8}
  #allocation0 [shape = 'u32[]', space=smem, size = 0x4, offset = 0x4, fixed_abs, tag = 'smem constant byte address 0x4 - core index']
  #allocation1 [shape = 'u32[72,128]{1,0:T(1,128)}', space=vmem, size = 0x9000, scoped, tag = 'internal scratch']
  #allocation2 [shape = 'f32[8,4]{1,0:T(8,128)}', space=vmem, size = 0x1000, scoped, tag = 'scratch operand']
  #allocation3 [shape = 'f32[8,4]{1,0:T(8,128)}', space=vmem, size = 0x1000, scoped, tag = 'scratch operand']
  #allocation4 [shape = 'f32[8,32]{1,0:T(8,128)}', space=vmem, size = 0x1000, scoped, tag = 'scratch operand']
  %s0 = inlined_call_operand.vmem [shape: bf16[2,1,8,32], index: 0, kind: input, shape index: {}]
  %s1 = inlined_call_operand.vmem [shape: bf16[2,16,32], index: 1, kind: input, shape index: {}]
  %s2 = inlined_call_operand.vmem [shape: bf16[2,16,32], index: 2, kind: input, shape index: {}]
  %s3 = inlined_call_operand.vmem [shape: f32[2,1,8,32], index: 3, kind: output, shape index: {}]
  %s4 = sld [smem:[#allocation0]]
  $region53: #{nystrom_attention.8} parent=0
    _
  %s6 = ssub.s32 1, %s4
  %s7 = scalar_select 0, %s6, %s4
  loop: start=0, step=1, limit=4
  $region2: #{nystrom_attention.8} parent=0 // loop_pre_header
    _
  $region3: #{nystrom_attention.8} parent=0 // loop_header
    %s9 = sphi 0, %s13
    %p10 = scmp.ge.s32.totalorder %s9, 4
    %s16 = sphi 0, %s35
    %s17 = sphi 0, %s31
    %s18 = sphi 0, %s27
    %s19 = sphi 0, %s16
    %s20 = sphi 0, %s17
    %s21 = sphi 0, %s18
    %s22 = sphi 0, %s19
    %s23 = sphi 0, %s20
    %s24 = sphi 0, %s21
    %s40 = sphi 0, %s42
    %s43 = sphi 0, %s40
    %s44 = sphi 0, %s43
    %s60 = sphi 0, %s44
    %s70 = sphi 0, %s72
    %s73 = sphi 0, %s70
    %s74 = sphi 0, %s73
    %s90 = sphi 0, %s74
    %s100 = sphi 0, %s102
    %s103 = sphi 0, %s100
    %s104 = sphi 0, %s103
    %s120 = sphi 0, %s104
    %s128 = sphi 0, %s130
    %s131 = sphi 0, %s128
    %s132 = sphi 0, %s131
    %s148 = sphi 0, %s132
  $region4: #{nystrom_attention.8} parent=0 // loop_header_branch
    %12 = sbr.rel (%p10) target = $region8
  $region5: #{nystrom_attention.8} parent=0 // loop_body
    %s14 = ssub.s32 %s9, 1
    %s15 = ssub.s32 %s9, 2
    %s25 = sadd.s32 1, %s18
    %p26 = scmp.ge.s32.totalorder %s25, 1
    %s27 = scalar_select %p26, 0, %s25
    %s28 = sadd.s32 1, %s17
    %s29 = scalar_select %p26, %s28, %s17
    %p30 = scmp.ge.s32.totalorder %s29, 1
    %s31 = scalar_select %p30, 0, %s29
    %s32 = sadd.s32 1, %s16
    %s33 = scalar_select %p30, %s32, %s16
    %p34 = scmp.ge.s32.totalorder %s33, 2
    %s35 = scalar_select %p34, 0, %s33
    %s36 = ssub.s32 %s16, %s35
    %s37 = ssub.s32 %s17, %s31
    %s38 = sor.u32 %s36, %s37
    %p39 = scmp.eq.s32.totalorder %s38, 0
    %s41 = sadd.s32 %s40, 1
    %s42 = scalar_select %p39, %s40, %s41
    %p45 = pneg %p39
    %p46 = scmp.eq.s32.totalorder %s9, 1
    %p47 = por %p45, %p46
    %p48 = scmp.ne.s32.totalorder %s40, %s43
    %p49 = scmp.eq.s32.totalorder %s9, 0
    %p50 = por %p48, %p49
    %p51 = scmp.ne.s32.totalorder %s40, %s43
    %p52 = scmp.eq.s32.totalorder %s14, 1
    %p53 = por %p51, %p52
    %p54 = scmp.ne.s32.totalorder %s43, %s44
    %p55 = scmp.eq.s32.totalorder %s14, 0
    %p56 = por %p54, %p55
    %p57 = scmp.ne.s32.totalorder %s43, %s44
    %p58 = scmp.eq.s32.totalorder %s15, 1
    %p59 = por %p57, %p58
    %p61 = scmp.ne.s32.totalorder %s44, %s60
    %p62 = scmp.eq.s32.totalorder %s15, 0
    %p63 = por %p61, %p62
    %s64 = ssub.s32 %s16, %s35
    %s65 = ssub.s32 %s18, %s27
    %s66 = sor.u32 %s64, %s65
    %s67 = ssub.s32 %s17, %s31
    %s68 = sor.u32 %s66, %s67
    %p69 = scmp.eq.s32.totalorder %s68, 0
    %s71 = sadd.s32 %s70, 1
    %s72 = scalar_select %p69, %s70, %s71
    %p75 = pneg %p69
    %p76 = scmp.eq.s32.totalorder %s9, 1
    %p77 = por %p75, %p76
    %p78 = scmp.ne.s32.totalorder %s70, %s73
    %p79 = scmp.eq.s32.totalorder %s9, 0
    %p80 = por %p78, %p79
    %p81 = scmp.ne.s32.totalorder %s70, %s73
    %p82 = scmp.eq.s32.totalorder %s14, 1
    %p83 = por %p81, %p82
    %p84 = scmp.ne.s32.totalorder %s73, %s74
    %p85 = scmp.eq.s32.totalorder %s14, 0
    %p86 = por %p84, %p85
    %p87 = scmp.ne.s32.totalorder %s73, %s74
    %p88 = scmp.eq.s32.totalorder %s15, 1
    %p89 = por %p87, %p88
    %p91 = scmp.ne.s32.totalorder %s74, %s90
    %p92 = scmp.eq.s32.totalorder %s15, 0
    %p93 = por %p91, %p92
    %s94 = ssub.s32 %s16, %s35
    %s95 = ssub.s32 %s18, %s27
    %s96 = sor.u32 %s94, %s95
    %s97 = ssub.s32 %s17, %s31
    %s98 = sor.u32 %s96, %s97
    %p99 = scmp.eq.s32.totalorder %s98, 0
    %s101 = sadd.s32 %s100, 1
    %s102 = scalar_select %p99, %s100, %s101
    %p105 = pneg %p99
    %p106 = scmp.eq.s32.totalorder %s9, 1
    %p107 = por %p105, %p106
    %p108 = scmp.ne.s32.totalorder %s100, %s103
    %p109 = scmp.eq.s32.totalorder %s9, 0
    %p110 = por %p108, %p109
    %p111 = scmp.ne.s32.totalorder %s100, %s103
    %p112 = scmp.eq.s32.totalorder %s14, 1
    %p113 = por %p111, %p112
    %p114 = scmp.ne.s32.totalorder %s103, %s104
    %p115 = scmp.eq.s32.totalorder %s14, 0
    %p116 = por %p114, %p115
    %p117 = scmp.ne.s32.totalorder %s103, %s104
    %p118 = scmp.eq.s32.totalorder %s15, 1
    %p119 = por %p117, %p118
    %p121 = scmp.ne.s32.totalorder %s104, %s120
    %p122 = scmp.eq.s32.totalorder %s15, 0
    %p123 = por %p121, %p122
    %s124 = ssub.s32 %s16, %s35
    %s125 = ssub.s32 %s17, %s31
    %s126 = sor.u32 %s124, %s125
    %p127 = scmp.eq.s32.totalorder %s126, 0
    %s129 = sadd.s32 %s128, 1
    %s130 = scalar_select %p127, %s128, %s129
    %p133 = pneg %p127
    %p134 = scmp.eq.s32.totalorder %s9, 1
    %p135 = por %p133, %p134
    %p136 = scmp.ne.s32.totalorder %s128, %s131
    %p137 = scmp.eq.s32.totalorder %s9, 0
    %p138 = por %p136, %p137
    %p139 = scmp.ne.s32.totalorder %s128, %s131
    %p140 = scmp.eq.s32.totalorder %s14, 1
    %p141 = por %p139, %p140
    %p142 = scmp.ne.s32.totalorder %s131, %s132
    %p143 = scmp.eq.s32.totalorder %s14, 0
    %p144 = por %p142, %p143
    %p145 = scmp.ne.s32.totalorder %s131, %s132
    %p146 = scmp.eq.s32.totalorder %s15, 1
    %p147 = por %p145, %p146
    %p149 = scmp.ne.s32.totalorder %s132, %s148
    %p150 = scmp.eq.s32.totalorder %s15, 0
    %p151 = por %p149, %p150
    %p152 = scmp.le.s32.totalorder 1, %s9
    %p153 = scmp.lt.s32.totalorder %s9, 3
    %p154 = pnand %p152, %p153
    %p155 = pneg %p154
    // Predicated region
    $region9: #{nystrom_attention.8} parent=5 // pred_check
      _
    $region10: #{nystrom_attention.8} parent=5 // pred_check_branch
      %157 = sbr.rel (%p154) target = $region12
    $region11: #{nystrom_attention.8} parent=5 // pred_region
      %s158 = ssub.s32 %s9, 1
    $region12: #{nystrom_attention.8} parent=5 // pred_fallthru
      _
    %p159 = scmp.lt.s32.totalorder %s9, 2
    // Predicated region
    $region13: #{nystrom_attention.8} parent=5 // pred_check
      %p160 = pneg %p159
    $region14: #{nystrom_attention.8} parent=5 // pred_check_branch
      %162 = sbr.rel (%p160) target = $region16
    $region15: #{nystrom_attention.8} parent=5 // pred_region
      // Predicated region
      $region17: #{nystrom_attention.8} parent=15 // pred_check
        %p163 = pneg %p50
      $region18: #{nystrom_attention.8} parent=15 // pred_check_branch
        %165 = sbr.rel (%p163) target = $region20
      $region19: #{nystrom_attention.8} parent=15 // pred_region
        %p166 = scmp.lt.s32.totalorder %s16, 1
        %s167 = scalar_select %p166, %s16, 1
        %p168 = scmp.lt.s32.totalorder %s17, 0
        %s169 = scalar_select %p168, %s17, 0
        %s170 = sadd.s32 %s169, %s167
        %s171 = smul.addr %s170, 4
        %s172 = scalar_lea.vmem %s0, %s171
      $region20: #{nystrom_attention.8} parent=15 // pred_fallthru
        _
      // Predicated region
      $region21: #{nystrom_attention.8} parent=15 // pred_check
        %p173 = pneg %p80
      $region22: #{nystrom_attention.8} parent=15 // pred_check_branch
        %175 = sbr.rel (%p173) target = $region24
      $region23: #{nystrom_attention.8} parent=15 // pred_region
        %s176 = smul.u32 2, %s18
        %p177 = scmp.lt.s32.totalorder %s16, 1
        %s178 = scalar_select %p177, %s16, 1
        %p179 = scmp.lt.s32.totalorder %s176, 1
        %s180 = scalar_select %p179, %s176, 1
        %p181 = scmp.lt.s32.totalorder %s17, 0
        %s182 = scalar_select %p181, %s17, 0
        %s183 = sadd.s32 %s182, %s180
        %s184 = smul.addr %s178, 2
        %s185 = sadd.s32 %s183, %s184
        %s186 = smul.addr %s185, 4
        %s187 = scalar_lea.vmem %s1, %s186
        %s188 = smul.u32 2, %s18
      $region24: #{nystrom_attention.8} parent=15 // pred_fallthru
        _
      // Predicated region
      $region25: #{nystrom_attention.8} parent=15 // pred_check
        %p189 = pneg %p110
      $region26: #{nystrom_attention.8} parent=15 // pred_check_branch
        %191 = sbr.rel (%p189) target = $region28
      $region27: #{nystrom_attention.8} parent=15 // pred_region
        %s192 = smul.u32 2, %s18
        %p193 = scmp.lt.s32.totalorder %s16, 1
        %s194 = scalar_select %p193, %s16, 1
        %p195 = scmp.lt.s32.totalorder %s192, 1
        %s196 = scalar_select %p195, %s192, 1
        %p197 = scmp.lt.s32.totalorder %s17, 0
        %s198 = scalar_select %p197, %s17, 0
        %s199 = sadd.s32 %s198, %s196
        %s200 = smul.addr %s194, 2
        %s201 = sadd.s32 %s199, %s200
        %s202 = smul.addr %s201, 4
        %s203 = scalar_lea.vmem %s2, %s202
        %s204 = smul.u32 2, %s18
      $region28: #{nystrom_attention.8} parent=15 // pred_fallthru
        _
    $region16: #{nystrom_attention.8} parent=5 // pred_fallthru
      _
    %p205 = scmp.le.s32.totalorder 1, %s9
    %p206 = scmp.lt.s32.totalorder %s9, 3
    %p207 = pnand %p205, %p206
    %p208 = pneg %p207
    // Predicated region
    $region29: #{nystrom_attention.8} parent=5 // pred_check
      _
    $region30: #{nystrom_attention.8} parent=5 // pred_check_branch
      %210 = sbr.rel (%p207) target = $region32
    $region31: #{nystrom_attention.8} parent=5 // pred_region
      %s211 = ssub.s32 %s9, 1
      %p212 = scmp.lt.s32.totalorder %s19, 1
      %s213 = scalar_select %p212, %s19, 1
      %p214 = scmp.lt.s32.totalorder %s20, 0
      %s215 = scalar_select %p214, %s20, 0
      %s216 = sadd.s32 %s215, %s213
      %s217 = smul.addr %s216, 4
      %s218 = scalar_lea.vmem %s0, %s217
      %p219 = pneg %p56
      %p220 = pneg %p53
      %s221 = smul.u32 2, %s21
      %p222 = scmp.lt.s32.totalorder %s19, 1
      %s223 = scalar_select %p222, %s19, 1
      %p224 = scmp.lt.s32.totalorder %s221, 1
      %s225 = scalar_select %p224, %s221, 1
      %p226 = scmp.lt.s32.totalorder %s20, 0
      %s227 = scalar_select %p226, %s20, 0
      %s228 = sadd.s32 %s227, %s225
      %s229 = smul.addr %s223, 2
      %s230 = sadd.s32 %s228, %s229
      %s231 = smul.addr %s230, 4
      %s232 = scalar_lea.vmem %s1, %s231
      %p233 = pneg %p86
      %p234 = pneg %p83
      %s235 = smul.u32 2, %s21
      %p236 = scmp.lt.s32.totalorder %s19, 1
      %s237 = scalar_select %p236, %s19, 1
      %p238 = scmp.lt.s32.totalorder %s235, 1
      %s239 = scalar_select %p238, %s235, 1
      %p240 = scmp.lt.s32.totalorder %s20, 0
      %s241 = scalar_select %p240, %s20, 0
      %s242 = sadd.s32 %s241, %s239
      %s243 = smul.addr %s237, 2
      %s244 = sadd.s32 %s242, %s243
      %s245 = smul.addr %s244, 4
      %s246 = scalar_lea.vmem %s2, %s245
      %p247 = pneg %p116
      %p248 = pneg %p113
      %p249 = pneg %p144
      %p250 = pneg %p141
      %p251 = scmp.lt.s32.totalorder %s19, 1
      %s252 = scalar_select %p251, %s19, 1
      %p253 = scmp.lt.s32.totalorder %s20, 0
      %s254 = scalar_select %p253, %s20, 0
      %s255 = sadd.s32 %s254, %s252
      %s256 = smul.addr %s255, 8
      %s257 = scalar_lea.vmem %s3, %s256
      %p258 = scmp.lt.s32.totalorder %s19, 1
      %s259 = scalar_select %p258, %s19, 1
      %p260 = scmp.lt.s32.totalorder %s20, 0
      %s261 = scalar_select %p260, %s20, 0
      %s262 = sadd.s32 %s261, %s259
      %s263 = smul.addr %s262, 4
      %s264 = scalar_lea.vmem %s0, %s263
      %s265 = smul.u32 2, %s21
      %p266 = scmp.lt.s32.totalorder %s19, 1
      %s267 = scalar_select %p266, %s19, 1
      %p268 = scmp.lt.s32.totalorder %s265, 1
      %s269 = scalar_select %p268, %s265, 1
      %p270 = scmp.lt.s32.totalorder %s20, 0
      %s271 = scalar_select %p270, %s20, 0
      %s272 = sadd.s32 %s271, %s269
      %s273 = smul.addr %s267, 2
      %s274 = sadd.s32 %s272, %s273
      %s275 = smul.addr %s274, 4
      %s276 = scalar_lea.vmem %s1, %s275
      %s277 = smul.u32 2, %s21
      %s278 = smul.u32 2, %s21
      %p279 = scmp.lt.s32.totalorder %s19, 1
      %s280 = scalar_select %p279, %s19, 1
      %p281 = scmp.lt.s32.totalorder %s278, 1
      %s282 = scalar_select %p281, %s278, 1
      %p283 = scmp.lt.s32.totalorder %s20, 0
      %s284 = scalar_select %p283, %s20, 0
      %s285 = sadd.s32 %s284, %s282
      %s286 = smul.addr %s280, 2
      %s287 = sadd.s32 %s285, %s286
      %s288 = smul.addr %s287, 4
      %s289 = scalar_lea.vmem %s2, %s288
      %s290 = smul.u32 2, %s21
      %p291 = scmp.lt.s32.totalorder %s19, 1
      %s292 = scalar_select %p291, %s19, 1
      %p293 = scmp.lt.s32.totalorder %s20, 0
      %s294 = scalar_select %p293, %s20, 0
      %s295 = sadd.s32 %s294, %s292
      %s296 = smul.addr %s295, 8
      %s297 = scalar_lea.vmem %s3, %s296
      %p299 = scmp.eq.s32.totalorder %s21, 0
      // Predicated region
      $region33: #{nystrom_attention.8} parent=31 // pred_check
        %p300 = pneg %p299
      $region34: #{nystrom_attention.8} parent=31 // pred_check_branch
        %302 = sbr.rel (%p300) target = $region36
      $region35: #{nystrom_attention.8} parent=31 // pred_region
        %vm303 = vcmask 31744
        %304 = vst.msk [vmem:[#allocation2] sm:$0xff] %vm303, -1e+30
        %305 = vst.msk [vmem:[#allocation3] sm:$0xff] %vm303, 0.0
        %vm306 = vcmask 261120
        %307 = vst.msk [vmem:[#allocation4] sm:$0xff] %vm306, 0.0
      $region36: #{nystrom_attention.8} parent=31 // pred_fallthru
        _
      %v308 = vld [vmem:[%s264] sm:$0xf]
      %v309 = vld [vmem:[%s276] sm:$0xf]
      %v310 = vld [vmem:[%s276 + $0x4] sm:$0xf]
      %v311 = vld [vmem:[%s289] sm:$0xf]
      %v312 = vld [vmem:[%s289 + $0x4] sm:$0xf]
      %v315 = vunpack.c.l.b16 %v309
      %v316 = vunpack.c.l.b16 %v310
      %v317 = vpack.c.b16 %v316, %v315
      %vm318 = vcmask 64512
      %v320 = vsel %vm318, %v308, 0
      %v323 = vsel %vm318, %v317, 0
      %325 = vmatpush.bf16.xpose.msra.mxu0 0
      %326 = vmatpush.bf16.xpose.msra.mxu0 0
      %327 = vmatpush.bf16.xpose.msra.mxu0 0
      %328 = vmatpush.bf16.xpose.msra.mxu0 0
      %329 = vmatpush.bf16.xpose.msra.mxu0 0
      %330 = vmatpush.bf16.xpose.msra.mxu0 0
      %331 = vmatpush.bf16.xpose.msra.mxu0 0
      %332 = vmatpush.bf16.xpose.msra.mxu0 %v323
      %333 = vmatmul.bf16.gmra.mxu0 %v320
      %v334 = vpop.f32.mrf.mxu0
      %v335 = vadd.f32 0.0, %v334
      %v336 = vpop.f32.mrf.mxu0
      %337 = vdwg.mxu0
      %v338 = vld [vmem:[#allocation2] sm:$0xff]
      %vm339 = vcmask 130048
      %v340 = vsel %vm339, %v335, -inf
      %341 = vmax.xlane.f32.xlu0 %v340
      %v342 = vpop.xlane.xlu0 %341
      %v343 = vmax.f32 %v338, %v342
      %v344 = vsub.f32 %v338, %v343
      %v345 = vmul.f32 %v344, 1.442695
      %v346 = vpow.pop %v345
      %348 = vset.pattern.permute.xlu0 0
      %349 = vperm.xlu0 %348, %v343
      %v350 = vpop.permute.xlu0 %349
      %v352 = vsub.f32 %v335, %v350
      %v353 = vmul.f32 %v352, 1.442695
      %v354 = vpow.pop %v353
      %v355 = vld [vmem:[#allocation3] sm:$0xff]
      %v356 = vmul.f32 %v346, %v355
      %v357 = vsel %vm339, %v354, 0.0
      %358 = vadd.xlane.f32.xlu0 %v357
      %v359 = vpop.xlane.xlu0 %358
      %v360 = vadd.f32 %v356, %v359
      %vm361 = vcmask 7168
      %362 = vst.msk [vmem:[#allocation3] sm:$0xff] %vm361, %v360
      %v363 = vld [vmem:[#allocation4] sm:$0xff]
      %365 = vset.pattern.permute.xlu0 0
      %366 = vperm.xlu0 %365, %v346
      %v367 = vpop.permute.xlu0 %366
      %v369 = vmul.f32 %v367, %v363
      %v370 = vpack.c.bf16 %v354, %v354
      %v373 = vunpack.c.l.b16 %v311
      %v374 = vunpack.c.l.b16 %v312
      %v375 = vpack.c.b16 %v374, %v373
      %v378 = vsel %vm339, %v370, 0
      %380 = vmatpush.bf16.msra.mxu0 0
      %381 = vmatpush.bf16.msra.mxu0 0
      %382 = vmatpush.bf16.msra.mxu0 0
      %383 = vmatpush.bf16.msra.mxu0 0
      %384 = vmatpush.bf16.msra.mxu0 0
      %385 = vmatpush.bf16.msra.mxu0 0
      %386 = vmatpush.bf16.msra.mxu0 0
      %387 = vmatpush.bf16.msra.mxu0 %v375
      %388 = vmatmul.bf16.gmra.mxu0 %v378
      %v389 = vpop.f32.mrf.mxu0
      %v390 = vadd.f32 0.0, %v389
      %v391 = vpop.f32.mrf.mxu0
      %392 = vdwg.mxu0
      %v393 = vadd.f32 %v369, %v390
      %394 = vst.msk [vmem:[#allocation4] sm:$0xff] %vm318, %v393
      %395 = vst.msk [vmem:[#allocation2] sm:$0xff] %vm361, %v343
      %v396 = vld [vmem:[%s264] sm:$0xf]
      %v397 = vld [vmem:[%s276] sm:$0xf]
      %v398 = vld [vmem:[%s276 + $0x4] sm:$0xf]
      %v399 = vld [vmem:[%s289] sm:$0xf]
      %v400 = vld [vmem:[%s289 + $0x4] sm:$0xf]
      %v402 = vunpack.c.l.b16 %v396
      %v403 = vpack.c.b16 %v402, %v402
      %404 = vrot.lane.b32.xlu0 %v403, 120
      %v405 = vpop.permute.xlu0 %404
      %v408 = vunpack.c.l.b16 %v397
      %v409 = vunpack.c.l.b16 %v398
      %v410 = vpack.c.b16 %v409, %v408
      %411 = vrot.lane.b32.xlu0 %v410, 120
      %v412 = vpop.permute.xlu0 %411
      %v414 = vsel %vm318, %v405, 0
      %v417 = vsel %vm318, %v412, 0
      %419 = vmatpush.bf16.xpose.msra.mxu0 0
      %420 = vmatpush.bf16.xpose.msra.mxu0 0
      %421 = vmatpush.bf16.xpose.msra.mxu0 0
      %422 = vmatpush.bf16.xpose.msra.mxu0 0
      %423 = vmatpush.bf16.xpose.msra.mxu0 0
      %424 = vmatpush.bf16.xpose.msra.mxu0 0
      %425 = vmatpush.bf16.xpose.msra.mxu0 0
      %426 = vmatpush.bf16.xpose.msra.mxu0 %v417
      %427 = vmatmul.bf16.gmra.mxu0 %v414
      %v428 = vpop.f32.mrf.mxu0
      %v429 = vadd.f32 0.0, %v428
      %v430 = vpop.f32.mrf.mxu0
      %431 = vdwg.mxu0
      %v432 = vld [vmem:[#allocation2] sm:$0xff]
      %v433 = vsel %vm339, %v429, -inf
      %434 = vmax.xlane.f32.xlu0 %v433
      %v435 = vpop.xlane.xlu0 %434
      %v436 = vmax.f32 %v432, %v435
      %v437 = vsub.f32 %v432, %v436
      %v438 = vmul.f32 %v437, 1.442695
      %v439 = vpow.pop %v438
      %441 = vset.pattern.permute.xlu0 1
      %442 = vperm.xlu0 %441, %v436
      %v443 = vpop.permute.xlu0 %442
      %v445 = vsub.f32 %v429, %v443
      %v446 = vmul.f32 %v445, 1.442695
      %v447 = vpow.pop %v446
      %v448 = vld [vmem:[#allocation3] sm:$0xff]
      %v449 = vmul.f32 %v439, %v448
      %v450 = vsel %vm339, %v447, 0.0
      %451 = vadd.xlane.f32.xlu0 %v450
      %v452 = vpop.xlane.xlu0 %451
      %v453 = vadd.f32 %v449, %v452
      %vm454 = vcmask 15368
      %455 = vst.msk [vmem:[#allocation3] sm:$0xff] %vm454, %v453
      %v456 = vld [vmem:[#allocation4] sm:$0xff]
      %458 = vset.pattern.permute.xlu0 1
      %459 = vperm.xlu0 %458, %v439
      %v460 = vpop.permute.xlu0 %459
      %v462 = vmul.f32 %v460, %v456
      %v463 = vpack.c.bf16 %v447, %v447
      %v466 = vunpack.c.l.b16 %v399
      %v467 = vunpack.c.l.b16 %v400
      %v468 = vpack.c.b16 %v467, %v466
      %469 = vrot.lane.b32.xlu0 %v468, 120
      %v470 = vpop.permute.xlu0 %469
      %v473 = vsel %vm339, %v463, 0
      %475 = vmatpush.bf16.msra.mxu0 0
      %476 = vmatpush.bf16.msra.mxu0 0
      %477 = vmatpush.bf16.msra.mxu0 0
      %478 = vmatpush.bf16.msra.mxu0 0
      %479 = vmatpush.bf16.msra.mxu0 0
      %480 = vmatpush.bf16.msra.mxu0 0
      %481 = vmatpush.bf16.msra.mxu0 0
      %482 = vmatpush.bf16.msra.mxu0 %v470
      %483 = vmatmul.bf16.gmra.mxu0 %v473
      %v484 = vpop.f32.mrf.mxu0
      %v485 = vadd.f32 0.0, %v484
      %v486 = vpop.f32.mrf.mxu0
      %487 = vdwg.mxu0
      %489 = vrot.lane.b32.xlu0 %v485, 8
      %v490 = vpop.permute.xlu0 %489
      %v492 = vadd.f32 %v462, %v490
      %vm493 = vcmask 130112
      %494 = vst.msk [vmem:[#allocation4] sm:$0xff] %vm493, %v492
      %495 = vst.msk [vmem:[#allocation2] sm:$0xff] %vm454, %v436
      %v496 = vld [vmem:[%s264] sm:$0xf]
      %v497 = vld [vmem:[%s276] sm:$0xf]
      %v498 = vld [vmem:[%s276 + $0x4] sm:$0xf]
      %v499 = vld [vmem:[%s289] sm:$0xf]
      %v500 = vld [vmem:[%s289 + $0x4] sm:$0xf]
      %v502 = vunpack.c.l.b16 %v496
      %v503 = vpack.c.b16 %v502, %v502
      %504 = vrot.lane.b32.xlu0 %v503, 112
      %v505 = vpop.permute.xlu0 %504
      %v508 = vunpack.c.l.b16 %v497
      %v509 = vunpack.c.l.b16 %v498
      %v510 = vpack.c.b16 %v509, %v508
      %511 = vrot.lane.b32.xlu0 %v510, 112
      %v512 = vpop.permute.xlu0 %511
      %v514 = vsel %vm318, %v505, 0
      %v517 = vsel %vm318, %v512, 0
      %519 = vmatpush.bf16.xpose.msra.mxu0 0
      %520 = vmatpush.bf16.xpose.msra.mxu0 0
      %521 = vmatpush.bf16.xpose.msra.mxu0 0
      %522 = vmatpush.bf16.xpose.msra.mxu0 0
      %523 = vmatpush.bf16.xpose.msra.mxu0 0
      %524 = vmatpush.bf16.xpose.msra.mxu0 0
      %525 = vmatpush.bf16.xpose.msra.mxu0 0
      %526 = vmatpush.bf16.xpose.msra.mxu0 %v517
      %527 = vmatmul.bf16.gmra.mxu0 %v514
      %v528 = vpop.f32.mrf.mxu0
      %v529 = vadd.f32 0.0, %v528
      %v530 = vpop.f32.mrf.mxu0
      %531 = vdwg.mxu0
      %v532 = vld [vmem:[#allocation2] sm:$0xff]
      %v533 = vsel %vm339, %v529, -inf
      %534 = vmax.xlane.f32.xlu0 %v533
      %v535 = vpop.xlane.xlu0 %534
      %v536 = vmax.f32 %v532, %v535
      %v537 = vsub.f32 %v532, %v536
      %v538 = vmul.f32 %v537, 1.442695
      %v539 = vpow.pop %v538
      %541 = vset.pattern.permute.xlu0 2
      %542 = vperm.xlu0 %541, %v536
      %v543 = vpop.permute.xlu0 %542
      %v545 = vsub.f32 %v529, %v543
      %v546 = vmul.f32 %v545, 1.442695
      %v547 = vpow.pop %v546
      %v548 = vld [vmem:[#allocation3] sm:$0xff]
      %v549 = vmul.f32 %v539, %v548
      %v550 = vsel %vm339, %v547, 0.0
      %551 = vadd.xlane.f32.xlu0 %v550
      %v552 = vpop.xlane.xlu0 %551
      %v553 = vadd.f32 %v549, %v552
      %vm554 = vcmask 23568
      %555 = vst.msk [vmem:[#allocation3] sm:$0xff] %vm554, %v553
      %v556 = vld [vmem:[#allocation4] sm:$0xff]
      %558 = vset.pattern.permute.xlu0 2
      %559 = vperm.xlu0 %558, %v539
      %v560 = vpop.permute.xlu0 %559
      %v562 = vmul.f32 %v560, %v556
      %v563 = vpack.c.bf16 %v547, %v547
      %v566 = vunpack.c.l.b16 %v499
      %v567 = vunpack.c.l.b16 %v500
      %v568 = vpack.c.b16 %v567, %v566
      %569 = vrot.lane.b32.xlu0 %v568, 112
      %v570 = vpop.permute.xlu0 %569
      %v573 = vsel %vm339, %v563, 0
      %575 = vmatpush.bf16.msra.mxu0 0
      %576 = vmatpush.bf16.msra.mxu0 0
      %577 = vmatpush.bf16.msra.mxu0 0
      %578 = vmatpush.bf16.msra.mxu0 0
      %579 = vmatpush.bf16.msra.mxu0 0
      %580 = vmatpush.bf16.msra.mxu0 0
      %581 = vmatpush.bf16.msra.mxu0 0
      %582 = vmatpush.bf16.msra.mxu0 %v570
      %583 = vmatmul.bf16.gmra.mxu0 %v573
      %v584 = vpop.f32.mrf.mxu0
      %v585 = vadd.f32 0.0, %v584
      %v586 = vpop.f32.mrf.mxu0
      %587 = vdwg.mxu0
      %589 = vrot.lane.b32.xlu0 %v585, 16
      %v590 = vpop.permute.xlu0 %589
      %v592 = vadd.f32 %v562, %v590
      %vm593 = vcmask 195712
      %594 = vst.msk [vmem:[#allocation4] sm:$0xff] %vm593, %v592
      %595 = vst.msk [vmem:[#allocation2] sm:$0xff] %vm554, %v536
      %v596 = vld [vmem:[%s264] sm:$0xf]
      %v597 = vld [vmem:[%s276] sm:$0xf]
      %v598 = vld [vmem:[%s276 + $0x4] sm:$0xf]
      %v599 = vld [vmem:[%s289] sm:$0xf]
      %v600 = vld [vmem:[%s289 + $0x4] sm:$0xf]
      %v602 = vunpack.c.l.b16 %v596
      %v603 = vpack.c.b16 %v602, %v602
      %604 = vrot.lane.b32.xlu0 %v603, 104
      %v605 = vpop.permute.xlu0 %604
      %v608 = vunpack.c.l.b16 %v597
      %v609 = vunpack.c.l.b16 %v598
      %v610 = vpack.c.b16 %v609, %v608
      %611 = vrot.lane.b32.xlu0 %v610, 104
      %v612 = vpop.permute.xlu0 %611
      %v614 = vsel %vm318, %v605, 0
      %v617 = vsel %vm318, %v612, 0
      %619 = vmatpush.bf16.xpose.msra.mxu0 0
      %620 = vmatpush.bf16.xpose.msra.mxu0 0
      %621 = vmatpush.bf16.xpose.msra.mxu0 0
      %622 = vmatpush.bf16.xpose.msra.mxu0 0
      %623 = vmatpush.bf16.xpose.msra.mxu0 0
      %624 = vmatpush.bf16.xpose.msra.mxu0 0
      %625 = vmatpush.bf16.xpose.msra.mxu0 0
      %626 = vmatpush.bf16.xpose.msra.mxu0 %v617
      %627 = vmatmul.bf16.gmra.mxu0 %v614
      %v628 = vpop.f32.mrf.mxu0
      %v629 = vadd.f32 0.0, %v628
      %v630 = vpop.f32.mrf.mxu0
      %631 = vdwg.mxu0
      %v632 = vld [vmem:[#allocation2] sm:$0xff]
      %v633 = vsel %vm339, %v629, -inf
      %634 = vmax.xlane.f32.xlu0 %v633
      %v635 = vpop.xlane.xlu0 %634
      %v636 = vmax.f32 %v632, %v635
      %v637 = vsub.f32 %v632, %v636
      %v638 = vmul.f32 %v637, 1.442695
      %v639 = vpow.pop %v638
      %641 = vset.pattern.permute.xlu0 3
      %642 = vperm.xlu0 %641, %v636
      %v643 = vpop.permute.xlu0 %642
      %v645 = vsub.f32 %v629, %v643
      %v646 = vmul.f32 %v645, 1.442695
      %v647 = vpow.pop %v646
      %v648 = vld [vmem:[#allocation3] sm:$0xff]
      %v649 = vmul.f32 %v639, %v648
      %v650 = vsel %vm339, %v647, 0.0
      %651 = vadd.xlane.f32.xlu0 %v650
      %v652 = vpop.xlane.xlu0 %651
      %v653 = vadd.f32 %v649, %v652
      %vm654 = vcmask 31768
      %655 = vst.msk [vmem:[#allocation3] sm:$0xff] %vm654, %v653
      %v656 = vld [vmem:[#allocation4] sm:$0xff]
      %658 = vset.pattern.permute.xlu0 3
      %659 = vperm.xlu0 %658, %v639
      %v660 = vpop.permute.xlu0 %659
      %v662 = vmul.f32 %v660, %v656
      %v663 = vpack.c.bf16 %v647, %v647
      %v666 = vunpack.c.l.b16 %v599
      %v667 = vunpack.c.l.b16 %v600
      %v668 = vpack.c.b16 %v667, %v666
      %669 = vrot.lane.b32.xlu0 %v668, 104
      %v670 = vpop.permute.xlu0 %669
      %v673 = vsel %vm339, %v663, 0
      %675 = vmatpush.bf16.msra.mxu0 0
      %676 = vmatpush.bf16.msra.mxu0 0
      %677 = vmatpush.bf16.msra.mxu0 0
      %678 = vmatpush.bf16.msra.mxu0 0
      %679 = vmatpush.bf16.msra.mxu0 0
      %680 = vmatpush.bf16.msra.mxu0 0
      %681 = vmatpush.bf16.msra.mxu0 0
      %682 = vmatpush.bf16.msra.mxu0 %v670
      %683 = vmatmul.bf16.gmra.mxu0 %v673
      %v684 = vpop.f32.mrf.mxu0
      %v685 = vadd.f32 0.0, %v684
      %v686 = vpop.f32.mrf.mxu0
      %687 = vdwg.mxu0
      %689 = vrot.lane.b32.xlu0 %v685, 24
      %v690 = vpop.permute.xlu0 %689
      %v692 = vadd.f32 %v662, %v690
      %vm693 = vcmask 261312
      %694 = vst.msk [vmem:[#allocation4] sm:$0xff] %vm693, %v692
      %695 = vst.msk [vmem:[#allocation2] sm:$0xff] %vm654, %v636
      // Predicated region
      $region37: #{nystrom_attention.8} parent=31 // pred_check
        %p696 = pneg %p299
      $region38: #{nystrom_attention.8} parent=31 // pred_check_branch
        %698 = sbr.rel (%p696) target = $region40
      $region39: #{nystrom_attention.8} parent=31 // pred_region
        %v699 = vld [vmem:[#allocation3] sm:$0xff]
        %v700 = vrcp.pop %v699
        %v701 = vld [vmem:[#allocation4] sm:$0xff]
        %703 = vset.pattern.permute.xlu0 0
        %704 = vperm.xlu0 %703, %v700
        %v705 = vpop.permute.xlu0 %704
        %v707 = vmul.f32 %v701, %v705
        %708 = vst.msk [vmem:[%s297] sm:$0xff] %vm318, %v707
        %v709 = vld [vmem:[#allocation3] sm:$0xff]
        %v710 = vrcp.pop %v709
        %v711 = vld [vmem:[#allocation4] sm:$0xff]
        %713 = vset.pattern.permute.xlu0 1
        %714 = vperm.xlu0 %713, %v710
        %v715 = vpop.permute.xlu0 %714
        %v717 = vmul.f32 %v711, %v715
        %718 = vst.msk [vmem:[%s297] sm:$0xff] %vm493, %v717
        %v719 = vld [vmem:[#allocation3] sm:$0xff]
        %v720 = vrcp.pop %v719
        %v721 = vld [vmem:[#allocation4] sm:$0xff]
        %723 = vset.pattern.permute.xlu0 2
        %724 = vperm.xlu0 %723, %v720
        %v725 = vpop.permute.xlu0 %724
        %v727 = vmul.f32 %v721, %v725
        %728 = vst.msk [vmem:[%s297] sm:$0xff] %vm593, %v727
        %v729 = vld [vmem:[#allocation3] sm:$0xff]
        %v730 = vrcp.pop %v729
        %v731 = vld [vmem:[#allocation4] sm:$0xff]
        %733 = vset.pattern.permute.xlu0 3
        %734 = vperm.xlu0 %733, %v730
        %v735 = vpop.permute.xlu0 %734
        %v737 = vmul.f32 %v731, %v735
        %738 = vst.msk [vmem:[%s297] sm:$0xff] %vm693, %v737
      $region40: #{nystrom_attention.8} parent=31 // pred_fallthru
        _
      %p739 = scmp.lt.s32.totalorder %s19, 1
      %s740 = scalar_select %p739, %s19, 1
      %p741 = scmp.lt.s32.totalorder %s20, 0
      %s742 = scalar_select %p741, %s20, 0
      %s743 = sadd.s32 %s742, %s740
      %s744 = smul.addr %s743, 8
      %s745 = scalar_lea.vmem %s3, %s744
      // Predicated region
      $region41: #{nystrom_attention.8} parent=31 // pred_check
        %p746 = pneg %p141
      $region42: #{nystrom_attention.8} parent=31 // pred_check_branch
        %748 = sbr.rel (%p746) target = $region44
      $region43: #{nystrom_attention.8} parent=31 // pred_region
        _
      $region44: #{nystrom_attention.8} parent=31 // pred_fallthru
        _
    $region32: #{nystrom_attention.8} parent=5 // pred_fallthru
      _
    %p749 = scmp.le.s32.totalorder 2, %s9
    // Predicated region
    $region45: #{nystrom_attention.8} parent=5 // pred_check
      %p750 = pneg %p749
    $region46: #{nystrom_attention.8} parent=5 // pred_check_branch
      %752 = sbr.rel (%p750) target = $region48
    $region47: #{nystrom_attention.8} parent=5 // pred_region
      %s753 = ssub.s32 %s9, 2
      // Predicated region
      $region49: #{nystrom_attention.8} parent=47 // pred_check
        %p754 = pneg %p147
      $region50: #{nystrom_attention.8} parent=47 // pred_check_branch
        %756 = sbr.rel (%p754) target = $region52
      $region51: #{nystrom_attention.8} parent=47 // pred_region
        %p757 = scmp.lt.s32.totalorder %s22, 1
        %s758 = scalar_select %p757, %s22, 1
        %p759 = scmp.lt.s32.totalorder %s23, 0
        %s760 = scalar_select %p759, %s23, 0
        %s761 = sadd.s32 %s760, %s758
        %s762 = smul.addr %s761, 8
        %s763 = scalar_lea.vmem %s3, %s762
      $region52: #{nystrom_attention.8} parent=47 // pred_fallthru
        _
    $region48: #{nystrom_attention.8} parent=5 // pred_fallthru
      _
  $region6: #{nystrom_attention.8} parent=0 // loop_footer
    %s13 = sadd.s32 1, %s9
  $region7: #{nystrom_attention.8} parent=0 // loop_footer_branch
    %8 = sbr.rel target = $region3
  $region8: #{nystrom_attention.8} parent=0 // loop_exit
    _

// kernel: nystrom_attention.9
$region0: #{nystrom_attention.9}
  #allocation0 [shape = 'u32[]', space=smem, size = 0x4, offset = 0x4, fixed_abs, tag = 'smem constant byte address 0x4 - core index']
  #allocation1 [shape = 'u32[72,128]{1,0:T(1,128)}', space=vmem, size = 0x9000, scoped, tag = 'internal scratch']
  #allocation2 [shape = 'f32[1,1]{1,0:T(1,128)S(6)}', space=smem, size = 0x200, scoped, tag = 'scoped memory for nystrom_attention.9']
  %s0 = inlined_call_operand.<no memory space> [shape: f32[1,1], index: 0, kind: input, shape index: {}]
  %s1 = inlined_call_operand.vmem [shape: f32[2,1,8,32], index: 1, kind: input, shape index: {}]
  %s2 = inlined_call_operand.vmem [shape: f32[2,1,8,32], index: 2, kind: input, shape index: {}]
  %s3 = inlined_call_operand.vmem [shape: f32[8,8], index: 3, kind: input, shape index: {}]
  %s4 = inlined_call_operand.vmem [shape: bf16[2,1,8,32], index: 4, kind: output, shape index: {}]
  %s5 = sld [smem:[#allocation0]]
  $region77: #{nystrom_attention.9} parent=0
    _
  %s7 = ssub.s32 1, %s5
  %s8 = scalar_select 0, %s7, %s5
  %9 = sst [smem:[#allocation2]] %s0
  loop: start=0, step=1, limit=4
  $region2: #{nystrom_attention.9} parent=0 // loop_pre_header
    _
  $region3: #{nystrom_attention.9} parent=0 // loop_header
    %s11 = sphi 0, %s15
    %p12 = scmp.ge.s32.totalorder %s11, 4
    %s18 = sphi 0, %s30
    %s19 = sphi 0, %s26
    %s20 = sphi 0, %s18
    %s21 = sphi 0, %s19
    %s22 = sphi 0, %s20
    %s23 = sphi 0, %s21
    %s31 = sphi 0, %s31
    %s33 = sphi 0, %s31
    %s34 = sphi 0, %s33
    %s48 = sphi 0, %s34
    %s56 = sphi 0, %s58
    %s59 = sphi 0, %s56
    %s60 = sphi 0, %s59
    %s76 = sphi 0, %s60
    %s84 = sphi 0, %s86
    %s87 = sphi 0, %s84
    %s88 = sphi 0, %s87
    %s104 = sphi 0, %s88
    %s108 = sphi 0, %s108
    %s110 = sphi 0, %s108
    %s111 = sphi 0, %s110
    %s125 = sphi 0, %s111
    %s133 = sphi 0, %s135
    %s136 = sphi 0, %s133
    %s137 = sphi 0, %s136
    %s153 = sphi 0, %s137
  $region4: #{nystrom_attention.9} parent=0 // loop_header_branch
    %14 = sbr.rel (%p12) target = $region8
  $region5: #{nystrom_attention.9} parent=0 // loop_body
    %s16 = ssub.s32 %s11, 1
    %s17 = ssub.s32 %s11, 2
    %s24 = sadd.s32 1, %s19
    %p25 = scmp.ge.s32.totalorder %s24, 1
    %s26 = scalar_select %p25, 0, %s24
    %s27 = sadd.s32 1, %s18
    %s28 = scalar_select %p25, %s27, %s18
    %p29 = scmp.ge.s32.totalorder %s28, 2
    %s30 = scalar_select %p29, 0, %s28
    %s32 = sadd.s32 %s31, 1
    %p35 = scmp.eq.s32.totalorder %s11, 1
    %p36 = scmp.ne.s32.totalorder %s31, %s33
    %p37 = scmp.eq.s32.totalorder %s11, 0
    %p38 = por %p36, %p37
    %p39 = scmp.ne.s32.totalorder %s31, %s33
    %p40 = scmp.eq.s32.totalorder %s16, 1
    %p41 = por %p39, %p40
    %p42 = scmp.ne.s32.totalorder %s33, %s34
    %p43 = scmp.eq.s32.totalorder %s16, 0
    %p44 = por %p42, %p43
    %p45 = scmp.ne.s32.totalorder %s33, %s34
    %p46 = scmp.eq.s32.totalorder %s17, 1
    %p47 = por %p45, %p46
    %p49 = scmp.ne.s32.totalorder %s34, %s48
    %p50 = scmp.eq.s32.totalorder %s17, 0
    %p51 = por %p49, %p50
    %s52 = ssub.s32 %s18, %s30
    %s53 = ssub.s32 %s19, %s26
    %s54 = sor.u32 %s52, %s53
    %p55 = scmp.eq.s32.totalorder %s54, 0
    %s57 = sadd.s32 %s56, 1
    %s58 = scalar_select %p55, %s56, %s57
    %p61 = pneg %p55
    %p62 = scmp.eq.s32.totalorder %s11, 1
    %p63 = por %p61, %p62
    %p64 = scmp.ne.s32.totalorder %s56, %s59
    %p65 = scmp.eq.s32.totalorder %s11, 0
    %p66 = por %p64, %p65
    %p67 = scmp.ne.s32.totalorder %s56, %s59
    %p68 = scmp.eq.s32.totalorder %s16, 1
    %p69 = por %p67, %p68
    %p70 = scmp.ne.s32.totalorder %s59, %s60
    %p71 = scmp.eq.s32.totalorder %s16, 0
    %p72 = por %p70, %p71
    %p73 = scmp.ne.s32.totalorder %s59, %s60
    %p74 = scmp.eq.s32.totalorder %s17, 1
    %p75 = por %p73, %p74
    %p77 = scmp.ne.s32.totalorder %s60, %s76
    %p78 = scmp.eq.s32.totalorder %s17, 0
    %p79 = por %p77, %p78
    %s80 = ssub.s32 %s18, %s30
    %s81 = ssub.s32 %s19, %s26
    %s82 = sor.u32 %s80, %s81
    %p83 = scmp.eq.s32.totalorder %s82, 0
    %s85 = sadd.s32 %s84, 1
    %s86 = scalar_select %p83, %s84, %s85
    %p89 = pneg %p83
    %p90 = scmp.eq.s32.totalorder %s11, 1
    %p91 = por %p89, %p90
    %p92 = scmp.ne.s32.totalorder %s84, %s87
    %p93 = scmp.eq.s32.totalorder %s11, 0
    %p94 = por %p92, %p93
    %p95 = scmp.ne.s32.totalorder %s84, %s87
    %p96 = scmp.eq.s32.totalorder %s16, 1
    %p97 = por %p95, %p96
    %p98 = scmp.ne.s32.totalorder %s87, %s88
    %p99 = scmp.eq.s32.totalorder %s16, 0
    %p100 = por %p98, %p99
    %p101 = scmp.ne.s32.totalorder %s87, %s88
    %p102 = scmp.eq.s32.totalorder %s17, 1
    %p103 = por %p101, %p102
    %p105 = scmp.ne.s32.totalorder %s88, %s104
    %p106 = scmp.eq.s32.totalorder %s17, 0
    %p107 = por %p105, %p106
    %s109 = sadd.s32 %s108, 1
    %p112 = scmp.eq.s32.totalorder %s11, 1
    %p113 = scmp.ne.s32.totalorder %s108, %s110
    %p114 = scmp.eq.s32.totalorder %s11, 0
    %p115 = por %p113, %p114
    %p116 = scmp.ne.s32.totalorder %s108, %s110
    %p117 = scmp.eq.s32.totalorder %s16, 1
    %p118 = por %p116, %p117
    %p119 = scmp.ne.s32.totalorder %s110, %s111
    %p120 = scmp.eq.s32.totalorder %s16, 0
    %p121 = por %p119, %p120
    %p122 = scmp.ne.s32.totalorder %s110, %s111
    %p123 = scmp.eq.s32.totalorder %s17, 1
    %p124 = por %p122, %p123
    %p126 = scmp.ne.s32.totalorder %s111, %s125
    %p127 = scmp.eq.s32.totalorder %s17, 0
    %p128 = por %p126, %p127
    %s129 = ssub.s32 %s18, %s30
    %s130 = ssub.s32 %s19, %s26
    %s131 = sor.u32 %s129, %s130
    %p132 = scmp.eq.s32.totalorder %s131, 0
    %s134 = sadd.s32 %s133, 1
    %s135 = scalar_select %p132, %s133, %s134
    %p138 = pneg %p132
    %p139 = scmp.eq.s32.totalorder %s11, 1
    %p140 = por %p138, %p139
    %p141 = scmp.ne.s32.totalorder %s133, %s136
    %p142 = scmp.eq.s32.totalorder %s11, 0
    %p143 = por %p141, %p142
    %p144 = scmp.ne.s32.totalorder %s133, %s136
    %p145 = scmp.eq.s32.totalorder %s16, 1
    %p146 = por %p144, %p145
    %p147 = scmp.ne.s32.totalorder %s136, %s137
    %p148 = scmp.eq.s32.totalorder %s16, 0
    %p149 = por %p147, %p148
    %p150 = scmp.ne.s32.totalorder %s136, %s137
    %p151 = scmp.eq.s32.totalorder %s17, 1
    %p152 = por %p150, %p151
    %p154 = scmp.ne.s32.totalorder %s137, %s153
    %p155 = scmp.eq.s32.totalorder %s17, 0
    %p156 = por %p154, %p155
    %p157 = scmp.le.s32.totalorder 1, %s11
    %p158 = scmp.lt.s32.totalorder %s11, 3
    %p159 = pnand %p157, %p158
    %p160 = pneg %p159
    // Predicated region
    $region9: #{nystrom_attention.9} parent=5 // pred_check
      _
    $region10: #{nystrom_attention.9} parent=5 // pred_check_branch
      %162 = sbr.rel (%p159) target = $region12
    $region11: #{nystrom_attention.9} parent=5 // pred_region
      %s163 = ssub.s32 %s11, 1
      // Predicated region
      $region13: #{nystrom_attention.9} parent=11 // pred_check
        %p164 = pneg %p44
      $region14: #{nystrom_attention.9} parent=11 // pred_check_branch
        %166 = sbr.rel (%p164) target = $region16
      $region15: #{nystrom_attention.9} parent=11 // pred_region
        _
      $region16: #{nystrom_attention.9} parent=11 // pred_fallthru
        _
      // Predicated region
      $region17: #{nystrom_attention.9} parent=11 // pred_check
        %p167 = pneg %p121
      $region18: #{nystrom_attention.9} parent=11 // pred_check_branch
        %169 = sbr.rel (%p167) target = $region20
      $region19: #{nystrom_attention.9} parent=11 // pred_region
        _
      $region20: #{nystrom_attention.9} parent=11 // pred_fallthru
        _
    $region12: #{nystrom_attention.9} parent=5 // pred_fallthru
      _
    %p170 = scmp.lt.s32.totalorder %s11, 2
    // Predicated region
    $region21: #{nystrom_attention.9} parent=5 // pred_check
      %p171 = pneg %p170
    $region22: #{nystrom_attention.9} parent=5 // pred_check_branch
      %173 = sbr.rel (%p171) target = $region24
    $region23: #{nystrom_attention.9} parent=5 // pred_region
      // Predicated region
      $region25: #{nystrom_attention.9} parent=23 // pred_check
        %p174 = pneg %p66
      $region26: #{nystrom_attention.9} parent=23 // pred_check_branch
        %176 = sbr.rel (%p174) target = $region28
      $region27: #{nystrom_attention.9} parent=23 // pred_region
        %p177 = scmp.lt.s32.totalorder %s18, 1
        %s178 = scalar_select %p177, %s18, 1
        %p179 = scmp.lt.s32.totalorder %s19, 0
        %s180 = scalar_select %p179, %s19, 0
        %s181 = sadd.s32 %s180, %s178
        %s182 = smul.addr %s181, 8
        %s183 = scalar_lea.vmem %s1, %s182
      $region28: #{nystrom_attention.9} parent=23 // pred_fallthru
        _
      // Predicated region
      $region29: #{nystrom_attention.9} parent=23 // pred_check
        %p184 = pneg %p94
      $region30: #{nystrom_attention.9} parent=23 // pred_check_branch
        %186 = sbr.rel (%p184) target = $region32
      $region31: #{nystrom_attention.9} parent=23 // pred_region
        %p187 = scmp.lt.s32.totalorder %s18, 1
        %s188 = scalar_select %p187, %s18, 1
        %p189 = scmp.lt.s32.totalorder %s19, 0
        %s190 = scalar_select %p189, %s19, 0
        %s191 = sadd.s32 %s190, %s188
        %s192 = smul.addr %s191, 8
        %s193 = scalar_lea.vmem %s2, %s192
      $region32: #{nystrom_attention.9} parent=23 // pred_fallthru
        _
    $region24: #{nystrom_attention.9} parent=5 // pred_fallthru
      _
    %p194 = scmp.le.s32.totalorder 1, %s11
    %p195 = scmp.lt.s32.totalorder %s11, 3
    %p196 = pnand %p194, %p195
    %p197 = pneg %p196
    // Predicated region
    $region33: #{nystrom_attention.9} parent=5 // pred_check
      _
    $region34: #{nystrom_attention.9} parent=5 // pred_check_branch
      %199 = sbr.rel (%p196) target = $region36
    $region35: #{nystrom_attention.9} parent=5 // pred_region
      %s200 = ssub.s32 %s11, 1
      %p201 = pneg %p44
      %p202 = pneg %p41
      %p203 = scmp.lt.s32.totalorder %s20, 1
      %s204 = scalar_select %p203, %s20, 1
      %p205 = scmp.lt.s32.totalorder %s21, 0
      %s206 = scalar_select %p205, %s21, 0
      %s207 = sadd.s32 %s206, %s204
      %s208 = smul.addr %s207, 8
      %s209 = scalar_lea.vmem %s1, %s208
      %p210 = pneg %p72
      %p211 = pneg %p69
      %p212 = scmp.lt.s32.totalorder %s20, 1
      %s213 = scalar_select %p212, %s20, 1
      %p214 = scmp.lt.s32.totalorder %s21, 0
      %s215 = scalar_select %p214, %s21, 0
      %s216 = sadd.s32 %s215, %s213
      %s217 = smul.addr %s216, 8
      %s218 = scalar_lea.vmem %s2, %s217
      %p219 = pneg %p100
      %p220 = pneg %p97
      %p221 = pneg %p121
      %p222 = pneg %p118
      %p223 = pneg %p149
      %p224 = pneg %p146
      %p225 = scmp.lt.s32.totalorder %s20, 1
      %s226 = scalar_select %p225, %s20, 1
      %p227 = scmp.lt.s32.totalorder %s21, 0
      %s228 = scalar_select %p227, %s21, 0
      %s229 = sadd.s32 %s228, %s226
      %s230 = smul.addr %s229, 4
      %s231 = scalar_lea.vmem %s4, %s230
      %p232 = scmp.lt.s32.totalorder %s20, 1
      %s233 = scalar_select %p232, %s20, 1
      %p234 = scmp.lt.s32.totalorder %s21, 0
      %s235 = scalar_select %p234, %s21, 0
      %s236 = sadd.s32 %s235, %s233
      %s237 = smul.addr %s236, 8
      %s238 = scalar_lea.vmem %s1, %s237
      %p239 = scmp.lt.s32.totalorder %s20, 1
      %s240 = scalar_select %p239, %s20, 1
      %p241 = scmp.lt.s32.totalorder %s21, 0
      %s242 = scalar_select %p241, %s21, 0
      %s243 = sadd.s32 %s242, %s240
      %s244 = smul.addr %s243, 8
      %s245 = scalar_lea.vmem %s2, %s244
      %p246 = scmp.lt.s32.totalorder %s20, 1
      %s247 = scalar_select %p246, %s20, 1
      %p248 = scmp.lt.s32.totalorder %s21, 0
      %s249 = scalar_select %p248, %s21, 0
      %s250 = sadd.s32 %s249, %s247
      %s251 = smul.addr %s250, 4
      %s252 = scalar_lea.vmem %s4, %s251
      %v254 = vld [vmem:[%s3] sm:$0xff]
      %v255 = vpack.c.bf16 %v254, %v254
      %s256 = sld [smem:[#allocation2]]
      %v257 = vstv %s256
      %v258 = vrcp.pop %v257
      %v259 = vmul.f32 %v257, %v258
      %v260 = vsub.f32 1.0, %v259
      %v261 = vmul.f32 %v258, %v260
      %v262 = vadd.f32 %v258, %v261
      %vm263 = vweird.f32 %v257
      %vm264 = vweird.f32 %v258
      %vm265 = vmor %vm263, %vm264
      %v266 = vsel %vm265, %v258, %v262
      %v267 = vand.u32 2147483647, %v257
      %vm268 = vcmp.eq.f32.partialorder %v267, 8.507059e+37
      %v269 = vand.u32 %v257, 2147483648
      %v270 = vor.u32 1.1754944e-38, %v269
      %v271 = vsel %vm268, %v270, %v266
      %s272 = vtos %v271
      %v273 = vld [vmem:[%s238] sm:$0xff]
      %v274 = vpack.c.bf16 %v273, %v273
      %vm275 = vcmask 64512
      %v277 = vsel %vm275, %v255, 0
      %v280 = vsel %vm275, %v274, 0
      %282 = vmatpush.bf16.xpose.msra.mxu0 0
      %283 = vmatpush.bf16.xpose.msra.mxu0 0
      %284 = vmatpush.bf16.xpose.msra.mxu0 0
      %285 = vmatpush.bf16.xpose.msra.mxu0 0
      %286 = vmatpush.bf16.xpose.msra.mxu0 0
      %287 = vmatpush.bf16.xpose.msra.mxu0 0
      %288 = vmatpush.bf16.xpose.msra.mxu0 0
      %289 = vmatpush.bf16.xpose.msra.mxu0 %v280
      %290 = vmatmul.bf16.gmra.mxu0 %v277
      %v291 = vpop.f32.mrf.mxu0
      %v292 = vadd.f32 0.0, %v291
      %v293 = vpop.f32.mrf.mxu0
      %294 = vdwg.mxu0
      %v295 = vstv %s272
      %v296 = vmul.f32 %v292, %v295
      loop: start=0, step=1, limit=6
      $region37: #{nystrom_attention.9} parent=35 // loop_pre_header
        _
      $region38: #{nystrom_attention.9} parent=35 // loop_header
        %s298 = sphi 0, %s302
        %p299 = scmp.ge.s32.totalorder %s298, 6
        %v303 = vphi %v296, %v385
      $region39: #{nystrom_attention.9} parent=35 // loop_header_branch
        %301 = sbr.rel (%p299) target = $region43
      $region40: #{nystrom_attention.9} parent=35 // loop_body
        %v304 = vpack.c.bf16 %v303, %v303
        %vm305 = vcmask 1043456
        %v307 = vsel %vm305, %v304, 0
        %309 = vmatpush.bf16.msra.mxu0 0
        %310 = vmatpush.bf16.msra.mxu0 0
        %311 = vmatpush.bf16.msra.mxu0 0
        %312 = vmatpush.bf16.msra.mxu0 0
        %313 = vmatpush.bf16.msra.mxu0 0
        %314 = vmatpush.bf16.msra.mxu0 0
        %315 = vmatpush.bf16.msra.mxu0 0
        %316 = vmatpush.bf16.msra.mxu0 %v307
        %317 = vmatmul.bf16.gmra.mxu0 %v280
        %v318 = vpop.f32.mrf.mxu0
        %v319 = vadd.f32 0.0, %v318
        %v320 = vpop.f32.mrf.mxu0
        %321 = vdwg.mxu0
        %v322 = vpack.c.bf16 %v319, %v319
        %v323 = vmul.f32 %v254, 7.0
        %v324 = vsub.f32 %v323, %v319
        %v325 = vmul.f32 %v254, 15.0
        %v326 = vpack.c.bf16 %v324, %v324
        %v328 = vsel %vm275, %v322, 0
        %v331 = vsel %vm305, %v326, 0
        %333 = vmatpush.bf16.msra.mxu0 0
        %334 = vmatpush.bf16.msra.mxu0 0
        %335 = vmatpush.bf16.msra.mxu0 0
        %336 = vmatpush.bf16.msra.mxu0 0
        %337 = vmatpush.bf16.msra.mxu0 0
        %338 = vmatpush.bf16.msra.mxu0 0
        %339 = vmatpush.bf16.msra.mxu0 0
        %340 = vmatpush.bf16.msra.mxu0 %v331
        %341 = vmatmul.bf16.gmra.mxu0 %v328
        %v342 = vpop.f32.mrf.mxu0
        %v343 = vadd.f32 0.0, %v342
        %v344 = vpop.f32.mrf.mxu0
        %345 = vdwg.mxu0
        %v346 = vsub.f32 %v325, %v343
        %v347 = vmul.f32 %v254, 13.0
        %v348 = vpack.c.bf16 %v346, %v346
        %v350 = vsel %vm305, %v348, 0
        %352 = vmatpush.bf16.msra.mxu0 0
        %353 = vmatpush.bf16.msra.mxu0 0
        %354 = vmatpush.bf16.msra.mxu0 0
        %355 = vmatpush.bf16.msra.mxu0 0
        %356 = vmatpush.bf16.msra.mxu0 0
        %357 = vmatpush.bf16.msra.mxu0 0
        %358 = vmatpush.bf16.msra.mxu0 0
        %359 = vmatpush.bf16.msra.mxu0 %v350
        %360 = vmatmul.bf16.gmra.mxu0 %v328
        %v361 = vpop.f32.mrf.mxu0
        %v362 = vadd.f32 0.0, %v361
        %v363 = vpop.f32.mrf.mxu0
        %364 = vdwg.mxu0
        %v365 = vsub.f32 %v347, %v362
        %v366 = vpack.c.bf16 %v365, %v365
        %v367 = vsel %vm275, %v304, 0
        %v370 = vsel %vm305, %v366, 0
        %372 = vmatpush.bf16.msra.mxu0 0
        %373 = vmatpush.bf16.msra.mxu0 0
        %374 = vmatpush.bf16.msra.mxu0 0
        %375 = vmatpush.bf16.msra.mxu0 0
        %376 = vmatpush.bf16.msra.mxu0 0
        %377 = vmatpush.bf16.msra.mxu0 0
        %378 = vmatpush.bf16.msra.mxu0 0
        %379 = vmatpush.bf16.msra.mxu0 %v370
        %380 = vmatmul.bf16.gmra.mxu0 %v367
        %v381 = vpop.f32.mrf.mxu0
        %v382 = vadd.f32 0.0, %v381
        %v383 = vpop.f32.mrf.mxu0
        %384 = vdwg.mxu0
        %v385 = vmul.f32 %v382, 0.25
      $region41: #{nystrom_attention.9} parent=35 // loop_footer
        %s302 = sadd.s32 1, %s298
      $region42: #{nystrom_attention.9} parent=35 // loop_footer_branch
        %297 = sbr.rel target = $region38
      $region43: #{nystrom_attention.9} parent=35 // loop_exit
        _
      %v386 = vld [vmem:[%s245] sm:$0xff]
      %v387 = vpack.c.bf16 %v303, %v303
      %v388 = vpack.c.bf16 %v386, %v386
      %v390 = vsel %vm275, %v387, 0
      %vm392 = vcmask 1043456
      %v394 = vsel %vm392, %v388, 0
      %396 = vmatpush.bf16.msra.mxu0 0
      %397 = vmatpush.bf16.msra.mxu0 0
      %398 = vmatpush.bf16.msra.mxu0 0
      %399 = vmatpush.bf16.msra.mxu0 0
      %400 = vmatpush.bf16.msra.mxu0 0
      %401 = vmatpush.bf16.msra.mxu0 0
      %402 = vmatpush.bf16.msra.mxu0 0
      %403 = vmatpush.bf16.msra.mxu0 %v394
      %404 = vmatmul.bf16.gmra.mxu0 %v390
      %v405 = vpop.f32.mrf.mxu0
      %v406 = vadd.f32 0.0, %v405
      %v407 = vpop.f32.mrf.mxu0
      %408 = vdwg.mxu0
      %v409 = vpack.c.bf16 %v406, %v406
      %vm410 = vcmask 60416
      %411 = vst.msk [vmem:[%s252] sm:$0xf] %vm410, %v409
      %v412 = vld [vmem:[%s238] sm:$0xff]
      %v413 = vpack.c.bf16 %v412, %v412
      %415 = vrot.lane.b32.xlu0 %v413, 120
      %v416 = vpop.permute.xlu0 %415
      %v418 = vsel %vm275, %v416, 0
      %420 = vmatpush.bf16.xpose.msra.mxu0 0
      %421 = vmatpush.bf16.xpose.msra.mxu0 0
      %422 = vmatpush.bf16.xpose.msra.mxu0 0
      %423 = vmatpush.bf16.xpose.msra.mxu0 0
      %424 = vmatpush.bf16.xpose.msra.mxu0 0
      %425 = vmatpush.bf16.xpose.msra.mxu0 0
      %426 = vmatpush.bf16.xpose.msra.mxu0 0
      %427 = vmatpush.bf16.xpose.msra.mxu0 %v418
      %428 = vmatmul.bf16.gmra.mxu0 %v277
      %v429 = vpop.f32.mrf.mxu0
      %v430 = vadd.f32 0.0, %v429
      %v431 = vpop.f32.mrf.mxu0
      %432 = vdwg.mxu0
      %v433 = vmul.f32 %v430, %v295
      loop: start=0, step=1, limit=6
      $region44: #{nystrom_attention.9} parent=35 // loop_pre_header
        _
      $region45: #{nystrom_attention.9} parent=35 // loop_header
        %s435 = sphi 0, %s439
        %p436 = scmp.ge.s32.totalorder %s435, 6
        %v440 = vphi %v433, %v521
      $region46: #{nystrom_attention.9} parent=35 // loop_header_branch
        %438 = sbr.rel (%p436) target = $region50
      $region47: #{nystrom_attention.9} parent=35 // loop_body
        %v441 = vpack.c.bf16 %v440, %v440
        %v443 = vsel %vm392, %v441, 0
        %445 = vmatpush.bf16.msra.mxu0 0
        %446 = vmatpush.bf16.msra.mxu0 0
        %447 = vmatpush.bf16.msra.mxu0 0
        %448 = vmatpush.bf16.msra.mxu0 0
        %449 = vmatpush.bf16.msra.mxu0 0
        %450 = vmatpush.bf16.msra.mxu0 0
        %451 = vmatpush.bf16.msra.mxu0 0
        %452 = vmatpush.bf16.msra.mxu0 %v443
        %453 = vmatmul.bf16.gmra.mxu0 %v418
        %v454 = vpop.f32.mrf.mxu0
        %v455 = vadd.f32 0.0, %v454
        %v456 = vpop.f32.mrf.mxu0
        %457 = vdwg.mxu0
        %v458 = vpack.c.bf16 %v455, %v455
        %v459 = vmul.f32 %v254, 7.0
        %v460 = vsub.f32 %v459, %v455
        %v461 = vmul.f32 %v254, 15.0
        %v462 = vpack.c.bf16 %v460, %v460
        %v464 = vsel %vm275, %v458, 0
        %v467 = vsel %vm392, %v462, 0
        %469 = vmatpush.bf16.msra.mxu0 0
        %470 = vmatpush.bf16.msra.mxu0 0
        %471 = vmatpush.bf16.msra.mxu0 0
        %472 = vmatpush.bf16.msra.mxu0 0
        %473 = vmatpush.bf16.msra.mxu0 0
        %474 = vmatpush.bf16.msra.mxu0 0
        %475 = vmatpush.bf16.msra.mxu0 0
        %476 = vmatpush.bf16.msra.mxu0 %v467
        %477 = vmatmul.bf16.gmra.mxu0 %v464
        %v478 = vpop.f32.mrf.mxu0
        %v479 = vadd.f32 0.0, %v478
        %v480 = vpop.f32.mrf.mxu0
        %481 = vdwg.mxu0
        %v482 = vsub.f32 %v461, %v479
        %v483 = vmul.f32 %v254, 13.0
        %v484 = vpack.c.bf16 %v482, %v482
        %v486 = vsel %vm392, %v484, 0
        %488 = vmatpush.bf16.msra.mxu0 0
        %489 = vmatpush.bf16.msra.mxu0 0
        %490 = vmatpush.bf16.msra.mxu0 0
        %491 = vmatpush.bf16.msra.mxu0 0
        %492 = vmatpush.bf16.msra.mxu0 0
        %493 = vmatpush.bf16.msra.mxu0 0
        %494 = vmatpush.bf16.msra.mxu0 0
        %495 = vmatpush.bf16.msra.mxu0 %v486
        %496 = vmatmul.bf16.gmra.mxu0 %v464
        %v497 = vpop.f32.mrf.mxu0
        %v498 = vadd.f32 0.0, %v497
        %v499 = vpop.f32.mrf.mxu0
        %500 = vdwg.mxu0
        %v501 = vsub.f32 %v483, %v498
        %v502 = vpack.c.bf16 %v501, %v501
        %v503 = vsel %vm275, %v441, 0
        %v506 = vsel %vm392, %v502, 0
        %508 = vmatpush.bf16.msra.mxu0 0
        %509 = vmatpush.bf16.msra.mxu0 0
        %510 = vmatpush.bf16.msra.mxu0 0
        %511 = vmatpush.bf16.msra.mxu0 0
        %512 = vmatpush.bf16.msra.mxu0 0
        %513 = vmatpush.bf16.msra.mxu0 0
        %514 = vmatpush.bf16.msra.mxu0 0
        %515 = vmatpush.bf16.msra.mxu0 %v506
        %516 = vmatmul.bf16.gmra.mxu0 %v503
        %v517 = vpop.f32.mrf.mxu0
        %v518 = vadd.f32 0.0, %v517
        %v519 = vpop.f32.mrf.mxu0
        %520 = vdwg.mxu0
        %v521 = vmul.f32 %v518, 0.25
      $region48: #{nystrom_attention.9} parent=35 // loop_footer
        %s439 = sadd.s32 1, %s435
      $region49: #{nystrom_attention.9} parent=35 // loop_footer_branch
        %434 = sbr.rel target = $region45
      $region50: #{nystrom_attention.9} parent=35 // loop_exit
        _
      %v522 = vld [vmem:[%s245] sm:$0xff]
      %v523 = vpack.c.bf16 %v440, %v440
      %v524 = vpack.c.bf16 %v522, %v522
      %526 = vrot.lane.b32.xlu0 %v524, 120
      %v527 = vpop.permute.xlu0 %526
      %v529 = vsel %vm275, %v523, 0
      %v532 = vsel %vm392, %v527, 0
      %534 = vmatpush.bf16.msra.mxu0 0
      %535 = vmatpush.bf16.msra.mxu0 0
      %536 = vmatpush.bf16.msra.mxu0 0
      %537 = vmatpush.bf16.msra.mxu0 0
      %538 = vmatpush.bf16.msra.mxu0 0
      %539 = vmatpush.bf16.msra.mxu0 0
      %540 = vmatpush.bf16.msra.mxu0 0
      %541 = vmatpush.bf16.msra.mxu0 %v532
      %542 = vmatmul.bf16.gmra.mxu0 %v529
      %v543 = vpop.f32.mrf.mxu0
      %v544 = vadd.f32 0.0, %v543
      %v545 = vpop.f32.mrf.mxu0
      %546 = vdwg.mxu0
      %v547 = vpack.c.bf16 %v544, %v544
      %549 = vrot.lane.b32.xlu0 %v547, 8
      %v550 = vpop.permute.xlu0 %549
      %vm552 = vcmask 126016
      %553 = vst.msk [vmem:[%s252] sm:$0xf] %vm552, %v550
      %v554 = vld [vmem:[%s238] sm:$0xff]
      %v555 = vpack.c.bf16 %v554, %v554
      %557 = vrot.lane.b32.xlu0 %v555, 112
      %v558 = vpop.permute.xlu0 %557
      %v560 = vsel %vm275, %v558, 0
      %562 = vmatpush.bf16.xpose.msra.mxu0 0
      %563 = vmatpush.bf16.xpose.msra.mxu0 0
      %564 = vmatpush.bf16.xpose.msra.mxu0 0
      %565 = vmatpush.bf16.xpose.msra.mxu0 0
      %566 = vmatpush.bf16.xpose.msra.mxu0 0
      %567 = vmatpush.bf16.xpose.msra.mxu0 0
      %568 = vmatpush.bf16.xpose.msra.mxu0 0
      %569 = vmatpush.bf16.xpose.msra.mxu0 %v560
      %570 = vmatmul.bf16.gmra.mxu0 %v277
      %v571 = vpop.f32.mrf.mxu0
      %v572 = vadd.f32 0.0, %v571
      %v573 = vpop.f32.mrf.mxu0
      %574 = vdwg.mxu0
      %v575 = vmul.f32 %v572, %v295
      loop: start=0, step=1, limit=6
      $region51: #{nystrom_attention.9} parent=35 // loop_pre_header
        _
      $region52: #{nystrom_attention.9} parent=35 // loop_header
        %s577 = sphi 0, %s581
        %p578 = scmp.ge.s32.totalorder %s577, 6
        %v582 = vphi %v575, %v663
      $region53: #{nystrom_attention.9} parent=35 // loop_header_branch
        %580 = sbr.rel (%p578) target = $region57
      $region54: #{nystrom_attention.9} parent=35 // loop_body
        %v583 = vpack.c.bf16 %v582, %v582
        %v585 = vsel %vm392, %v583, 0
        %587 = vmatpush.bf16.msra.mxu0 0
        %588 = vmatpush.bf16.msra.mxu0 0
        %589 = vmatpush.bf16.msra.mxu0 0
        %590 = vmatpush.bf16.msra.mxu0 0
        %591 = vmatpush.bf16.msra.mxu0 0
        %592 = vmatpush.bf16.msra.mxu0 0
        %593 = vmatpush.bf16.msra.mxu0 0
        %594 = vmatpush.bf16.msra.mxu0 %v585
        %595 = vmatmul.bf16.gmra.mxu0 %v560
        %v596 = vpop.f32.mrf.mxu0
        %v597 = vadd.f32 0.0, %v596
        %v598 = vpop.f32.mrf.mxu0
        %599 = vdwg.mxu0
        %v600 = vpack.c.bf16 %v597, %v597
        %v601 = vmul.f32 %v254, 7.0
        %v602 = vsub.f32 %v601, %v597
        %v603 = vmul.f32 %v254, 15.0
        %v604 = vpack.c.bf16 %v602, %v602
        %v606 = vsel %vm275, %v600, 0
        %v609 = vsel %vm392, %v604, 0
        %611 = vmatpush.bf16.msra.mxu0 0
        %612 = vmatpush.bf16.msra.mxu0 0
        %613 = vmatpush.bf16.msra.mxu0 0
        %614 = vmatpush.bf16.msra.mxu0 0
        %615 = vmatpush.bf16.msra.mxu0 0
        %616 = vmatpush.bf16.msra.mxu0 0
        %617 = vmatpush.bf16.msra.mxu0 0
        %618 = vmatpush.bf16.msra.mxu0 %v609
        %619 = vmatmul.bf16.gmra.mxu0 %v606
        %v620 = vpop.f32.mrf.mxu0
        %v621 = vadd.f32 0.0, %v620
        %v622 = vpop.f32.mrf.mxu0
        %623 = vdwg.mxu0
        %v624 = vsub.f32 %v603, %v621
        %v625 = vmul.f32 %v254, 13.0
        %v626 = vpack.c.bf16 %v624, %v624
        %v628 = vsel %vm392, %v626, 0
        %630 = vmatpush.bf16.msra.mxu0 0
        %631 = vmatpush.bf16.msra.mxu0 0
        %632 = vmatpush.bf16.msra.mxu0 0
        %633 = vmatpush.bf16.msra.mxu0 0
        %634 = vmatpush.bf16.msra.mxu0 0
        %635 = vmatpush.bf16.msra.mxu0 0
        %636 = vmatpush.bf16.msra.mxu0 0
        %637 = vmatpush.bf16.msra.mxu0 %v628
        %638 = vmatmul.bf16.gmra.mxu0 %v606
        %v639 = vpop.f32.mrf.mxu0
        %v640 = vadd.f32 0.0, %v639
        %v641 = vpop.f32.mrf.mxu0
        %642 = vdwg.mxu0
        %v643 = vsub.f32 %v625, %v640
        %v644 = vpack.c.bf16 %v643, %v643
        %v645 = vsel %vm275, %v583, 0
        %v648 = vsel %vm392, %v644, 0
        %650 = vmatpush.bf16.msra.mxu0 0
        %651 = vmatpush.bf16.msra.mxu0 0
        %652 = vmatpush.bf16.msra.mxu0 0
        %653 = vmatpush.bf16.msra.mxu0 0
        %654 = vmatpush.bf16.msra.mxu0 0
        %655 = vmatpush.bf16.msra.mxu0 0
        %656 = vmatpush.bf16.msra.mxu0 0
        %657 = vmatpush.bf16.msra.mxu0 %v648
        %658 = vmatmul.bf16.gmra.mxu0 %v645
        %v659 = vpop.f32.mrf.mxu0
        %v660 = vadd.f32 0.0, %v659
        %v661 = vpop.f32.mrf.mxu0
        %662 = vdwg.mxu0
        %v663 = vmul.f32 %v660, 0.25
      $region55: #{nystrom_attention.9} parent=35 // loop_footer
        %s581 = sadd.s32 1, %s577
      $region56: #{nystrom_attention.9} parent=35 // loop_footer_branch
        %576 = sbr.rel target = $region52
      $region57: #{nystrom_attention.9} parent=35 // loop_exit
        _
      %v664 = vld [vmem:[%s245] sm:$0xff]
      %v665 = vpack.c.bf16 %v582, %v582
      %v666 = vpack.c.bf16 %v664, %v664
      %668 = vrot.lane.b32.xlu0 %v666, 112
      %v669 = vpop.permute.xlu0 %668
      %v671 = vsel %vm275, %v665, 0
      %v674 = vsel %vm392, %v669, 0
      %676 = vmatpush.bf16.msra.mxu0 0
      %677 = vmatpush.bf16.msra.mxu0 0
      %678 = vmatpush.bf16.msra.mxu0 0
      %679 = vmatpush.bf16.msra.mxu0 0
      %680 = vmatpush.bf16.msra.mxu0 0
      %681 = vmatpush.bf16.msra.mxu0 0
      %682 = vmatpush.bf16.msra.mxu0 0
      %683 = vmatpush.bf16.msra.mxu0 %v674
      %684 = vmatmul.bf16.gmra.mxu0 %v671
      %v685 = vpop.f32.mrf.mxu0
      %v686 = vadd.f32 0.0, %v685
      %v687 = vpop.f32.mrf.mxu0
      %688 = vdwg.mxu0
      %v689 = vpack.c.bf16 %v686, %v686
      %691 = vrot.lane.b32.xlu0 %v689, 16
      %v692 = vpop.permute.xlu0 %691
      %vm694 = vcmask 191616
      %695 = vst.msk [vmem:[%s252] sm:$0xf] %vm694, %v692
      %v696 = vld [vmem:[%s238] sm:$0xff]
      %v697 = vpack.c.bf16 %v696, %v696
      %699 = vrot.lane.b32.xlu0 %v697, 104
      %v700 = vpop.permute.xlu0 %699
      %v702 = vsel %vm275, %v700, 0
      %704 = vmatpush.bf16.xpose.msra.mxu0 0
      %705 = vmatpush.bf16.xpose.msra.mxu0 0
      %706 = vmatpush.bf16.xpose.msra.mxu0 0
      %707 = vmatpush.bf16.xpose.msra.mxu0 0
      %708 = vmatpush.bf16.xpose.msra.mxu0 0
      %709 = vmatpush.bf16.xpose.msra.mxu0 0
      %710 = vmatpush.bf16.xpose.msra.mxu0 0
      %711 = vmatpush.bf16.xpose.msra.mxu0 %v702
      %712 = vmatmul.bf16.gmra.mxu0 %v277
      %v713 = vpop.f32.mrf.mxu0
      %v714 = vadd.f32 0.0, %v713
      %v715 = vpop.f32.mrf.mxu0
      %716 = vdwg.mxu0
      %v717 = vmul.f32 %v714, %v295
      loop: start=0, step=1, limit=6
      $region58: #{nystrom_attention.9} parent=35 // loop_pre_header
        _
      $region59: #{nystrom_attention.9} parent=35 // loop_header
        %s719 = sphi 0, %s723
        %p720 = scmp.ge.s32.totalorder %s719, 6
        %v724 = vphi %v717, %v805
      $region60: #{nystrom_attention.9} parent=35 // loop_header_branch
        %722 = sbr.rel (%p720) target = $region64
      $region61: #{nystrom_attention.9} parent=35 // loop_body
        %v725 = vpack.c.bf16 %v724, %v724
        %v727 = vsel %vm392, %v725, 0
        %729 = vmatpush.bf16.msra.mxu0 0
        %730 = vmatpush.bf16.msra.mxu0 0
        %731 = vmatpush.bf16.msra.mxu0 0
        %732 = vmatpush.bf16.msra.mxu0 0
        %733 = vmatpush.bf16.msra.mxu0 0
        %734 = vmatpush.bf16.msra.mxu0 0
        %735 = vmatpush.bf16.msra.mxu0 0
        %736 = vmatpush.bf16.msra.mxu0 %v727
        %737 = vmatmul.bf16.gmra.mxu0 %v702
        %v738 = vpop.f32.mrf.mxu0
        %v739 = vadd.f32 0.0, %v738
        %v740 = vpop.f32.mrf.mxu0
        %741 = vdwg.mxu0
        %v742 = vpack.c.bf16 %v739, %v739
        %v743 = vmul.f32 %v254, 7.0
        %v744 = vsub.f32 %v743, %v739
        %v745 = vmul.f32 %v254, 15.0
        %v746 = vpack.c.bf16 %v744, %v744
        %v748 = vsel %vm275, %v742, 0
        %v751 = vsel %vm392, %v746, 0
        %753 = vmatpush.bf16.msra.mxu0 0
        %754 = vmatpush.bf16.msra.mxu0 0
        %755 = vmatpush.bf16.msra.mxu0 0
        %756 = vmatpush.bf16.msra.mxu0 0
        %757 = vmatpush.bf16.msra.mxu0 0
        %758 = vmatpush.bf16.msra.mxu0 0
        %759 = vmatpush.bf16.msra.mxu0 0
        %760 = vmatpush.bf16.msra.mxu0 %v751
        %761 = vmatmul.bf16.gmra.mxu0 %v748
        %v762 = vpop.f32.mrf.mxu0
        %v763 = vadd.f32 0.0, %v762
        %v764 = vpop.f32.mrf.mxu0
        %765 = vdwg.mxu0
        %v766 = vsub.f32 %v745, %v763
        %v767 = vmul.f32 %v254, 13.0
        %v768 = vpack.c.bf16 %v766, %v766
        %v770 = vsel %vm392, %v768, 0
        %772 = vmatpush.bf16.msra.mxu0 0
        %773 = vmatpush.bf16.msra.mxu0 0
        %774 = vmatpush.bf16.msra.mxu0 0
        %775 = vmatpush.bf16.msra.mxu0 0
        %776 = vmatpush.bf16.msra.mxu0 0
        %777 = vmatpush.bf16.msra.mxu0 0
        %778 = vmatpush.bf16.msra.mxu0 0
        %779 = vmatpush.bf16.msra.mxu0 %v770
        %780 = vmatmul.bf16.gmra.mxu0 %v748
        %v781 = vpop.f32.mrf.mxu0
        %v782 = vadd.f32 0.0, %v781
        %v783 = vpop.f32.mrf.mxu0
        %784 = vdwg.mxu0
        %v785 = vsub.f32 %v767, %v782
        %v786 = vpack.c.bf16 %v785, %v785
        %v787 = vsel %vm275, %v725, 0
        %v790 = vsel %vm392, %v786, 0
        %792 = vmatpush.bf16.msra.mxu0 0
        %793 = vmatpush.bf16.msra.mxu0 0
        %794 = vmatpush.bf16.msra.mxu0 0
        %795 = vmatpush.bf16.msra.mxu0 0
        %796 = vmatpush.bf16.msra.mxu0 0
        %797 = vmatpush.bf16.msra.mxu0 0
        %798 = vmatpush.bf16.msra.mxu0 0
        %799 = vmatpush.bf16.msra.mxu0 %v790
        %800 = vmatmul.bf16.gmra.mxu0 %v787
        %v801 = vpop.f32.mrf.mxu0
        %v802 = vadd.f32 0.0, %v801
        %v803 = vpop.f32.mrf.mxu0
        %804 = vdwg.mxu0
        %v805 = vmul.f32 %v802, 0.25
      $region62: #{nystrom_attention.9} parent=35 // loop_footer
        %s723 = sadd.s32 1, %s719
      $region63: #{nystrom_attention.9} parent=35 // loop_footer_branch
        %718 = sbr.rel target = $region59
      $region64: #{nystrom_attention.9} parent=35 // loop_exit
        _
      %v806 = vld [vmem:[%s245] sm:$0xff]
      %v807 = vpack.c.bf16 %v724, %v724
      %v808 = vpack.c.bf16 %v806, %v806
      %810 = vrot.lane.b32.xlu0 %v808, 104
      %v811 = vpop.permute.xlu0 %810
      %v813 = vsel %vm275, %v807, 0
      %v816 = vsel %vm392, %v811, 0
      %818 = vmatpush.bf16.msra.mxu0 0
      %819 = vmatpush.bf16.msra.mxu0 0
      %820 = vmatpush.bf16.msra.mxu0 0
      %821 = vmatpush.bf16.msra.mxu0 0
      %822 = vmatpush.bf16.msra.mxu0 0
      %823 = vmatpush.bf16.msra.mxu0 0
      %824 = vmatpush.bf16.msra.mxu0 0
      %825 = vmatpush.bf16.msra.mxu0 %v816
      %826 = vmatmul.bf16.gmra.mxu0 %v813
      %v827 = vpop.f32.mrf.mxu0
      %v828 = vadd.f32 0.0, %v827
      %v829 = vpop.f32.mrf.mxu0
      %830 = vdwg.mxu0
      %v831 = vpack.c.bf16 %v828, %v828
      %833 = vrot.lane.b32.xlu0 %v831, 24
      %v834 = vpop.permute.xlu0 %833
      %vm836 = vcmask 257216
      %837 = vst.msk [vmem:[%s252] sm:$0xf] %vm836, %v834
      %p838 = scmp.lt.s32.totalorder %s20, 1
      %s839 = scalar_select %p838, %s20, 1
      %p840 = scmp.lt.s32.totalorder %s21, 0
      %s841 = scalar_select %p840, %s21, 0
      %s842 = sadd.s32 %s841, %s839
      %s843 = smul.addr %s842, 4
      %s844 = scalar_lea.vmem %s4, %s843
      // Predicated region
      $region65: #{nystrom_attention.9} parent=35 // pred_check
        %p845 = pneg %p146
      $region66: #{nystrom_attention.9} parent=35 // pred_check_branch
        %847 = sbr.rel (%p845) target = $region68
      $region67: #{nystrom_attention.9} parent=35 // pred_region
        _
      $region68: #{nystrom_attention.9} parent=35 // pred_fallthru
        _
    $region36: #{nystrom_attention.9} parent=5 // pred_fallthru
      _
    %p848 = scmp.le.s32.totalorder 2, %s11
    // Predicated region
    $region69: #{nystrom_attention.9} parent=5 // pred_check
      %p849 = pneg %p848
    $region70: #{nystrom_attention.9} parent=5 // pred_check_branch
      %851 = sbr.rel (%p849) target = $region72
    $region71: #{nystrom_attention.9} parent=5 // pred_region
      %s852 = ssub.s32 %s11, 2
      // Predicated region
      $region73: #{nystrom_attention.9} parent=71 // pred_check
        %p853 = pneg %p152
      $region74: #{nystrom_attention.9} parent=71 // pred_check_branch
        %855 = sbr.rel (%p853) target = $region76
      $region75: #{nystrom_attention.9} parent=71 // pred_region
        %p856 = scmp.lt.s32.totalorder %s22, 1
        %s857 = scalar_select %p856, %s22, 1
        %p858 = scmp.lt.s32.totalorder %s23, 0
        %s859 = scalar_select %p858, %s23, 0
        %s860 = sadd.s32 %s859, %s857
        %s861 = smul.addr %s860, 4
        %s862 = scalar_lea.vmem %s4, %s861
      $region76: #{nystrom_attention.9} parent=71 // pred_fallthru
        _
    $region72: #{nystrom_attention.9} parent=5 // pred_fallthru
      _
  $region6: #{nystrom_attention.9} parent=0 // loop_footer
    %s15 = sadd.s32 1, %s11
  $region7: #{nystrom_attention.9} parent=0 // loop_footer_branch
    %10 = sbr.rel target = $region3
  $region8: #{nystrom_attention.9} parent=0 // loop_exit
    _

// kernel: nystrom_attention.11
$region0: #{nystrom_attention.11}
  #allocation0 [shape = 'u32[]', space=smem, size = 0x4, offset = 0x4, fixed_abs, tag = 'smem constant byte address 0x4 - core index']
  #allocation1 [shape = 'u32[72,128]{1,0:T(1,128)}', space=vmem, size = 0x9000, scoped, tag = 'internal scratch']
  %s0 = inlined_call_operand.vmem [shape: bf16[32,32], index: 0, kind: input, shape index: {}]
  %s1 = inlined_call_operand.vmem [shape: bf16[32,32], index: 1, kind: input, shape index: {}]
  %s2 = inlined_call_operand.vmem [shape: f32[1,32], index: 2, kind: input, shape index: {}]
  %s3 = inlined_call_operand.vmem [shape: f32[32,32], index: 3, kind: output, shape index: {}]
  %s4 = sld [smem:[#allocation0]]
  $region22: #{nystrom_attention.11} parent=0
    _
  %s6 = ssub.s32 1, %s4
  %s7 = scalar_select 0, %s6, %s4
  // Predicated region
  $region2: #{nystrom_attention.11} parent=0 // pred_check
    _
  $region3: #{nystrom_attention.11} parent=0 // pred_check_branch
    %9 = sbr.rel (0) target = $region5
  $region4: #{nystrom_attention.11} parent=0 // pred_region
    _
  $region5: #{nystrom_attention.11} parent=0 // pred_fallthru
    _
  // Predicated region
  $region6: #{nystrom_attention.11} parent=0 // pred_check
    _
  $region7: #{nystrom_attention.11} parent=0 // pred_check_branch
    %11 = sbr.rel (0) target = $region9
  $region8: #{nystrom_attention.11} parent=0 // pred_region
    _
  $region9: #{nystrom_attention.11} parent=0 // pred_fallthru
    _
  // Predicated region
  $region10: #{nystrom_attention.11} parent=0 // pred_check
    _
  $region11: #{nystrom_attention.11} parent=0 // pred_check_branch
    %13 = sbr.rel (0) target = $region13
  $region12: #{nystrom_attention.11} parent=0 // pred_region
    _
  $region13: #{nystrom_attention.11} parent=0 // pred_fallthru
    _
  %v15 = vld [vmem:[%s0] sm:$0xf]
  %v16 = vld [vmem:[%s0 + $0x4] sm:$0xf]
  %v17 = vld [vmem:[%s0 + $0x8] sm:$0xf]
  %v18 = vld [vmem:[%s0 + $0xc] sm:$0xf]
  %v19 = vld [vmem:[%s1] sm:$0xf]
  %v20 = vld [vmem:[%s1 + $0x4] sm:$0xf]
  %v21 = vld [vmem:[%s1 + $0x8] sm:$0xf]
  %v22 = vld [vmem:[%s1 + $0xc] sm:$0xf]
  %v23 = vld [vmem:[%s2] sm:$0x1]
  %v25 = vperm.slane %v23, 0
  %v31 = vunpack.c.l.b16 %v15
  %v32 = vunpack.c.l.b16 %v16
  %v33 = vunpack.c.l.b16 %v17
  %v34 = vunpack.c.l.b16 %v18
  %v35 = vpack.c.b16 %v32, %v31
  %v36 = vpack.c.b16 %v34, %v33
  %v41 = vunpack.c.l.b16 %v19
  %v42 = vunpack.c.l.b16 %v20
  %v43 = vunpack.c.l.b16 %v21
  %v44 = vunpack.c.l.b16 %v22
  %v45 = vpack.c.b16 %v42, %v41
  %v46 = vpack.c.b16 %v44, %v43
  %vm49 = vcmask 261120
  %v51 = vsel %vm49, %v35, 0
  %v54 = vsel %vm49, %v36, 0
  %56 = vmatpush.bf16.msra.mxu0 0
  %57 = vmatpush.bf16.msra.mxu0 0
  %58 = vmatpush.bf16.msra.mxu0 0
  %59 = vmatpush.bf16.msra.mxu0 0
  %60 = vmatpush.bf16.msra.mxu0 0
  %61 = vmatpush.bf16.msra.mxu0 0
  %62 = vmatpush.bf16.msra.mxu0 %v46
  %63 = vmatpush.bf16.msra.mxu0 %v45
  %64 = vmatmul.bf16.gmra.mxu0 %v51
  %v65 = vpop.f32.mrf.mxu0
  %v66 = vadd.f32 %v25, %v65
  %v67 = vpop.f32.mrf.mxu0
  %v68 = vadd.f32 %v25, %v67
  %69 = vmatmul.bf16.gmra.mxu0 %v54
  %v70 = vpop.f32.mrf.mxu0
  %v71 = vadd.f32 %v25, %v70
  %v72 = vpop.f32.mrf.mxu0
  %v73 = vadd.f32 %v25, %v72
  %74 = vdwg.mxu0
  %75 = vst.msk [vmem:[%s3] sm:$0xff] %vm49, %v66
  %76 = vst.msk [vmem:[%s3 + $0x8] sm:$0xff] %vm49, %v68
  %77 = vst.msk [vmem:[%s3 + $0x10] sm:$0xff] %vm49, %v71
  %78 = vst.msk [vmem:[%s3 + $0x18] sm:$0xff] %vm49, %v73
  // Predicated region
  $region14: #{nystrom_attention.11} parent=0 // pred_check
    _
  $region15: #{nystrom_attention.11} parent=0 // pred_check_branch
    %80 = sbr.rel (0) target = $region17
  $region16: #{nystrom_attention.11} parent=0 // pred_region
    _
  $region17: #{nystrom_attention.11} parent=0 // pred_fallthru
    _
  // Predicated region
  $region18: #{nystrom_attention.11} parent=0 // pred_check
    _
  $region19: #{nystrom_attention.11} parent=0 // pred_check_branch
    %82 = sbr.rel (0) target = $region21
  $region20: #{nystrom_attention.11} parent=0 // pred_region
    _
  $region21: #{nystrom_attention.11} parent=0 // pred_fallthru
    _

// kernel: nystrom_attention.10
$region0: #{nystrom_attention.10}
  #allocation0 [shape = 'u32[]', space=smem, size = 0x4, offset = 0x4, fixed_abs, tag = 'smem constant byte address 0x4 - core index']
  #allocation1 [shape = 'u32[72,128]{1,0:T(1,128)}', space=vmem, size = 0x9000, scoped, tag = 'internal scratch']
  %s0 = inlined_call_operand.vmem [shape: bf16[2,16,32], index: 0, kind: input, shape index: {}]
  %s1 = inlined_call_operand.vmem [shape: bf16[2,1,8,32], index: 1, kind: input, shape index: {}]
  %s2 = inlined_call_operand.vmem [shape: bf16[2,1,8,32], index: 2, kind: input, shape index: {}]
  %s3 = inlined_call_operand.vmem [shape: bf16[2,16,32], index: 3, kind: input, shape index: {}]
  %s4 = inlined_call_operand.vmem [shape: bf16[2,1,32,32], index: 4, kind: input, shape index: {}]
  %s5 = inlined_call_operand.vmem [shape: f32[1,33,32], index: 5, kind: input, shape index: {}]
  %s6 = inlined_call_operand.vmem [shape: bf16[2,16,32], index: 6, kind: output, shape index: {}]
  %s7 = sld [smem:[#allocation0]]
  $region57: #{nystrom_attention.10} parent=0
    _
  %s9 = ssub.s32 1, %s7
  %s10 = scalar_select 0, %s9, %s7
  loop: start=0, step=1, limit=4
  $region2: #{nystrom_attention.10} parent=0 // loop_pre_header
    _
  $region3: #{nystrom_attention.10} parent=0 // loop_header
    %s12 = sphi 0, %s16
    %p13 = scmp.ge.s32.totalorder %s12, 4
    %s19 = sphi 0, %s38
    %s20 = sphi 0, %s34
    %s21 = sphi 0, %s30
    %s22 = sphi 0, %s19
    %s23 = sphi 0, %s20
    %s24 = sphi 0, %s21
    %s25 = sphi 0, %s22
    %s26 = sphi 0, %s23
    %s27 = sphi 0, %s24
    %s45 = sphi 0, %s47
    %s48 = sphi 0, %s45
    %s49 = sphi 0, %s48
    %s65 = sphi 0, %s49
    %s73 = sphi 0, %s75
    %s76 = sphi 0, %s73
    %s77 = sphi 0, %s76
    %s93 = sphi 0, %s77
    %s101 = sphi 0, %s103
    %s104 = sphi 0, %s101
    %s105 = sphi 0, %s104
    %s121 = sphi 0, %s105
    %s131 = sphi 0, %s133
    %s134 = sphi 0, %s131
    %s135 = sphi 0, %s134
    %s151 = sphi 0, %s135
    %s161 = sphi 0, %s163
    %s164 = sphi 0, %s161
    %s165 = sphi 0, %s164
    %s181 = sphi 0, %s165
    %s187 = sphi 0, %s189
    %s190 = sphi 0, %s187
    %s191 = sphi 0, %s190
    %s207 = sphi 0, %s191
    %s217 = sphi 0, %s219
    %s220 = sphi 0, %s217
    %s221 = sphi 0, %s220
    %s237 = sphi 0, %s221
  $region4: #{nystrom_attention.10} parent=0 // loop_header_branch
    %15 = sbr.rel (%p13) target = $region8
  $region5: #{nystrom_attention.10} parent=0 // loop_body
    %s17 = ssub.s32 %s12, 1
    %s18 = ssub.s32 %s12, 2
    %s28 = sadd.s32 1, %s21
    %p29 = scmp.ge.s32.totalorder %s28, 1
    %s30 = scalar_select %p29, 0, %s28
    %s31 = sadd.s32 1, %s20
    %s32 = scalar_select %p29, %s31, %s20
    %p33 = scmp.ge.s32.totalorder %s32, 1
    %s34 = scalar_select %p33, 0, %s32
    %s35 = sadd.s32 1, %s19
    %s36 = scalar_select %p33, %s35, %s19
    %p37 = scmp.ge.s32.totalorder %s36, 2
    %s38 = scalar_select %p37, 0, %s36
    %s39 = ssub.s32 %s19, %s38
    %s40 = ssub.s32 %s21, %s30
    %s41 = sor.u32 %s39, %s40
    %s42 = ssub.s32 %s20, %s34
    %s43 = sor.u32 %s41, %s42
    %p44 = scmp.eq.s32.totalorder %s43, 0
    %s46 = sadd.s32 %s45, 1
    %s47 = scalar_select %p44, %s45, %s46
    %p50 = pneg %p44
    %p51 = scmp.eq.s32.totalorder %s12, 1
    %p52 = por %p50, %p51
    %p53 = scmp.ne.s32.totalorder %s45, %s48
    %p54 = scmp.eq.s32.totalorder %s12, 0
    %p55 = por %p53, %p54
    %p56 = scmp.ne.s32.totalorder %s45, %s48
    %p57 = scmp.eq.s32.totalorder %s17, 1
    %p58 = por %p56, %p57
    %p59 = scmp.ne.s32.totalorder %s48, %s49
    %p60 = scmp.eq.s32.totalorder %s17, 0
    %p61 = por %p59, %p60
    %p62 = scmp.ne.s32.totalorder %s48, %s49
    %p63 = scmp.eq.s32.totalorder %s18, 1
    %p64 = por %p62, %p63
    %p66 = scmp.ne.s32.totalorder %s49, %s65
    %p67 = scmp.eq.s32.totalorder %s18, 0
    %p68 = por %p66, %p67
    %s69 = ssub.s32 %s19, %s38
    %s70 = ssub.s32 %s20, %s34
    %s71 = sor.u32 %s69, %s70
    %p72 = scmp.eq.s32.totalorder %s71, 0
    %s74 = sadd.s32 %s73, 1
    %s75 = scalar_select %p72, %s73, %s74
    %p78 = pneg %p72
    %p79 = scmp.eq.s32.totalorder %s12, 1
    %p80 = por %p78, %p79
    %p81 = scmp.ne.s32.totalorder %s73, %s76
    %p82 = scmp.eq.s32.totalorder %s12, 0
    %p83 = por %p81, %p82
    %p84 = scmp.ne.s32.totalorder %s73, %s76
    %p85 = scmp.eq.s32.totalorder %s17, 1
    %p86 = por %p84, %p85
    %p87 = scmp.ne.s32.totalorder %s76, %s77
    %p88 = scmp.eq.s32.totalorder %s17, 0
    %p89 = por %p87, %p88
    %p90 = scmp.ne.s32.totalorder %s76, %s77
    %p91 = scmp.eq.s32.totalorder %s18, 1
    %p92 = por %p90, %p91
    %p94 = scmp.ne.s32.totalorder %s77, %s93
    %p95 = scmp.eq.s32.totalorder %s18, 0
    %p96 = por %p94, %p95
    %s97 = ssub.s32 %s19, %s38
    %s98 = ssub.s32 %s20, %s34
    %s99 = sor.u32 %s97, %s98
    %p100 = scmp.eq.s32.totalorder %s99, 0
    %s102 = sadd.s32 %s101, 1
    %s103 = scalar_select %p100, %s101, %s102
    %p106 = pneg %p100
    %p107 = scmp.eq.s32.totalorder %s12, 1
    %p108 = por %p106, %p107
    %p109 = scmp.ne.s32.totalorder %s101, %s104
    %p110 = scmp.eq.s32.totalorder %s12, 0
    %p111 = por %p109, %p110
    %p112 = scmp.ne.s32.totalorder %s101, %s104
    %p113 = scmp.eq.s32.totalorder %s17, 1
    %p114 = por %p112, %p113
    %p115 = scmp.ne.s32.totalorder %s104, %s105
    %p116 = scmp.eq.s32.totalorder %s17, 0
    %p117 = por %p115, %p116
    %p118 = scmp.ne.s32.totalorder %s104, %s105
    %p119 = scmp.eq.s32.totalorder %s18, 1
    %p120 = por %p118, %p119
    %p122 = scmp.ne.s32.totalorder %s105, %s121
    %p123 = scmp.eq.s32.totalorder %s18, 0
    %p124 = por %p122, %p123
    %s125 = ssub.s32 %s19, %s38
    %s126 = ssub.s32 %s21, %s30
    %s127 = sor.u32 %s125, %s126
    %s128 = ssub.s32 %s20, %s34
    %s129 = sor.u32 %s127, %s128
    %p130 = scmp.eq.s32.totalorder %s129, 0
    %s132 = sadd.s32 %s131, 1
    %s133 = scalar_select %p130, %s131, %s132
    %p136 = pneg %p130
    %p137 = scmp.eq.s32.totalorder %s12, 1
    %p138 = por %p136, %p137
    %p139 = scmp.ne.s32.totalorder %s131, %s134
    %p140 = scmp.eq.s32.totalorder %s12, 0
    %p141 = por %p139, %p140
    %p142 = scmp.ne.s32.totalorder %s131, %s134
    %p143 = scmp.eq.s32.totalorder %s17, 1
    %p144 = por %p142, %p143
    %p145 = scmp.ne.s32.totalorder %s134, %s135
    %p146 = scmp.eq.s32.totalorder %s17, 0
    %p147 = por %p145, %p146
    %p148 = scmp.ne.s32.totalorder %s134, %s135
    %p149 = scmp.eq.s32.totalorder %s18, 1
    %p150 = por %p148, %p149
    %p152 = scmp.ne.s32.totalorder %s135, %s151
    %p153 = scmp.eq.s32.totalorder %s18, 0
    %p154 = por %p152, %p153
    %s155 = ssub.s32 %s19, %s38
    %s156 = ssub.s32 %s21, %s30
    %s157 = sor.u32 %s155, %s156
    %s158 = ssub.s32 %s20, %s34
    %s159 = sor.u32 %s157, %s158
    %p160 = scmp.eq.s32.totalorder %s159, 0
    %s162 = sadd.s32 %s161, 1
    %s163 = scalar_select %p160, %s161, %s162
    %p166 = pneg %p160
    %p167 = scmp.eq.s32.totalorder %s12, 1
    %p168 = por %p166, %p167
    %p169 = scmp.ne.s32.totalorder %s161, %s164
    %p170 = scmp.eq.s32.totalorder %s12, 0
    %p171 = por %p169, %p170
    %p172 = scmp.ne.s32.totalorder %s161, %s164
    %p173 = scmp.eq.s32.totalorder %s17, 1
    %p174 = por %p172, %p173
    %p175 = scmp.ne.s32.totalorder %s164, %s165
    %p176 = scmp.eq.s32.totalorder %s17, 0
    %p177 = por %p175, %p176
    %p178 = scmp.ne.s32.totalorder %s164, %s165
    %p179 = scmp.eq.s32.totalorder %s18, 1
    %p180 = por %p178, %p179
    %p182 = scmp.ne.s32.totalorder %s165, %s181
    %p183 = scmp.eq.s32.totalorder %s18, 0
    %p184 = por %p182, %p183
    %s185 = ssub.s32 %s20, %s34
    %p186 = scmp.eq.s32.totalorder %s185, 0
    %s188 = sadd.s32 %s187, 1
    %s189 = scalar_select %p186, %s187, %s188
    %p192 = pneg %p186
    %p193 = scmp.eq.s32.totalorder %s12, 1
    %p194 = por %p192, %p193
    %p195 = scmp.ne.s32.totalorder %s187, %s190
    %p196 = scmp.eq.s32.totalorder %s12, 0
    %p197 = por %p195, %p196
    %p198 = scmp.ne.s32.totalorder %s187, %s190
    %p199 = scmp.eq.s32.totalorder %s17, 1
    %p200 = por %p198, %p199
    %p201 = scmp.ne.s32.totalorder %s190, %s191
    %p202 = scmp.eq.s32.totalorder %s17, 0
    %p203 = por %p201, %p202
    %p204 = scmp.ne.s32.totalorder %s190, %s191
    %p205 = scmp.eq.s32.totalorder %s18, 1
    %p206 = por %p204, %p205
    %p208 = scmp.ne.s32.totalorder %s191, %s207
    %p209 = scmp.eq.s32.totalorder %s18, 0
    %p210 = por %p208, %p209
    %s211 = ssub.s32 %s19, %s38
    %s212 = ssub.s32 %s21, %s30
    %s213 = sor.u32 %s211, %s212
    %s214 = ssub.s32 %s20, %s34
    %s215 = sor.u32 %s213, %s214
    %p216 = scmp.eq.s32.totalorder %s215, 0
    %s218 = sadd.s32 %s217, 1
    %s219 = scalar_select %p216, %s217, %s218
    %p222 = pneg %p216
    %p223 = scmp.eq.s32.totalorder %s12, 1
    %p224 = por %p222, %p223
    %p225 = scmp.ne.s32.totalorder %s217, %s220
    %p226 = scmp.eq.s32.totalorder %s12, 0
    %p227 = por %p225, %p226
    %p228 = scmp.ne.s32.totalorder %s217, %s220
    %p229 = scmp.eq.s32.totalorder %s17, 1
    %p230 = por %p228, %p229
    %p231 = scmp.ne.s32.totalorder %s220, %s221
    %p232 = scmp.eq.s32.totalorder %s17, 0
    %p233 = por %p231, %p232
    %p234 = scmp.ne.s32.totalorder %s220, %s221
    %p235 = scmp.eq.s32.totalorder %s18, 1
    %p236 = por %p234, %p235
    %p238 = scmp.ne.s32.totalorder %s221, %s237
    %p239 = scmp.eq.s32.totalorder %s18, 0
    %p240 = por %p238, %p239
    %p241 = scmp.le.s32.totalorder 1, %s12
    %p242 = scmp.lt.s32.totalorder %s12, 3
    %p243 = pnand %p241, %p242
    %p244 = pneg %p243
    // Predicated region
    $region9: #{nystrom_attention.10} parent=5 // pred_check
      _
    $region10: #{nystrom_attention.10} parent=5 // pred_check_branch
      %246 = sbr.rel (%p243) target = $region12
    $region11: #{nystrom_attention.10} parent=5 // pred_region
      %s247 = ssub.s32 %s12, 1
      // Predicated region
      $region13: #{nystrom_attention.10} parent=11 // pred_check
        %p248 = pneg %p203
      $region14: #{nystrom_attention.10} parent=11 // pred_check_branch
        %250 = sbr.rel (%p248) target = $region16
      $region15: #{nystrom_attention.10} parent=11 // pred_region
        %p251 = scmp.lt.s32.totalorder %s23, 0
        %s252 = scalar_select %p251, %s23, 0
        %s253 = smul.addr %s252, 5
        %s254 = smul.addr %s253, 8
        %s255 = scalar_lea.vmem %s5, %s254
      $region16: #{nystrom_attention.10} parent=11 // pred_fallthru
        _
    $region12: #{nystrom_attention.10} parent=5 // pred_fallthru
      _
    %p256 = scmp.lt.s32.totalorder %s12, 2
    // Predicated region
    $region17: #{nystrom_attention.10} parent=5 // pred_check
      %p257 = pneg %p256
    $region18: #{nystrom_attention.10} parent=5 // pred_check_branch
      %259 = sbr.rel (%p257) target = $region20
    $region19: #{nystrom_attention.10} parent=5 // pred_region
      // Predicated region
      $region21: #{nystrom_attention.10} parent=19 // pred_check
        %p260 = pneg %p55
      $region22: #{nystrom_attention.10} parent=19 // pred_check_branch
        %262 = sbr.rel (%p260) target = $region24
      $region23: #{nystrom_attention.10} parent=19 // pred_region
        %s263 = smul.u32 2, %s21
        %p264 = scmp.lt.s32.totalorder %s19, 1
        %s265 = scalar_select %p264, %s19, 1
        %p266 = scmp.lt.s32.totalorder %s263, 1
        %s267 = scalar_select %p266, %s263, 1
        %p268 = scmp.lt.s32.totalorder %s20, 0
        %s269 = scalar_select %p268, %s20, 0
        %s270 = sadd.s32 %s269, %s267
        %s271 = smul.addr %s265, 2
        %s272 = sadd.s32 %s270, %s271
        %s273 = smul.addr %s272, 4
        %s274 = scalar_lea.vmem %s0, %s273
        %s275 = smul.u32 2, %s21
      $region24: #{nystrom_attention.10} parent=19 // pred_fallthru
        _
      // Predicated region
      $region25: #{nystrom_attention.10} parent=19 // pred_check
        %p276 = pneg %p83
      $region26: #{nystrom_attention.10} parent=19 // pred_check_branch
        %278 = sbr.rel (%p276) target = $region28
      $region27: #{nystrom_attention.10} parent=19 // pred_region
        %p279 = scmp.lt.s32.totalorder %s19, 1
        %s280 = scalar_select %p279, %s19, 1
        %p281 = scmp.lt.s32.totalorder %s20, 0
        %s282 = scalar_select %p281, %s20, 0
        %s283 = sadd.s32 %s282, %s280
        %s284 = smul.addr %s283, 4
        %s285 = scalar_lea.vmem %s1, %s284
      $region28: #{nystrom_attention.10} parent=19 // pred_fallthru
        _
      // Predicated region
      $region29: #{nystrom_attention.10} parent=19 // pred_check
        %p286 = pneg %p111
      $region30: #{nystrom_attention.10} parent=19 // pred_check_branch
        %288 = sbr.rel (%p286) target = $region32
      $region31: #{nystrom_attention.10} parent=19 // pred_region
        %p289 = scmp.lt.s32.totalorder %s19, 1
        %s290 = scalar_select %p289, %s19, 1
        %p291 = scmp.lt.s32.totalorder %s20, 0
        %s292 = scalar_select %p291, %s20, 0
        %s293 = sadd.s32 %s292, %s290
        %s294 = smul.addr %s293, 4
        %s295 = scalar_lea.vmem %s2, %s294
      $region32: #{nystrom_attention.10} parent=19 // pred_fallthru
        _
      // Predicated region
      $region33: #{nystrom_attention.10} parent=19 // pred_check
        %p296 = pneg %p141
      $region34: #{nystrom_attention.10} parent=19 // pred_check_branch
        %298 = sbr.rel (%p296) target = $region36
      $region35: #{nystrom_attention.10} parent=19 // pred_region
        %s299 = smul.u32 2, %s21
        %p300 = scmp.lt.s32.totalorder %s19, 1
        %s301 = scalar_select %p300, %s19, 1
        %p302 = scmp.lt.s32.totalorder %s299, 1
        %s303 = scalar_select %p302, %s299, 1
        %p304 = scmp.lt.s32.totalorder %s20, 0
        %s305 = scalar_select %p304, %s20, 0
        %s306 = sadd.s32 %s305, %s303
        %s307 = smul.addr %s301, 2
        %s308 = sadd.s32 %s306, %s307
        %s309 = smul.addr %s308, 4
        %s310 = scalar_lea.vmem %s3, %s309
        %s311 = smul.u32 2, %s21
      $region36: #{nystrom_attention.10} parent=19 // pred_fallthru
        _
      // Predicated region
      $region37: #{nystrom_attention.10} parent=19 // pred_check
        %p312 = pneg %p171
      $region38: #{nystrom_attention.10} parent=19 // pred_check_branch
        %314 = sbr.rel (%p312) target = $region40
      $region39: #{nystrom_attention.10} parent=19 // pred_region
        %p315 = scmp.lt.s32.totalorder %s19, 1
        %s316 = scalar_select %p315, %s19, 1
        %p317 = scmp.lt.s32.totalorder %s21, 0
        %s318 = scalar_select %p317, %s21, 0
        %p319 = scmp.lt.s32.totalorder %s20, 0
        %s320 = scalar_select %p319, %s20, 0
        %s321 = smul.addr %s318, 4
        %s322 = sadd.s32 %s320, %s321
        %s323 = smul.addr %s316, 4
        %s324 = sadd.s32 %s322, %s323
        %s325 = smul.addr %s324, 4
        %s326 = scalar_lea.vmem %s4, %s325
      $region40: #{nystrom_attention.10} parent=19 // pred_fallthru
        _
    $region20: #{nystrom_attention.10} parent=5 // pred_fallthru
      _
    %p327 = scmp.le.s32.totalorder 1, %s12
    %p328 = scmp.lt.s32.totalorder %s12, 3
    %p329 = pnand %p327, %p328
    %p330 = pneg %p329
    // Predicated region
    $region41: #{nystrom_attention.10} parent=5 // pred_check
      _
    $region42: #{nystrom_attention.10} parent=5 // pred_check_branch
      %332 = sbr.rel (%p329) target = $region44
    $region43: #{nystrom_attention.10} parent=5 // pred_region
      %s333 = ssub.s32 %s12, 1
      %s334 = smul.u32 2, %s24
      %p335 = scmp.lt.s32.totalorder %s22, 1
      %s336 = scalar_select %p335, %s22, 1
      %p337 = scmp.lt.s32.totalorder %s334, 1
      %s338 = scalar_select %p337, %s334, 1
      %p339 = scmp.lt.s32.totalorder %s23, 0
      %s340 = scalar_select %p339, %s23, 0
      %s341 = sadd.s32 %s340, %s338
      %s342 = smul.addr %s336, 2
      %s343 = sadd.s32 %s341, %s342
      %s344 = smul.addr %s343, 4
      %s345 = scalar_lea.vmem %s0, %s344
      %p346 = pneg %p61
      %p347 = pneg %p58
      %p348 = scmp.lt.s32.totalorder %s22, 1
      %s349 = scalar_select %p348, %s22, 1
      %p350 = scmp.lt.s32.totalorder %s23, 0
      %s351 = scalar_select %p350, %s23, 0
      %s352 = sadd.s32 %s351, %s349
      %s353 = smul.addr %s352, 4
      %s354 = scalar_lea.vmem %s1, %s353
      %p355 = pneg %p89
      %p356 = pneg %p86
      %p357 = scmp.lt.s32.totalorder %s22, 1
      %s358 = scalar_select %p357, %s22, 1
      %p359 = scmp.lt.s32.totalorder %s23, 0
      %s360 = scalar_select %p359, %s23, 0
      %s361 = sadd.s32 %s360, %s358
      %s362 = smul.addr %s361, 4
      %s363 = scalar_lea.vmem %s2, %s362
      %p364 = pneg %p117
      %p365 = pneg %p114
      %s366 = smul.u32 2, %s24
      %p367 = scmp.lt.s32.totalorder %s22, 1
      %s368 = scalar_select %p367, %s22, 1
      %p369 = scmp.lt.s32.totalorder %s366, 1
      %s370 = scalar_select %p369, %s366, 1
      %p371 = scmp.lt.s32.totalorder %s23, 0
      %s372 = scalar_select %p371, %s23, 0
      %s373 = sadd.s32 %s372, %s370
      %s374 = smul.addr %s368, 2
      %s375 = sadd.s32 %s373, %s374
      %s376 = smul.addr %s375, 4
      %s377 = scalar_lea.vmem %s3, %s376
      %p378 = pneg %p147
      %p379 = pneg %p144
      %p380 = scmp.lt.s32.totalorder %s22, 1
      %s381 = scalar_select %p380, %s22, 1
      %p382 = scmp.lt.s32.totalorder %s24, 0
      %s383 = scalar_select %p382, %s24, 0
      %p384 = scmp.lt.s32.totalorder %s23, 0
      %s385 = scalar_select %p384, %s23, 0
      %s386 = smul.addr %s383, 4
      %s387 = sadd.s32 %s385, %s386
      %s388 = smul.addr %s381, 4
      %s389 = sadd.s32 %s387, %s388
      %s390 = smul.addr %s389, 4
      %s391 = scalar_lea.vmem %s4, %s390
      %p392 = pneg %p177
      %p393 = pneg %p174
      %p394 = scmp.lt.s32.totalorder %s23, 0
      %s395 = scalar_select %p394, %s23, 0
      %s396 = smul.addr %s395, 5
      %s397 = smul.addr %s396, 8
      %s398 = scalar_lea.vmem %s5, %s397
      %p399 = pneg %p203
      %p400 = pneg %p200
      %p401 = pneg %p233
      %p402 = pneg %p230
      %s403 = smul.u32 2, %s24
      %p404 = scmp.lt.s32.totalorder %s22, 1
      %s405 = scalar_select %p404, %s22, 1
      %p406 = scmp.lt.s32.totalorder %s403, 1
      %s407 = scalar_select %p406, %s403, 1
      %p408 = scmp.lt.s32.totalorder %s23, 0
      %s409 = scalar_select %p408, %s23, 0
      %s410 = sadd.s32 %s409, %s407
      %s411 = smul.addr %s405, 2
      %s412 = sadd.s32 %s410, %s411
      %s413 = smul.addr %s412, 4
      %s414 = scalar_lea.vmem %s6, %s413
      %s415 = smul.u32 2, %s24
      %p416 = scmp.lt.s32.totalorder %s22, 1
      %s417 = scalar_select %p416, %s22, 1
      %p418 = scmp.lt.s32.totalorder %s415, 1
      %s419 = scalar_select %p418, %s415, 1
      %p420 = scmp.lt.s32.totalorder %s23, 0
      %s421 = scalar_select %p420, %s23, 0
      %s422 = sadd.s32 %s421, %s419
      %s423 = smul.addr %s417, 2
      %s424 = sadd.s32 %s422, %s423
      %s425 = smul.addr %s424, 4
      %s426 = scalar_lea.vmem %s0, %s425
      %s427 = smul.u32 2, %s24
      %p428 = scmp.lt.s32.totalorder %s22, 1
      %s429 = scalar_select %p428, %s22, 1
      %p430 = scmp.lt.s32.totalorder %s23, 0
      %s431 = scalar_select %p430, %s23, 0
      %s432 = sadd.s32 %s431, %s429
      %s433 = smul.addr %s432, 4
      %s434 = scalar_lea.vmem %s1, %s433
      %p435 = scmp.lt.s32.totalorder %s22, 1
      %s436 = scalar_select %p435, %s22, 1
      %p437 = scmp.lt.s32.totalorder %s23, 0
      %s438 = scalar_select %p437, %s23, 0
      %s439 = sadd.s32 %s438, %s436
      %s440 = smul.addr %s439, 4
      %s441 = scalar_lea.vmem %s2, %s440
      %s442 = smul.u32 2, %s24
      %p443 = scmp.lt.s32.totalorder %s22, 1
      %s444 = scalar_select %p443, %s22, 1
      %p445 = scmp.lt.s32.totalorder %s442, 1
      %s446 = scalar_select %p445, %s442, 1
      %p447 = scmp.lt.s32.totalorder %s23, 0
      %s448 = scalar_select %p447, %s23, 0
      %s449 = sadd.s32 %s448, %s446
      %s450 = smul.addr %s444, 2
      %s451 = sadd.s32 %s449, %s450
      %s452 = smul.addr %s451, 4
      %s453 = scalar_lea.vmem %s3, %s452
      %s454 = smul.u32 2, %s24
      %p455 = scmp.lt.s32.totalorder %s22, 1
      %s456 = scalar_select %p455, %s22, 1
      %p457 = scmp.lt.s32.totalorder %s24, 0
      %s458 = scalar_select %p457, %s24, 0
      %p459 = scmp.lt.s32.totalorder %s23, 0
      %s460 = scalar_select %p459, %s23, 0
      %s461 = smul.addr %s458, 4
      %s462 = sadd.s32 %s460, %s461
      %s463 = smul.addr %s456, 4
      %s464 = sadd.s32 %s462, %s463
      %s465 = smul.addr %s464, 4
      %s466 = scalar_lea.vmem %s4, %s465
      %p467 = scmp.lt.s32.totalorder %s23, 0
      %s468 = scalar_select %p467, %s23, 0
      %s469 = smul.addr %s468, 5
      %s470 = smul.addr %s469, 8
      %s471 = scalar_lea.vmem %s5, %s470
      %s472 = smul.u32 2, %s24
      %p473 = scmp.lt.s32.totalorder %s22, 1
      %s474 = scalar_select %p473, %s22, 1
      %p475 = scmp.lt.s32.totalorder %s472, 1
      %s476 = scalar_select %p475, %s472, 1
      %p477 = scmp.lt.s32.totalorder %s23, 0
      %s478 = scalar_select %p477, %s23, 0
      %s479 = sadd.s32 %s478, %s476
      %s480 = smul.addr %s474, 2
      %s481 = sadd.s32 %s479, %s480
      %s482 = smul.addr %s481, 4
      %s483 = scalar_lea.vmem %s6, %s482
      %s484 = smul.u32 2, %s24
      %v486 = vld [vmem:[%s453] sm:$0xf]
      %v487 = vld [vmem:[%s453 + $0x4] sm:$0xf]
      %v488 = vunpack.c.l.bf16 %v486
      %v489 = vunpack.c.l.bf16 %v487
      %v490 = vld [vmem:[%s466] sm:$0xf]
      %v491 = vld [vmem:[%s466 + $0x4] sm:$0xf]
      %v492 = vunpack.c.l.bf16 %v490
      %v493 = vunpack.c.l.bf16 %v491
      %v494 = vld [vmem:[%s466 + $0x8] sm:$0xf]
      %v495 = vld [vmem:[%s466 + $0xc] sm:$0xf]
      %v496 = vunpack.c.l.bf16 %v494
      %v497 = vunpack.c.l.bf16 %v495
      %v498 = vld [vmem:[%s471] sm:$0x1]
      %v499 = vperm.slane %v498, 0
      %v500 = vmul.f32 %v499, %v492
      %v501 = vmul.f32 %v499, %v493
      %v502 = vadd.f32 %v500, 0.0
      %v503 = vadd.f32 %v501, 0.0
      %v504 = vld [vmem:[%s471 + $0x1] sm:$0x1]
      %v505 = vperm.slane %v504, 0
      %v506 = vmul.f32 %v505, %v492
      %v507 = vmul.f32 %v505, %v493
      %v508 = vmul.f32 %v505, %v488
      %vm512 = vcmask 1046528
      %v513 = vrot.slane %v506, 1
      %v514 = vrot.slane %v507, 1
      %v515 = vsel %vm512, %v513, %v514
      %v516 = vrot.slane %v508, 1
      %v517 = vsel %vm512, %v514, %v516
      %v520 = vadd.f32 %v502, %v515
      %v521 = vadd.f32 %v503, %v517
      %v522 = vld [vmem:[%s471 + $0x2] sm:$0x1]
      %v523 = vperm.slane %v522, 0
      %v524 = vmul.f32 %v523, %v492
      %v525 = vmul.f32 %v523, %v493
      %v526 = vmul.f32 %v523, %v488
      %vm530 = vcmask 1045504
      %v531 = vrot.slane %v524, 2
      %v532 = vrot.slane %v525, 2
      %v533 = vsel %vm530, %v531, %v532
      %v534 = vrot.slane %v526, 2
      %v535 = vsel %vm530, %v532, %v534
      %v538 = vadd.f32 %v520, %v533
      %v539 = vadd.f32 %v521, %v535
      %v540 = vld [vmem:[%s471 + $0x3] sm:$0x1]
      %v541 = vperm.slane %v540, 0
      %v542 = vmul.f32 %v541, %v492
      %v543 = vmul.f32 %v541, %v493
      %v544 = vmul.f32 %v541, %v488
      %vm548 = vcmask 1044480
      %v549 = vrot.slane %v542, 3
      %v550 = vrot.slane %v543, 3
      %v551 = vsel %vm548, %v549, %v550
      %v552 = vrot.slane %v544, 3
      %v553 = vsel %vm548, %v550, %v552
      %v556 = vadd.f32 %v538, %v551
      %v557 = vadd.f32 %v539, %v553
      %v558 = vld [vmem:[%s471 + $0x4] sm:$0x1]
      %v559 = vperm.slane %v558, 0
      %v560 = vmul.f32 %v559, %v492
      %v561 = vmul.f32 %v559, %v493
      %v562 = vmul.f32 %v559, %v488
      %vm566 = vcmask 1043456
      %v567 = vrot.slane %v560, 4
      %v568 = vrot.slane %v561, 4
      %v569 = vsel %vm566, %v567, %v568
      %v570 = vrot.slane %v562, 4
      %v571 = vsel %vm566, %v568, %v570
      %v574 = vadd.f32 %v556, %v569
      %v575 = vadd.f32 %v557, %v571
      %v576 = vld [vmem:[%s471 + $0x5] sm:$0x1]
      %v577 = vperm.slane %v576, 0
      %v578 = vmul.f32 %v577, %v492
      %v579 = vmul.f32 %v577, %v493
      %v580 = vmul.f32 %v577, %v488
      %vm584 = vcmask 1042432
      %v585 = vrot.slane %v578, 5
      %v586 = vrot.slane %v579, 5
      %v587 = vsel %vm584, %v585, %v586
      %v588 = vrot.slane %v580, 5
      %v589 = vsel %vm584, %v586, %v588
      %v592 = vadd.f32 %v574, %v587
      %v593 = vadd.f32 %v575, %v589
      %v594 = vld [vmem:[%s471 + $0x6] sm:$0x1]
      %v595 = vperm.slane %v594, 0
      %v596 = vmul.f32 %v595, %v492
      %v597 = vmul.f32 %v595, %v493
      %v598 = vmul.f32 %v595, %v488
      %vm602 = vcmask 1041408
      %v603 = vrot.slane %v596, 6
      %v604 = vrot.slane %v597, 6
      %v605 = vsel %vm602, %v603, %v604
      %v606 = vrot.slane %v598, 6
      %v607 = vsel %vm602, %v604, %v606
      %v610 = vadd.f32 %v592, %v605
      %v611 = vadd.f32 %v593, %v607
      %v612 = vld [vmem:[%s471 + $0x7] sm:$0x1]
      %v613 = vperm.slane %v612, 0
      %v614 = vmul.f32 %v613, %v492
      %v615 = vmul.f32 %v613, %v493
      %v616 = vmul.f32 %v613, %v488
      %vm620 = vcmask 1040384
      %v621 = vrot.slane %v614, 7
      %v622 = vrot.slane %v615, 7
      %v623 = vsel %vm620, %v621, %v622
      %v624 = vrot.slane %v616, 7
      %v625 = vsel %vm620, %v622, %v624
      %v628 = vadd.f32 %v610, %v623
      %v629 = vadd.f32 %v611, %v625
      %v630 = vld [vmem:[%s471 + $0x8] sm:$0x1]
      %v631 = vperm.slane %v630, 0
      %v632 = vmul.f32 %v631, %v493
      %v633 = vmul.f32 %v631, %v488
      %v634 = vadd.f32 %v628, %v632
      %v635 = vadd.f32 %v629, %v633
      %v636 = vld [vmem:[%s471 + $0x9] sm:$0x1]
      %v637 = vperm.slane %v636, 0
      %v638 = vmul.f32 %v637, %v493
      %v639 = vmul.f32 %v637, %v488
      %v640 = vmul.f32 %v637, %v489
      %v644 = vrot.slane %v638, 1
      %v645 = vrot.slane %v639, 1
      %v646 = vsel %vm512, %v644, %v645
      %v647 = vrot.slane %v640, 1
      %v648 = vsel %vm512, %v645, %v647
      %v651 = vadd.f32 %v634, %v646
      %v652 = vadd.f32 %v635, %v648
      %v653 = vld [vmem:[%s471 + $0xa] sm:$0x1]
      %v654 = vperm.slane %v653, 0
      %v655 = vmul.f32 %v654, %v493
      %v656 = vmul.f32 %v654, %v488
      %v657 = vmul.f32 %v654, %v489
      %v661 = vrot.slane %v655, 2
      %v662 = vrot.slane %v656, 2
      %v663 = vsel %vm530, %v661, %v662
      %v664 = vrot.slane %v657, 2
      %v665 = vsel %vm530, %v662, %v664
      %v668 = vadd.f32 %v651, %v663
      %v669 = vadd.f32 %v652, %v665
      %v670 = vld [vmem:[%s471 + $0xb] sm:$0x1]
      %v671 = vperm.slane %v670, 0
      %v672 = vmul.f32 %v671, %v493
      %v673 = vmul.f32 %v671, %v488
      %v674 = vmul.f32 %v671, %v489
      %v678 = vrot.slane %v672, 3
      %v679 = vrot.slane %v673, 3
      %v680 = vsel %vm548, %v678, %v679
      %v681 = vrot.slane %v674, 3
      %v682 = vsel %vm548, %v679, %v681
      %v685 = vadd.f32 %v668, %v680
      %v686 = vadd.f32 %v669, %v682
      %v687 = vld [vmem:[%s471 + $0xc] sm:$0x1]
      %v688 = vperm.slane %v687, 0
      %v689 = vmul.f32 %v688, %v493
      %v690 = vmul.f32 %v688, %v488
      %v691 = vmul.f32 %v688, %v489
      %v695 = vrot.slane %v689, 4
      %v696 = vrot.slane %v690, 4
      %v697 = vsel %vm566, %v695, %v696
      %v698 = vrot.slane %v691, 4
      %v699 = vsel %vm566, %v696, %v698
      %v702 = vadd.f32 %v685, %v697
      %v703 = vadd.f32 %v686, %v699
      %v704 = vld [vmem:[%s471 + $0xd] sm:$0x1]
      %v705 = vperm.slane %v704, 0
      %v706 = vmul.f32 %v705, %v493
      %v707 = vmul.f32 %v705, %v488
      %v708 = vmul.f32 %v705, %v489
      %v712 = vrot.slane %v706, 5
      %v713 = vrot.slane %v707, 5
      %v714 = vsel %vm584, %v712, %v713
      %v715 = vrot.slane %v708, 5
      %v716 = vsel %vm584, %v713, %v715
      %v719 = vadd.f32 %v702, %v714
      %v720 = vadd.f32 %v703, %v716
      %v721 = vld [vmem:[%s471 + $0xe] sm:$0x1]
      %v722 = vperm.slane %v721, 0
      %v723 = vmul.f32 %v722, %v493
      %v724 = vmul.f32 %v722, %v488
      %v725 = vmul.f32 %v722, %v489
      %v729 = vrot.slane %v723, 6
      %v730 = vrot.slane %v724, 6
      %v731 = vsel %vm602, %v729, %v730
      %v732 = vrot.slane %v725, 6
      %v733 = vsel %vm602, %v730, %v732
      %v736 = vadd.f32 %v719, %v731
      %v737 = vadd.f32 %v720, %v733
      %v738 = vld [vmem:[%s471 + $0xf] sm:$0x1]
      %v739 = vperm.slane %v738, 0
      %v740 = vmul.f32 %v739, %v493
      %v741 = vmul.f32 %v739, %v488
      %v742 = vmul.f32 %v739, %v489
      %v746 = vrot.slane %v740, 7
      %v747 = vrot.slane %v741, 7
      %v748 = vsel %vm620, %v746, %v747
      %v749 = vrot.slane %v742, 7
      %v750 = vsel %vm620, %v747, %v749
      %v753 = vadd.f32 %v736, %v748
      %v754 = vadd.f32 %v737, %v750
      %v755 = vld [vmem:[%s471 + $0x10] sm:$0x1]
      %v756 = vperm.slane %v755, 0
      %v757 = vmul.f32 %v756, %v488
      %v758 = vmul.f32 %v756, %v489
      %v759 = vadd.f32 %v753, %v757
      %v760 = vadd.f32 %v754, %v758
      %v761 = vld [vmem:[%s471 + $0x11] sm:$0x1]
      %v762 = vperm.slane %v761, 0
      %v763 = vmul.f32 %v762, %v488
      %v764 = vmul.f32 %v762, %v489
      %v765 = vmul.f32 %v762, %v496
      %v769 = vrot.slane %v763, 1
      %v770 = vrot.slane %v764, 1
      %v771 = vsel %vm512, %v769, %v770
      %v772 = vrot.slane %v765, 1
      %v773 = vsel %vm512, %v770, %v772
      %v776 = vadd.f32 %v759, %v771
      %v777 = vadd.f32 %v760, %v773
      %v778 = vld [vmem:[%s471 + $0x12] sm:$0x1]
      %v779 = vperm.slane %v778, 0
      %v780 = vmul.f32 %v779, %v488
      %v781 = vmul.f32 %v779, %v489
      %v782 = vmul.f32 %v779, %v496
      %v786 = vrot.slane %v780, 2
      %v787 = vrot.slane %v781, 2
      %v788 = vsel %vm530, %v786, %v787
      %v789 = vrot.slane %v782, 2
      %v790 = vsel %vm530, %v787, %v789
      %v793 = vadd.f32 %v776, %v788
      %v794 = vadd.f32 %v777, %v790
      %v795 = vld [vmem:[%s471 + $0x13] sm:$0x1]
      %v796 = vperm.slane %v795, 0
      %v797 = vmul.f32 %v796, %v488
      %v798 = vmul.f32 %v796, %v489
      %v799 = vmul.f32 %v796, %v496
      %v803 = vrot.slane %v797, 3
      %v804 = vrot.slane %v798, 3
      %v805 = vsel %vm548, %v803, %v804
      %v806 = vrot.slane %v799, 3
      %v807 = vsel %vm548, %v804, %v806
      %v810 = vadd.f32 %v793, %v805
      %v811 = vadd.f32 %v794, %v807
      %v812 = vld [vmem:[%s471 + $0x14] sm:$0x1]
      %v813 = vperm.slane %v812, 0
      %v814 = vmul.f32 %v813, %v488
      %v815 = vmul.f32 %v813, %v489
      %v816 = vmul.f32 %v813, %v496
      %v820 = vrot.slane %v814, 4
      %v821 = vrot.slane %v815, 4
      %v822 = vsel %vm566, %v820, %v821
      %v823 = vrot.slane %v816, 4
      %v824 = vsel %vm566, %v821, %v823
      %v827 = vadd.f32 %v810, %v822
      %v828 = vadd.f32 %v811, %v824
      %v829 = vld [vmem:[%s471 + $0x15] sm:$0x1]
      %v830 = vperm.slane %v829, 0
      %v831 = vmul.f32 %v830, %v488
      %v832 = vmul.f32 %v830, %v489
      %v833 = vmul.f32 %v830, %v496
      %v837 = vrot.slane %v831, 5
      %v838 = vrot.slane %v832, 5
      %v839 = vsel %vm584, %v837, %v838
      %v840 = vrot.slane %v833, 5
      %v841 = vsel %vm584, %v838, %v840
      %v844 = vadd.f32 %v827, %v839
      %v845 = vadd.f32 %v828, %v841
      %v846 = vld [vmem:[%s471 + $0x16] sm:$0x1]
      %v847 = vperm.slane %v846, 0
      %v848 = vmul.f32 %v847, %v488
      %v849 = vmul.f32 %v847, %v489
      %v850 = vmul.f32 %v847, %v496
      %v854 = vrot.slane %v848, 6
      %v855 = vrot.slane %v849, 6
      %v856 = vsel %vm602, %v854, %v855
      %v857 = vrot.slane %v850, 6
      %v858 = vsel %vm602, %v855, %v857
      %v861 = vadd.f32 %v844, %v856
      %v862 = vadd.f32 %v845, %v858
      %v863 = vld [vmem:[%s471 + $0x17] sm:$0x1]
      %v864 = vperm.slane %v863, 0
      %v865 = vmul.f32 %v864, %v488
      %v866 = vmul.f32 %v864, %v489
      %v867 = vmul.f32 %v864, %v496
      %v871 = vrot.slane %v865, 7
      %v872 = vrot.slane %v866, 7
      %v873 = vsel %vm620, %v871, %v872
      %v874 = vrot.slane %v867, 7
      %v875 = vsel %vm620, %v872, %v874
      %v878 = vadd.f32 %v861, %v873
      %v879 = vadd.f32 %v862, %v875
      %v880 = vld [vmem:[%s471 + $0x18] sm:$0x1]
      %v881 = vperm.slane %v880, 0
      %v882 = vmul.f32 %v881, %v489
      %v883 = vmul.f32 %v881, %v496
      %v884 = vadd.f32 %v878, %v882
      %v885 = vadd.f32 %v879, %v883
      %v886 = vld [vmem:[%s471 + $0x19] sm:$0x1]
      %v887 = vperm.slane %v886, 0
      %v888 = vmul.f32 %v887, %v489
      %v889 = vmul.f32 %v887, %v496
      %v890 = vmul.f32 %v887, %v497
      %v894 = vrot.slane %v888, 1
      %v895 = vrot.slane %v889, 1
      %v896 = vsel %vm512, %v894, %v895
      %v897 = vrot.slane %v890, 1
      %v898 = vsel %vm512, %v895, %v897
      %v901 = vadd.f32 %v884, %v896
      %v902 = vadd.f32 %v885, %v898
      %v903 = vld [vmem:[%s471 + $0x1a] sm:$0x1]
      %v904 = vperm.slane %v903, 0
      %v905 = vmul.f32 %v904, %v489
      %v906 = vmul.f32 %v904, %v496
      %v907 = vmul.f32 %v904, %v497
      %v911 = vrot.slane %v905, 2
      %v912 = vrot.slane %v906, 2
      %v913 = vsel %vm530, %v911, %v912
      %v914 = vrot.slane %v907, 2
      %v915 = vsel %vm530, %v912, %v914
      %v918 = vadd.f32 %v901, %v913
      %v919 = vadd.f32 %v902, %v915
      %v920 = vld [vmem:[%s471 + $0x1b] sm:$0x1]
      %v921 = vperm.slane %v920, 0
      %v922 = vmul.f32 %v921, %v489
      %v923 = vmul.f32 %v921, %v496
      %v924 = vmul.f32 %v921, %v497
      %v928 = vrot.slane %v922, 3
      %v929 = vrot.slane %v923, 3
      %v930 = vsel %vm548, %v928, %v929
      %v931 = vrot.slane %v924, 3
      %v932 = vsel %vm548, %v929, %v931
      %v935 = vadd.f32 %v918, %v930
      %v936 = vadd.f32 %v919, %v932
      %v937 = vld [vmem:[%s471 + $0x1c] sm:$0x1]
      %v938 = vperm.slane %v937, 0
      %v939 = vmul.f32 %v938, %v489
      %v940 = vmul.f32 %v938, %v496
      %v941 = vmul.f32 %v938, %v497
      %v945 = vrot.slane %v939, 4
      %v946 = vrot.slane %v940, 4
      %v947 = vsel %vm566, %v945, %v946
      %v948 = vrot.slane %v941, 4
      %v949 = vsel %vm566, %v946, %v948
      %v952 = vadd.f32 %v935, %v947
      %v953 = vadd.f32 %v936, %v949
      %v954 = vld [vmem:[%s471 + $0x1d] sm:$0x1]
      %v955 = vperm.slane %v954, 0
      %v956 = vmul.f32 %v955, %v489
      %v957 = vmul.f32 %v955, %v496
      %v958 = vmul.f32 %v955, %v497
      %v962 = vrot.slane %v956, 5
      %v963 = vrot.slane %v957, 5
      %v964 = vsel %vm584, %v962, %v963
      %v965 = vrot.slane %v958, 5
      %v966 = vsel %vm584, %v963, %v965
      %v969 = vadd.f32 %v952, %v964
      %v970 = vadd.f32 %v953, %v966
      %v971 = vld [vmem:[%s471 + $0x1e] sm:$0x1]
      %v972 = vperm.slane %v971, 0
      %v973 = vmul.f32 %v972, %v489
      %v974 = vmul.f32 %v972, %v496
      %v975 = vmul.f32 %v972, %v497
      %v979 = vrot.slane %v973, 6
      %v980 = vrot.slane %v974, 6
      %v981 = vsel %vm602, %v979, %v980
      %v982 = vrot.slane %v975, 6
      %v983 = vsel %vm602, %v980, %v982
      %v986 = vadd.f32 %v969, %v981
      %v987 = vadd.f32 %v970, %v983
      %v988 = vld [vmem:[%s471 + $0x1f] sm:$0x1]
      %v989 = vperm.slane %v988, 0
      %v990 = vmul.f32 %v989, %v489
      %v991 = vmul.f32 %v989, %v496
      %v992 = vmul.f32 %v989, %v497
      %v996 = vrot.slane %v990, 7
      %v997 = vrot.slane %v991, 7
      %v998 = vsel %vm620, %v996, %v997
      %v999 = vrot.slane %v992, 7
      %v1000 = vsel %vm620, %v997, %v999
      %v1003 = vadd.f32 %v986, %v998
      %v1004 = vadd.f32 %v987, %v1000
      %v1005 = vld [vmem:[%s471 + $0x20] sm:$0x1]
      %v1006 = vperm.slane %v1005, 0
      %v1007 = vmul.f32 %v1006, %v496
      %v1008 = vmul.f32 %v1006, %v497
      %v1009 = vadd.f32 %v1003, %v1007
      %v1010 = vadd.f32 %v1004, %v1008
      %v1011 = vld [vmem:[%s426] sm:$0xf]
      %v1012 = vld [vmem:[%s426 + $0x4] sm:$0xf]
      %v1013 = vld [vmem:[%s434] sm:$0xf]
      %v1016 = vunpack.c.l.b16 %v1011
      %v1017 = vunpack.c.l.b16 %v1012
      %v1018 = vpack.c.b16 %v1017, %v1016
      %vm1019 = vcmask 64512
      %v1021 = vsel %vm1019, %v1018, 0
      %v1024 = vsel %vm1019, %v1013, 0
      %1026 = vmatpush.bf16.xpose.msra.mxu0 0
      %1027 = vmatpush.bf16.xpose.msra.mxu0 0
      %1028 = vmatpush.bf16.xpose.msra.mxu0 0
      %1029 = vmatpush.bf16.xpose.msra.mxu0 0
      %1030 = vmatpush.bf16.xpose.msra.mxu0 0
      %1031 = vmatpush.bf16.xpose.msra.mxu0 0
      %1032 = vmatpush.bf16.xpose.msra.mxu0 0
      %1033 = vmatpush.bf16.xpose.msra.mxu0 %v1024
      %1034 = vmatmul.bf16.gmra.mxu0 %v1021
      %v1035 = vpop.f32.mrf.mxu0
      %v1036 = vadd.f32 0.0, %v1035
      %v1037 = vpop.f32.mrf.mxu0
      %v1038 = vadd.f32 0.0, %v1037
      %1039 = vdwg.mxu0
      %v1040 = vsel %vm1019, %v1036, -inf
      %1041 = vmax.xlane.f32.xlu0 %v1040
      %v1042 = vpop.xlane.xlu0 %1041
      %v1043 = vsel %vm1019, %v1038, -inf
      %1044 = vmax.xlane.f32.xlu0 %v1043
      %v1045 = vpop.xlane.xlu0 %1044
      %v1046 = vsub.f32 %v1036, %v1042
      %v1047 = vsub.f32 %v1038, %v1045
      %v1048 = vmul.f32 %v1046, 1.442695
      %v1049 = vpow.pop %v1048
      %v1050 = vmul.f32 %v1047, 1.442695
      %v1051 = vpow.pop %v1050
      %v1052 = vsel %vm1019, %v1049, 0.0
      %1053 = vadd.xlane.f32.xlu0 %v1052
      %v1054 = vpop.xlane.xlu0 %1053
      %v1055 = vsel %vm1019, %v1051, 0.0
      %1056 = vadd.xlane.f32.xlu0 %v1055
      %v1057 = vpop.xlane.xlu0 %1056
      %v1058 = vrcp.pop %v1054
      %v1059 = vrcp.pop %v1057
      %v1060 = vmul.f32 %v1049, %v1058
      %v1061 = vmul.f32 %v1051, %v1059
      %v1062 = vpack.c.bf16 %v1061, %v1060
      %v1063 = vld [vmem:[%s441] sm:$0xf]
      %v1065 = vsel %vm1019, %v1062, 0
      %v1068 = vsel %vm566, %v1063, 0
      %1070 = vmatpush.bf16.msra.mxu0 0
      %1071 = vmatpush.bf16.msra.mxu0 0
      %1072 = vmatpush.bf16.msra.mxu0 0
      %1073 = vmatpush.bf16.msra.mxu0 0
      %1074 = vmatpush.bf16.msra.mxu0 0
      %1075 = vmatpush.bf16.msra.mxu0 0
      %1076 = vmatpush.bf16.msra.mxu0 0
      %1077 = vmatpush.bf16.msra.mxu0 %v1068
      %1078 = vmatmul.bf16.gmra.mxu0 %v1065
      %v1079 = vpop.f32.mrf.mxu0
      %v1080 = vadd.f32 %v1009, %v1079
      %v1081 = vpop.f32.mrf.mxu0
      %v1082 = vadd.f32 %v1010, %v1081
      %1083 = vdwg.mxu0
      %v1084 = vpack.c.bf16 %v1080, %v1080
      %v1085 = vpack.c.bf16 %v1082, %v1082
      %vm1086 = vcmask 60416
      %1087 = vst.msk [vmem:[%s483] sm:$0xf] %vm1086, %v1084
      %1088 = vst.msk [vmem:[%s483 + $0x4] sm:$0xf] %vm1086, %v1085
      %v1089 = vld [vmem:[%s426] sm:$0xf]
      %v1090 = vld [vmem:[%s426 + $0x4] sm:$0xf]
      %v1091 = vld [vmem:[%s434] sm:$0xf]
      %v1094 = vunpack.c.l.b16 %v1089
      %v1095 = vunpack.c.l.b16 %v1090
      %v1096 = vpack.c.b16 %v1095, %v1094
      %1097 = vrot.lane.b32.xlu0 %v1096, 120
      %v1098 = vpop.permute.xlu0 %1097
      %v1100 = vunpack.c.l.b16 %v1091
      %v1101 = vpack.c.b16 %v1100, %v1100
      %1102 = vrot.lane.b32.xlu0 %v1101, 120
      %v1103 = vpop.permute.xlu0 %1102
      %v1105 = vsel %vm1019, %v1098, 0
      %v1108 = vsel %vm1019, %v1103, 0
      %1110 = vmatpush.bf16.xpose.msra.mxu0 0
      %1111 = vmatpush.bf16.xpose.msra.mxu0 0
      %1112 = vmatpush.bf16.xpose.msra.mxu0 0
      %1113 = vmatpush.bf16.xpose.msra.mxu0 0
      %1114 = vmatpush.bf16.xpose.msra.mxu0 0
      %1115 = vmatpush.bf16.xpose.msra.mxu0 0
      %1116 = vmatpush.bf16.xpose.msra.mxu0 0
      %1117 = vmatpush.bf16.xpose.msra.mxu0 %v1108
      %1118 = vmatmul.bf16.gmra.mxu0 %v1105
      %v1119 = vpop.f32.mrf.mxu0
      %v1120 = vadd.f32 0.0, %v1119
      %v1121 = vpop.f32.mrf.mxu0
      %v1122 = vadd.f32 0.0, %v1121
      %1123 = vdwg.mxu0
      %v1124 = vsel %vm1019, %v1120, -inf
      %1125 = vmax.xlane.f32.xlu0 %v1124
      %v1126 = vpop.xlane.xlu0 %1125
      %v1127 = vsel %vm1019, %v1122, -inf
      %1128 = vmax.xlane.f32.xlu0 %v1127
      %v1129 = vpop.xlane.xlu0 %1128
      %v1130 = vsub.f32 %v1120, %v1126
      %v1131 = vsub.f32 %v1122, %v1129
      %v1132 = vmul.f32 %v1130, 1.442695
      %v1133 = vpow.pop %v1132
      %v1134 = vmul.f32 %v1131, 1.442695
      %v1135 = vpow.pop %v1134
      %v1136 = vsel %vm1019, %v1133, 0.0
      %1137 = vadd.xlane.f32.xlu0 %v1136
      %v1138 = vpop.xlane.xlu0 %1137
      %v1139 = vsel %vm1019, %v1135, 0.0
      %1140 = vadd.xlane.f32.xlu0 %v1139
      %v1141 = vpop.xlane.xlu0 %1140
      %v1142 = vrcp.pop %v1138
      %v1143 = vrcp.pop %v1141
      %v1144 = vmul.f32 %v1133, %v1142
      %v1145 = vmul.f32 %v1135, %v1143
      %v1146 = vpack.c.bf16 %v1145, %v1144
      %v1147 = vld [vmem:[%s441] sm:$0xf]
      %v1149 = vunpack.c.l.b16 %v1147
      %v1150 = vpack.c.b16 %v1149, %v1149
      %1151 = vrot.lane.b32.xlu0 %v1150, 120
      %v1152 = vpop.permute.xlu0 %1151
      %1155 = vrot.lane.b32.xlu0 %v1009, 120
      %v1156 = vpop.permute.xlu0 %1155
      %1157 = vrot.lane.b32.xlu0 %v1010, 120
      %v1158 = vpop.permute.xlu0 %1157
      %v1162 = vsel %vm1019, %v1146, 0
      %v1165 = vsel %vm566, %v1152, 0
      %1167 = vmatpush.bf16.msra.mxu0 0
      %1168 = vmatpush.bf16.msra.mxu0 0
      %1169 = vmatpush.bf16.msra.mxu0 0
      %1170 = vmatpush.bf16.msra.mxu0 0
      %1171 = vmatpush.bf16.msra.mxu0 0
      %1172 = vmatpush.bf16.msra.mxu0 0
      %1173 = vmatpush.bf16.msra.mxu0 0
      %1174 = vmatpush.bf16.msra.mxu0 %v1165
      %1175 = vmatmul.bf16.gmra.mxu0 %v1162
      %v1176 = vpop.f32.mrf.mxu0
      %v1177 = vadd.f32 %v1156, %v1176
      %v1178 = vpop.f32.mrf.mxu0
      %v1179 = vadd.f32 %v1158, %v1178
      %1180 = vdwg.mxu0
      %v1181 = vpack.c.bf16 %v1177, %v1177
      %v1182 = vpack.c.bf16 %v1179, %v1179
      %1185 = vrot.lane.b32.xlu0 %v1181, 8
      %v1186 = vpop.permute.xlu0 %1185
      %1187 = vrot.lane.b32.xlu0 %v1182, 8
      %v1188 = vpop.permute.xlu0 %1187
      %vm1191 = vcmask 126016
      %1192 = vst.msk [vmem:[%s483] sm:$0xf] %vm1191, %v1186
      %1193 = vst.msk [vmem:[%s483 + $0x4] sm:$0xf] %vm1191, %v1188
      %v1194 = vld [vmem:[%s426] sm:$0xf]
      %v1195 = vld [vmem:[%s426 + $0x4] sm:$0xf]
      %v1196 = vld [vmem:[%s434] sm:$0xf]
      %v1199 = vunpack.c.l.b16 %v1194
      %v1200 = vunpack.c.l.b16 %v1195
      %v1201 = vpack.c.b16 %v1200, %v1199
      %1202 = vrot.lane.b32.xlu0 %v1201, 112
      %v1203 = vpop.permute.xlu0 %1202
      %v1205 = vunpack.c.l.b16 %v1196
      %v1206 = vpack.c.b16 %v1205, %v1205
      %1207 = vrot.lane.b32.xlu0 %v1206, 112
      %v1208 = vpop.permute.xlu0 %1207
      %v1210 = vsel %vm1019, %v1203, 0
      %v1213 = vsel %vm1019, %v1208, 0
      %1215 = vmatpush.bf16.xpose.msra.mxu0 0
      %1216 = vmatpush.bf16.xpose.msra.mxu0 0
      %1217 = vmatpush.bf16.xpose.msra.mxu0 0
      %1218 = vmatpush.bf16.xpose.msra.mxu0 0
      %1219 = vmatpush.bf16.xpose.msra.mxu0 0
      %1220 = vmatpush.bf16.xpose.msra.mxu0 0
      %1221 = vmatpush.bf16.xpose.msra.mxu0 0
      %1222 = vmatpush.bf16.xpose.msra.mxu0 %v1213
      %1223 = vmatmul.bf16.gmra.mxu0 %v1210
      %v1224 = vpop.f32.mrf.mxu0
      %v1225 = vadd.f32 0.0, %v1224
      %v1226 = vpop.f32.mrf.mxu0
      %v1227 = vadd.f32 0.0, %v1226
      %1228 = vdwg.mxu0
      %v1229 = vsel %vm1019, %v1225, -inf
      %1230 = vmax.xlane.f32.xlu0 %v1229
      %v1231 = vpop.xlane.xlu0 %1230
      %v1232 = vsel %vm1019, %v1227, -inf
      %1233 = vmax.xlane.f32.xlu0 %v1232
      %v1234 = vpop.xlane.xlu0 %1233
      %v1235 = vsub.f32 %v1225, %v1231
      %v1236 = vsub.f32 %v1227, %v1234
      %v1237 = vmul.f32 %v1235, 1.442695
      %v1238 = vpow.pop %v1237
      %v1239 = vmul.f32 %v1236, 1.442695
      %v1240 = vpow.pop %v1239
      %v1241 = vsel %vm1019, %v1238, 0.0
      %1242 = vadd.xlane.f32.xlu0 %v1241
      %v1243 = vpop.xlane.xlu0 %1242
      %v1244 = vsel %vm1019, %v1240, 0.0
      %1245 = vadd.xlane.f32.xlu0 %v1244
      %v1246 = vpop.xlane.xlu0 %1245
      %v1247 = vrcp.pop %v1243
      %v1248 = vrcp.pop %v1246
      %v1249 = vmul.f32 %v1238, %v1247
      %v1250 = vmul.f32 %v1240, %v1248
      %v1251 = vpack.c.bf16 %v1250, %v1249
      %v1252 = vld [vmem:[%s441] sm:$0xf]
      %v1254 = vunpack.c.l.b16 %v1252
      %v1255 = vpack.c.b16 %v1254, %v1254
      %1256 = vrot.lane.b32.xlu0 %v1255, 112
      %v1257 = vpop.permute.xlu0 %1256
      %1258 = vrot.lane.b32.xlu0 %v1009, 112
      %v1259 = vpop.permute.xlu0 %1258
      %1260 = vrot.lane.b32.xlu0 %v1010, 112
      %v1261 = vpop.permute.xlu0 %1260
      %v1265 = vsel %vm1019, %v1251, 0
      %v1268 = vsel %vm566, %v1257, 0
      %1270 = vmatpush.bf16.msra.mxu0 0
      %1271 = vmatpush.bf16.msra.mxu0 0
      %1272 = vmatpush.bf16.msra.mxu0 0
      %1273 = vmatpush.bf16.msra.mxu0 0
      %1274 = vmatpush.bf16.msra.mxu0 0
      %1275 = vmatpush.bf16.msra.mxu0 0
      %1276 = vmatpush.bf16.msra.mxu0 0
      %1277 = vmatpush.bf16.msra.mxu0 %v1268
      %1278 = vmatmul.bf16.gmra.mxu0 %v1265
      %v1279 = vpop.f32.mrf.mxu0
      %v1280 = vadd.f32 %v1259, %v1279
      %v1281 = vpop.f32.mrf.mxu0
      %v1282 = vadd.f32 %v1261, %v1281
      %1283 = vdwg.mxu0
      %v1284 = vpack.c.bf16 %v1280, %v1280
      %v1285 = vpack.c.bf16 %v1282, %v1282
      %1288 = vrot.lane.b32.xlu0 %v1284, 16
      %v1289 = vpop.permute.xlu0 %1288
      %1290 = vrot.lane.b32.xlu0 %v1285, 16
      %v1291 = vpop.permute.xlu0 %1290
      %vm1294 = vcmask 191616
      %1295 = vst.msk [vmem:[%s483] sm:$0xf] %vm1294, %v1289
      %1296 = vst.msk [vmem:[%s483 + $0x4] sm:$0xf] %vm1294, %v1291
      %v1297 = vld [vmem:[%s426] sm:$0xf]
      %v1298 = vld [vmem:[%s426 + $0x4] sm:$0xf]
      %v1299 = vld [vmem:[%s434] sm:$0xf]
      %v1302 = vunpack.c.l.b16 %v1297
      %v1303 = vunpack.c.l.b16 %v1298
      %v1304 = vpack.c.b16 %v1303, %v1302
      %1305 = vrot.lane.b32.xlu0 %v1304, 104
      %v1306 = vpop.permute.xlu0 %1305
      %v1308 = vunpack.c.l.b16 %v1299
      %v1309 = vpack.c.b16 %v1308, %v1308
      %1310 = vrot.lane.b32.xlu0 %v1309, 104
      %v1311 = vpop.permute.xlu0 %1310
      %v1313 = vsel %vm1019, %v1306, 0
      %v1316 = vsel %vm1019, %v1311, 0
      %1318 = vmatpush.bf16.xpose.msra.mxu0 0
      %1319 = vmatpush.bf16.xpose.msra.mxu0 0
      %1320 = vmatpush.bf16.xpose.msra.mxu0 0
      %1321 = vmatpush.bf16.xpose.msra.mxu0 0
      %1322 = vmatpush.bf16.xpose.msra.mxu0 0
      %1323 = vmatpush.bf16.xpose.msra.mxu0 0
      %1324 = vmatpush.bf16.xpose.msra.mxu0 0
      %1325 = vmatpush.bf16.xpose.msra.mxu0 %v1316
      %1326 = vmatmul.bf16.gmra.mxu0 %v1313
      %v1327 = vpop.f32.mrf.mxu0
      %v1328 = vadd.f32 0.0, %v1327
      %v1329 = vpop.f32.mrf.mxu0
      %v1330 = vadd.f32 0.0, %v1329
      %1331 = vdwg.mxu0
      %v1332 = vsel %vm1019, %v1328, -inf
      %1333 = vmax.xlane.f32.xlu0 %v1332
      %v1334 = vpop.xlane.xlu0 %1333
      %v1335 = vsel %vm1019, %v1330, -inf
      %1336 = vmax.xlane.f32.xlu0 %v1335
      %v1337 = vpop.xlane.xlu0 %1336
      %v1338 = vsub.f32 %v1328, %v1334
      %v1339 = vsub.f32 %v1330, %v1337
      %v1340 = vmul.f32 %v1338, 1.442695
      %v1341 = vpow.pop %v1340
      %v1342 = vmul.f32 %v1339, 1.442695
      %v1343 = vpow.pop %v1342
      %v1344 = vsel %vm1019, %v1341, 0.0
      %1345 = vadd.xlane.f32.xlu0 %v1344
      %v1346 = vpop.xlane.xlu0 %1345
      %v1347 = vsel %vm1019, %v1343, 0.0
      %1348 = vadd.xlane.f32.xlu0 %v1347
      %v1349 = vpop.xlane.xlu0 %1348
      %v1350 = vrcp.pop %v1346
      %v1351 = vrcp.pop %v1349
      %v1352 = vmul.f32 %v1341, %v1350
      %v1353 = vmul.f32 %v1343, %v1351
      %v1354 = vpack.c.bf16 %v1353, %v1352
      %v1355 = vld [vmem:[%s441] sm:$0xf]
      %v1357 = vunpack.c.l.b16 %v1355
      %v1358 = vpack.c.b16 %v1357, %v1357
      %1359 = vrot.lane.b32.xlu0 %v1358, 104
      %v1360 = vpop.permute.xlu0 %1359
      %1361 = vrot.lane.b32.xlu0 %v1009, 104
      %v1362 = vpop.permute.xlu0 %1361
      %1363 = vrot.lane.b32.xlu0 %v1010, 104
      %v1364 = vpop.permute.xlu0 %1363
      %v1368 = vsel %vm1019, %v1354, 0
      %v1371 = vsel %vm566, %v1360, 0
      %1373 = vmatpush.bf16.msra.mxu0 0
      %1374 = vmatpush.bf16.msra.mxu0 0
      %1375 = vmatpush.bf16.msra.mxu0 0
      %1376 = vmatpush.bf16.msra.mxu0 0
      %1377 = vmatpush.bf16.msra.mxu0 0
      %1378 = vmatpush.bf16.msra.mxu0 0
      %1379 = vmatpush.bf16.msra.mxu0 0
      %1380 = vmatpush.bf16.msra.mxu0 %v1371
      %1381 = vmatmul.bf16.gmra.mxu0 %v1368
      %v1382 = vpop.f32.mrf.mxu0
      %v1383 = vadd.f32 %v1362, %v1382
      %v1384 = vpop.f32.mrf.mxu0
      %v1385 = vadd.f32 %v1364, %v1384
      %1386 = vdwg.mxu0
      %v1387 = vpack.c.bf16 %v1383, %v1383
      %v1388 = vpack.c.bf16 %v1385, %v1385
      %1391 = vrot.lane.b32.xlu0 %v1387, 24
      %v1392 = vpop.permute.xlu0 %1391
      %1393 = vrot.lane.b32.xlu0 %v1388, 24
      %v1394 = vpop.permute.xlu0 %1393
      %vm1397 = vcmask 257216
      %1398 = vst.msk [vmem:[%s483] sm:$0xf] %vm1397, %v1392
      %1399 = vst.msk [vmem:[%s483 + $0x4] sm:$0xf] %vm1397, %v1394
      %s1400 = smul.u32 2, %s24
      %p1401 = scmp.lt.s32.totalorder %s22, 1
      %s1402 = scalar_select %p1401, %s22, 1
      %p1403 = scmp.lt.s32.totalorder %s1400, 1
      %s1404 = scalar_select %p1403, %s1400, 1
      %p1405 = scmp.lt.s32.totalorder %s23, 0
      %s1406 = scalar_select %p1405, %s23, 0
      %s1407 = sadd.s32 %s1406, %s1404
      %s1408 = smul.addr %s1402, 2
      %s1409 = sadd.s32 %s1407, %s1408
      %s1410 = smul.addr %s1409, 4
      %s1411 = scalar_lea.vmem %s6, %s1410
      // Predicated region
      $region45: #{nystrom_attention.10} parent=43 // pred_check
        %p1412 = pneg %p230
      $region46: #{nystrom_attention.10} parent=43 // pred_check_branch
        %1414 = sbr.rel (%p1412) target = $region48
      $region47: #{nystrom_attention.10} parent=43 // pred_region
        %s1415 = smul.u32 2, %s24
      $region48: #{nystrom_attention.10} parent=43 // pred_fallthru
        _
    $region44: #{nystrom_attention.10} parent=5 // pred_fallthru
      _
    %p1416 = scmp.le.s32.totalorder 2, %s12
    // Predicated region
    $region49: #{nystrom_attention.10} parent=5 // pred_check
      %p1417 = pneg %p1416
    $region50: #{nystrom_attention.10} parent=5 // pred_check_branch
      %1419 = sbr.rel (%p1417) target = $region52
    $region51: #{nystrom_attention.10} parent=5 // pred_region
      %s1420 = ssub.s32 %s12, 2
      // Predicated region
      $region53: #{nystrom_attention.10} parent=51 // pred_check
        %p1421 = pneg %p236
      $region54: #{nystrom_attention.10} parent=51 // pred_check_branch
        %1423 = sbr.rel (%p1421) target = $region56
      $region55: #{nystrom_attention.10} parent=51 // pred_region
        %s1424 = smul.u32 2, %s27
        %p1425 = scmp.lt.s32.totalorder %s25, 1
        %s1426 = scalar_select %p1425, %s25, 1
        %p1427 = scmp.lt.s32.totalorder %s1424, 1
        %s1428 = scalar_select %p1427, %s1424, 1
        %p1429 = scmp.lt.s32.totalorder %s26, 0
        %s1430 = scalar_select %p1429, %s26, 0
        %s1431 = sadd.s32 %s1430, %s1428
        %s1432 = smul.addr %s1426, 2
        %s1433 = sadd.s32 %s1431, %s1432
        %s1434 = smul.addr %s1433, 4
        %s1435 = scalar_lea.vmem %s6, %s1434
      $region56: #{nystrom_attention.10} parent=51 // pred_fallthru
        _
    $region52: #{nystrom_attention.10} parent=5 // pred_fallthru
      _
  $region6: #{nystrom_attention.10} parent=0 // loop_footer
    %s16 = sadd.s32 1, %s12
  $region7: #{nystrom_attention.10} parent=0 // loop_footer_branch
    %11 = sbr.rel target = $region3
  $region8: #{nystrom_attention.10} parent=0 // loop_exit
    _

</llo_original>
